<compile_context>
chip_gen: v7x
topology: tpu7x:2x2x1
jax: 0.10.0
libtpu: 0.0.40
codegen_flags: <defaults>
</compile_context>

<pallas_src>
import jax
import jax.numpy as jnp
from jax.experimental import pallas as pl
from jax.experimental.pallas import tpu as pltpu

GRID_SIZE = 5
SPLINE_ORDER = 3
NUM_BASIS = GRID_SIZE + SPLINE_ORDER          # 8
LN_EPS = 1e-5

_H = 2.0 / GRID_SIZE                          # uniform knot spacing
_INV_H = 1.0 / _H
# Extended uniform knot vector on [-1, 1]: t[j] = -1 + (j - spline_order) * h
_KNOTS = [-1.0 + (j - SPLINE_ORDER) * _H
          for j in range(GRID_SIZE + 2 * SPLINE_ORDER + 1)]   # 12 knots


def _round_up(x, m):
    return (x + m - 1) // m * m


# ---------------------------------------------------------------------------
# Shared math (pure jnp: used inside the Pallas kernel and by the references)
# ---------------------------------------------------------------------------
def _silu(x):
    # exp + divide live on the EUP slot; keeps the VALU free for the basis phase.
    return x * (1.0 / (1.0 + jnp.exp(-x)))


def _bspline_bases(x):
    """Cubic B-spline bases on the uniform extended grid, closed (local-support) form.

    x: (B, n) f32 -> list of NUM_BASIS (B, n) arrays.
    With j = floor((x - t0)/h) the knot interval and s in [0,1) the local coordinate,
    only bases j-3..j are nonzero, with the 4 cardinal cubic weights w0..w3.
    Matches the Cox-de Boor recursion with half-open order-0 intervals everywhere
    (including 0 outside the extended grid).
    """
    g = (x - _KNOTS[0]) * _INV_H
    j = jnp.floor(g)
    s = g - j
    s2 = s * s
    s3 = s2 * s
    om = 1.0 - s
    w0 = om * om * om * (1.0 / 6.0)                       # x in interval k+3
    w1 = 0.5 * s3 - s2 + (4.0 / 6.0)                      # x in interval k+2
    w2 = -0.5 * s3 + 0.5 * s2 + 0.5 * s + (1.0 / 6.0)     # x in interval k+1
    w3 = s3 * (1.0 / 6.0)                                 # x in interval k
    zero = jnp.zeros_like(x)
    bases = []
    for k in range(NUM_BASIS):
        bk = jnp.where(j == float(k), w3,
             jnp.where(j == float(k + 1), w2,
             jnp.where(j == float(k + 2), w1,
             jnp.where(j == float(k + 3), w0, zero))))
        bases.append(bk)
    return bases


def _kan_features(x):
    """(B, n) -> (B, 9*n): [silu(x), B0(x), ..., B7(x)] concatenated on the lane axis."""
    return jnp.concatenate([_silu(x)] + _bspline_bases(x), axis=-1)


def _kan_linear_fused(x, w_packed):
    """Fused KANLinear: one wide bf16 matmul with f32 accumulation.

    x: (B, n) f32; w_packed: (9*n, out) bf16 = [Wb; Ws0; ...; Ws7] stacked on rows.
    """
    feats = _kan_features(x).astype(jnp.bfloat16)
    return jnp.dot(feats, w_packed, preferred_element_type=jnp.float32)


def _layernorm(x, gamma, beta):
    mean = jnp.mean(x, axis=-1, keepdims=True)
    var = jnp.mean((x - mean) ** 2, axis=-1, keepdims=True)
    return (x - mean) * jax.lax.rsqrt(var + LN_EPS) * gamma + beta


# ---------------------------------------------------------------------------
# Pallas kernel
# ---------------------------------------------------------------------------
def _critic_kernel(x_ref, w1_ref, w2_ref, w3_ref, w4_ref, g_ref, b_ref, out_ref):
    x = x_ref[...]                                        # (TB, d0p) f32
    h = _kan_linear_fused(x, w1_ref[...])                 # (TB, 128)
    h = _kan_linear_fused(h, w2_ref[...])                 # (TB, 256)
    h = _layernorm(h, g_ref[...], b_ref[...])             # (TB, 256)
    h = _kan_linear_fused(h, w3_ref[...])                 # (TB, 128)
    # Final KANLinear(128 -> 1): out width 1 -> VPU multiply + XLU lane reduction
    # instead of a 1-column MXU matmul; store lane-dense (value broadcast to 128).
    feats = _kan_features(h)                              # (TB, 9*128) f32
    v = jnp.sum(feats * w4_ref[...], axis=-1, keepdims=True)   # (TB, 1)
    out_ref[...] = jnp.broadcast_to(v, out_ref.shape)


def kan_critic_forward(state, packed, *, batch_tile=256):
    """state: (B, input_dims) f32 -> value: (B, 1) f32."""
    B, d0 = state.shape
    d0p = packed["w1_packed"].shape[0] // (NUM_BASIS + 1)

    # Batch tiling: multiple of 8 sublanes, capped so activations stay well under
    # VMEM even on v7x (64 MiB); weights stay resident across the grid.
    b8 = _round_up(max(B, 8), 8)
    tb = min(batch_tile, b8)
    bp = _round_up(b8, tb)
    xs = jnp.zeros((bp, d0p), jnp.float32)
    xs = xs.at[:B, :d0].set(state)

    w1, w2, w3 = packed["w1_packed"], packed["w2_packed"], packed["w3_packed"]
    w4 = packed["w4_row"]
    gamma, beta = packed["ln_gamma"], packed["ln_beta"]

    def resident(arr):  # full-array block, same block for every grid step
        return pl.BlockSpec(arr.shape, lambda i: (0,) * arr.ndim)

    flops = 2 * bp * 9 * (d0p * 128 + 128 * 256 + 256 * 128 + 128 * 1)
    transcendentals = bp * (d0p + 128 + 256 + 128)
    bytes_accessed = (xs.size * 4 + w1.size * 2 + w2.size * 2 + w3.size * 2
                      + w4.size * 4 + (gamma.size + beta.size) * 4 + bp * 128 * 4)

    out = pl.pallas_call(
        _critic_kernel,
        out_shape=jax.ShapeDtypeStruct((bp, 128), jnp.float32),
        grid=(bp // tb,),
        in_specs=[
            pl.BlockSpec((tb, d0p), lambda i: (i, 0)),
            resident(w1), resident(w2), resident(w3), resident(w4),
            resident(gamma), resident(beta),
        ],
        out_specs=pl.BlockSpec((tb, 128), lambda i: (i, 0)),
        compiler_params=pltpu.CompilerParams(
            dimension_semantics=("parallel",),
            vmem_limit_bytes=64 * 1024 * 1024),
        cost_estimate=pl.CostEstimate(
            flops=flops, transcendentals=transcendentals,
            bytes_accessed=bytes_accessed),
    )(xs, w1, w2, w3, w4, gamma, beta)
    return out[:B, :1]


# ---------------------------------------------------------------------------
# Parameters (module-shaped) + host-side repacking for the fused kernel
# ---------------------------------------------------------------------------
def init_params(key, input_dims):
    """Synthetic module parameters: wb_i (in,out), ws_i (K,in,out), LayerNorm(256)."""
    dims = [(input_dims, 128), (128, 256), (256, 128), (128, 1)]   # <- (128,1) fixed
    ks = jax.random.split(key, 2 * len(dims))
    raw = {}
    for i, (din, dout) in enumerate(dims):
        scale = 1.0 / float(din) ** 0.5
        raw[f"wb{i+1}"] = scale * jax.random.normal(ks[2 * i], (din, dout), jnp.float32)
        raw[f"ws{i+1}"] = 0.1 * scale * jax.random.normal(
            ks[2 * i + 1], (NUM_BASIS, din, dout), jnp.float32)
    raw["ln_gamma"] = jnp.ones((1, 256), jnp.float32)
    raw["ln_beta"] = jnp.zeros((1, 256), jnp.float32)
    return raw


def pack_params(raw):
    """Stack [Wb; Ws0; ...; Ws7] per layer into one (9*in, out) matrix (bf16 for the
    MXU layers); zero-pad layer-1's input dim to a multiple of 128 so the in-kernel
    lane concat is aligned (padded rows are zero, so they contribute nothing)."""
    def stack(wb, ws, in_pad=None):
        din, dout = wb.shape
        if in_pad is not None and in_pad != din:
            wb = jnp.zeros((in_pad, dout), wb.dtype).at[:din].set(wb)
            ws = jnp.zeros((NUM_BASIS, in_pad, dout), ws.dtype).at[:, :din].set(ws)
        return jnp.concatenate([wb] + [ws[k] for k in range(NUM_BASIS)], axis=0)

    d0 = raw["wb1"].shape[0]
    d0p = _round_up(d0, 128)
    return {
        "w1_packed": stack(raw["wb1"], raw["ws1"], d0p).astype(jnp.bfloat16),
        "w2_packed": stack(raw["wb2"], raw["ws2"]).astype(jnp.bfloat16),
        "w3_packed": stack(raw["wb3"], raw["ws3"]).astype(jnp.bfloat16),
        # final (128 -> 1) layer stays f32; applied as a lane reduction in-kernel
        "w4_row": stack(raw["wb4"], raw["ws4"]).reshape(1, -1).astype(jnp.float32),
        "ln_gamma": raw["ln_gamma"],
        "ln_beta": raw["ln_beta"],
    }


# ---------------------------------------------------------------------------
# References for correctness checks
# ---------------------------------------------------------------------------
def _bspline_bases_ref(x):
    """Cox-de Boor recursion (faithful to efficient-kan's b_splines)."""
    t = _KNOTS
    bases = [((x >= t[k]) & (x < t[k + 1])).astype(jnp.float32)
             for k in range(len(t) - 1)]
    for p in range(1, SPLINE_ORDER + 1):
        bases = [(x - t[k]) / (t[k + p] - t[k]) * bases[k]
                 + (t[k + p + 1] - x) / (t[k + p + 1] - t[k + 1]) * bases[k + 1]
                 for k in range(len(bases) - 1)]
    return bases


def _reference_forward_f32(state, raw):
    """Pure f32 JAX reference: separate base/spline matmuls (module math)."""
    def kan_linear(x, wb, ws):
        out = jnp.dot(_silu(x), wb)
        for k, b in enumerate(_bspline_bases_ref(x)):
            out = out + jnp.dot(b, ws[k])
        return out
    h = kan_linear(state, raw["wb1"], raw["ws1"])
    h = kan_linear(h, raw["wb2"], raw["ws2"])
    h = _layernorm(h, raw["ln_gamma"], raw["ln_beta"])
    h = kan_linear(h, raw["wb3"], raw["ws3"])
    return kan_linear(h, raw["wb4"], raw["ws4"])


def _reference_forward_packed(state, packed):
    """Same math/precision as the kernel (packed bf16 matmuls), in plain JAX."""
    d0p = packed["w1_packed"].shape[0] // (NUM_BASIS + 1)
    x = jnp.zeros((state.shape[0], d0p), jnp.float32).at[:, :state.shape[1]].set(state)
    h = _kan_linear_fused(x, packed["w1_packed"])
    h = _kan_linear_fused(h, packed["w2_packed"])
    h = _layernorm(h, packed["ln_gamma"], packed["ln_beta"])
    h = _kan_linear_fused(h, packed["w3_packed"])
    feats = _kan_features(h)
    return jnp.sum(feats * packed["w4_row"], axis=-1, keepdims=True)


# TODO(synk): optimizer (Adam), checkpoint save/load and device selection from the
# PyTorch module are training/IO utilities, not part of the forward pass.
if __name__ == "__main__":
    key = jax.random.PRNGKey(0)
    k_state, k_params = jax.random.split(key)

    batch, input_dims = 8, 8
    # inputs roughly in [-1, 1] (the B-spline grid range)
    state = jax.random.uniform(k_state, (batch, input_dims),
                               minval=-1.0, maxval=1.0, dtype=jnp.float32)
    raw = init_params(k_params, input_dims)
    packed = pack_params(raw)

    value = jax.block_until_ready(kan_critic_forward(state, packed))
    assert value.shape == (batch, 1)

    # Tight check: identical math/precision (packed bf16) in plain JAX.
    ref_tight = _reference_forward_packed(state, packed)
    assert jnp.allclose(value, ref_tight, atol=2e-3, rtol=2e-3), (value, ref_tight)
    # Loose check: full-f32 module reference (only bf16 matmul rounding differs).
    ref_f32 = _reference_forward_f32(state, raw)
    assert jnp.allclose(value, ref_f32, atol=5e-2, rtol=5e-2), (value, ref_f32)

    print("KERNEL_OK")
</pallas_src>

<mosaic_0001>
module attributes {stable_mosaic.version = 11 : i64} {
  func.func @_critic_kernel(%arg0: i32, %arg1: memref<8x128xf32, #tpu.memory_space<vmem>>, %arg2: memref<1152x128xbf16, #tpu.memory_space<vmem>>, %arg3: memref<1152x256xbf16, #tpu.memory_space<vmem>>, %arg4: memref<2304x128xbf16, #tpu.memory_space<vmem>>, %arg5: memref<1x1152xf32, #tpu.memory_space<vmem>>, %arg6: memref<1x256xf32, #tpu.memory_space<vmem>>, %arg7: memref<1x256xf32, #tpu.memory_space<vmem>>, %arg8: memref<8x128xf32, #tpu.memory_space<vmem>>) attributes {dimension_semantics = [#tpu.dimension_semantics<parallel>], iteration_bounds = array<i64: 1>, scalar_prefetch = 0 : i64, scratch_operands = 0 : i64, tpu.core_type = #tpu.core_type<tc>, window_params = [{transform_indices = @transform_0, window_bounds = array<i64: 8, 128>}, {pipeline_mode = #tpu.pipeline_mode<synchronous>, transform_indices = @transform_1, window_bounds = array<i64: 1152, 128>}, {pipeline_mode = #tpu.pipeline_mode<synchronous>, transform_indices = @transform_2, window_bounds = array<i64: 1152, 256>}, {pipeline_mode = #tpu.pipeline_mode<synchronous>, transform_indices = @transform_3, window_bounds = array<i64: 2304, 128>}, {pipeline_mode = #tpu.pipeline_mode<synchronous>, transform_indices = @transform_4, window_bounds = array<i64: 1, 1152>}, {pipeline_mode = #tpu.pipeline_mode<synchronous>, transform_indices = @transform_5, window_bounds = array<i64: 1, 256>}, {pipeline_mode = #tpu.pipeline_mode<synchronous>, transform_indices = @transform_6, window_bounds = array<i64: 1, 256>}, {transform_indices = @transform_7, window_bounds = array<i64: 8, 128>}]} {
    %c0 = arith.constant 0 : index
    %c0_0 = arith.constant 0 : index
    %0 = vector.load %arg1[%c0, %c0_0] : memref<8x128xf32, #tpu.memory_space<vmem>>, vector<8x128xf32>
    %c0_1 = arith.constant 0 : index
    %c0_2 = arith.constant 0 : index
    %1 = vector.load %arg2[%c0_1, %c0_2] : memref<1152x128xbf16, #tpu.memory_space<vmem>>, vector<1152x128xbf16>
    %cst = arith.constant 0.000000e+00 : f32
    %2 = vector.broadcast %cst : f32 to vector<8x128xf32>
    %3 = arith.subf %2, %0 : vector<8x128xf32>
    %4 = math.exp %3 : vector<8x128xf32>
    %cst_3 = arith.constant 1.000000e+00 : f32
    %5 = vector.broadcast %cst_3 : f32 to vector<8x128xf32>
    %6 = arith.addf %5, %4 : vector<8x128xf32>
    %cst_4 = arith.constant 1.000000e+00 : f32
    %7 = vector.broadcast %cst_4 : f32 to vector<8x128xf32>
    %8 = arith.divf %7, %6 : vector<8x128xf32>
    %9 = arith.mulf %0, %8 : vector<8x128xf32>
    %cst_5 = arith.constant -2.200000e+00 : f32
    %10 = vector.broadcast %cst_5 : f32 to vector<8x128xf32>
    %11 = arith.subf %0, %10 : vector<8x128xf32>
    %cst_6 = arith.constant 2.500000e+00 : f32
    %12 = vector.broadcast %cst_6 : f32 to vector<8x128xf32>
    %13 = arith.mulf %11, %12 : vector<8x128xf32>
    %14 = math.floor %13 : vector<8x128xf32>
    %15 = arith.subf %13, %14 : vector<8x128xf32>
    %16 = arith.mulf %15, %15 : vector<8x128xf32>
    %17 = arith.mulf %16, %15 : vector<8x128xf32>
    %cst_7 = arith.constant 1.000000e+00 : f32
    %18 = vector.broadcast %cst_7 : f32 to vector<8x128xf32>
    %19 = arith.subf %18, %15 : vector<8x128xf32>
    %20 = arith.mulf %19, %19 : vector<8x128xf32>
    %21 = arith.mulf %20, %19 : vector<8x128xf32>
    %cst_8 = arith.constant 0.166666672 : f32
    %22 = vector.broadcast %cst_8 : f32 to vector<8x128xf32>
    %23 = arith.mulf %21, %22 : vector<8x128xf32>
    %cst_9 = arith.constant 5.000000e-01 : f32
    %24 = vector.broadcast %cst_9 : f32 to vector<8x128xf32>
    %25 = arith.mulf %24, %17 : vector<8x128xf32>
    %26 = arith.subf %25, %16 : vector<8x128xf32>
    %cst_10 = arith.constant 0.666666686 : f32
    %27 = vector.broadcast %cst_10 : f32 to vector<8x128xf32>
    %28 = arith.addf %26, %27 : vector<8x128xf32>
    %cst_11 = arith.constant -5.000000e-01 : f32
    %29 = vector.broadcast %cst_11 : f32 to vector<8x128xf32>
    %30 = arith.mulf %29, %17 : vector<8x128xf32>
    %cst_12 = arith.constant 5.000000e-01 : f32
    %31 = vector.broadcast %cst_12 : f32 to vector<8x128xf32>
    %32 = arith.mulf %31, %16 : vector<8x128xf32>
    %33 = arith.addf %30, %32 : vector<8x128xf32>
    %cst_13 = arith.constant 5.000000e-01 : f32
    %34 = vector.broadcast %cst_13 : f32 to vector<8x128xf32>
    %35 = arith.mulf %34, %15 : vector<8x128xf32>
    %36 = arith.addf %33, %35 : vector<8x128xf32>
    %cst_14 = arith.constant 0.166666672 : f32
    %37 = vector.broadcast %cst_14 : f32 to vector<8x128xf32>
    %38 = arith.addf %36, %37 : vector<8x128xf32>
    %cst_15 = arith.constant 0.166666672 : f32
    %39 = vector.broadcast %cst_15 : f32 to vector<8x128xf32>
    %40 = arith.mulf %17, %39 : vector<8x128xf32>
    %cst_16 = arith.constant 0.000000e+00 : f32
    %41 = vector.broadcast %cst_16 : f32 to vector<8x128xf32>
    %cst_17 = arith.constant 0.000000e+00 : f32
    %42 = vector.broadcast %cst_17 : f32 to vector<8x128xf32>
    %43 = arith.cmpf oeq, %14, %42 : vector<8x128xf32>
    %cst_18 = arith.constant 1.000000e+00 : f32
    %44 = vector.broadcast %cst_18 : f32 to vector<8x128xf32>
    %45 = arith.cmpf oeq, %14, %44 : vector<8x128xf32>
    %cst_19 = arith.constant 2.000000e+00 : f32
    %46 = vector.broadcast %cst_19 : f32 to vector<8x128xf32>
    %47 = arith.cmpf oeq, %14, %46 : vector<8x128xf32>
    %cst_20 = arith.constant 3.000000e+00 : f32
    %48 = vector.broadcast %cst_20 : f32 to vector<8x128xf32>
    %49 = arith.cmpf oeq, %14, %48 : vector<8x128xf32>
    %50 = arith.select %49, %23, %41 : vector<8x128xi1>, vector<8x128xf32>
    %51 = arith.select %47, %28, %50 : vector<8x128xi1>, vector<8x128xf32>
    %52 = arith.select %45, %38, %51 : vector<8x128xi1>, vector<8x128xf32>
    %53 = arith.select %43, %40, %52 : vector<8x128xi1>, vector<8x128xf32>
    %cst_21 = arith.constant 1.000000e+00 : f32
    %54 = vector.broadcast %cst_21 : f32 to vector<8x128xf32>
    %55 = arith.cmpf oeq, %14, %54 : vector<8x128xf32>
    %cst_22 = arith.constant 2.000000e+00 : f32
    %56 = vector.broadcast %cst_22 : f32 to vector<8x128xf32>
    %57 = arith.cmpf oeq, %14, %56 : vector<8x128xf32>
    %cst_23 = arith.constant 3.000000e+00 : f32
    %58 = vector.broadcast %cst_23 : f32 to vector<8x128xf32>
    %59 = arith.cmpf oeq, %14, %58 : vector<8x128xf32>
    %cst_24 = arith.constant 4.000000e+00 : f32
    %60 = vector.broadcast %cst_24 : f32 to vector<8x128xf32>
    %61 = arith.cmpf oeq, %14, %60 : vector<8x128xf32>
    %62 = arith.select %61, %23, %41 : vector<8x128xi1>, vector<8x128xf32>
    %63 = arith.select %59, %28, %62 : vector<8x128xi1>, vector<8x128xf32>
    %64 = arith.select %57, %38, %63 : vector<8x128xi1>, vector<8x128xf32>
    %65 = arith.select %55, %40, %64 : vector<8x128xi1>, vector<8x128xf32>
    %cst_25 = arith.constant 2.000000e+00 : f32
    %66 = vector.broadcast %cst_25 : f32 to vector<8x128xf32>
    %67 = arith.cmpf oeq, %14, %66 : vector<8x128xf32>
    %cst_26 = arith.constant 3.000000e+00 : f32
    %68 = vector.broadcast %cst_26 : f32 to vector<8x128xf32>
    %69 = arith.cmpf oeq, %14, %68 : vector<8x128xf32>
    %cst_27 = arith.constant 4.000000e+00 : f32
    %70 = vector.broadcast %cst_27 : f32 to vector<8x128xf32>
    %71 = arith.cmpf oeq, %14, %70 : vector<8x128xf32>
    %cst_28 = arith.constant 5.000000e+00 : f32
    %72 = vector.broadcast %cst_28 : f32 to vector<8x128xf32>
    %73 = arith.cmpf oeq, %14, %72 : vector<8x128xf32>
    %74 = arith.select %73, %23, %41 : vector<8x128xi1>, vector<8x128xf32>
    %75 = arith.select %71, %28, %74 : vector<8x128xi1>, vector<8x128xf32>
    %76 = arith.select %69, %38, %75 : vector<8x128xi1>, vector<8x128xf32>
    %77 = arith.select %67, %40, %76 : vector<8x128xi1>, vector<8x128xf32>
    %cst_29 = arith.constant 3.000000e+00 : f32
    %78 = vector.broadcast %cst_29 : f32 to vector<8x128xf32>
    %79 = arith.cmpf oeq, %14, %78 : vector<8x128xf32>
    %cst_30 = arith.constant 4.000000e+00 : f32
    %80 = vector.broadcast %cst_30 : f32 to vector<8x128xf32>
    %81 = arith.cmpf oeq, %14, %80 : vector<8x128xf32>
    %cst_31 = arith.constant 5.000000e+00 : f32
    %82 = vector.broadcast %cst_31 : f32 to vector<8x128xf32>
    %83 = arith.cmpf oeq, %14, %82 : vector<8x128xf32>
    %cst_32 = arith.constant 6.000000e+00 : f32
    %84 = vector.broadcast %cst_32 : f32 to vector<8x128xf32>
    %85 = arith.cmpf oeq, %14, %84 : vector<8x128xf32>
    %86 = arith.select %85, %23, %41 : vector<8x128xi1>, vector<8x128xf32>
    %87 = arith.select %83, %28, %86 : vector<8x128xi1>, vector<8x128xf32>
    %88 = arith.select %81, %38, %87 : vector<8x128xi1>, vector<8x128xf32>
    %89 = arith.select %79, %40, %88 : vector<8x128xi1>, vector<8x128xf32>
    %cst_33 = arith.constant 4.000000e+00 : f32
    %90 = vector.broadcast %cst_33 : f32 to vector<8x128xf32>
    %91 = arith.cmpf oeq, %14, %90 : vector<8x128xf32>
    %cst_34 = arith.constant 5.000000e+00 : f32
    %92 = vector.broadcast %cst_34 : f32 to vector<8x128xf32>
    %93 = arith.cmpf oeq, %14, %92 : vector<8x128xf32>
    %cst_35 = arith.constant 6.000000e+00 : f32
    %94 = vector.broadcast %cst_35 : f32 to vector<8x128xf32>
    %95 = arith.cmpf oeq, %14, %94 : vector<8x128xf32>
    %cst_36 = arith.constant 7.000000e+00 : f32
    %96 = vector.broadcast %cst_36 : f32 to vector<8x128xf32>
    %97 = arith.cmpf oeq, %14, %96 : vector<8x128xf32>
    %98 = arith.select %97, %23, %41 : vector<8x128xi1>, vector<8x128xf32>
    %99 = arith.select %95, %28, %98 : vector<8x128xi1>, vector<8x128xf32>
    %100 = arith.select %93, %38, %99 : vector<8x128xi1>, vector<8x128xf32>
    %101 = arith.select %91, %40, %100 : vector<8x128xi1>, vector<8x128xf32>
    %cst_37 = arith.constant 5.000000e+00 : f32
    %102 = vector.broadcast %cst_37 : f32 to vector<8x128xf32>
    %103 = arith.cmpf oeq, %14, %102 : vector<8x128xf32>
    %cst_38 = arith.constant 6.000000e+00 : f32
    %104 = vector.broadcast %cst_38 : f32 to vector<8x128xf32>
    %105 = arith.cmpf oeq, %14, %104 : vector<8x128xf32>
    %cst_39 = arith.constant 7.000000e+00 : f32
    %106 = vector.broadcast %cst_39 : f32 to vector<8x128xf32>
    %107 = arith.cmpf oeq, %14, %106 : vector<8x128xf32>
    %cst_40 = arith.constant 8.000000e+00 : f32
    %108 = vector.broadcast %cst_40 : f32 to vector<8x128xf32>
    %109 = arith.cmpf oeq, %14, %108 : vector<8x128xf32>
    %110 = arith.select %109, %23, %41 : vector<8x128xi1>, vector<8x128xf32>
    %111 = arith.select %107, %28, %110 : vector<8x128xi1>, vector<8x128xf32>
    %112 = arith.select %105, %38, %111 : vector<8x128xi1>, vector<8x128xf32>
    %113 = arith.select %103, %40, %112 : vector<8x128xi1>, vector<8x128xf32>
    %cst_41 = arith.constant 6.000000e+00 : f32
    %114 = vector.broadcast %cst_41 : f32 to vector<8x128xf32>
    %115 = arith.cmpf oeq, %14, %114 : vector<8x128xf32>
    %cst_42 = arith.constant 7.000000e+00 : f32
    %116 = vector.broadcast %cst_42 : f32 to vector<8x128xf32>
    %117 = arith.cmpf oeq, %14, %116 : vector<8x128xf32>
    %cst_43 = arith.constant 8.000000e+00 : f32
    %118 = vector.broadcast %cst_43 : f32 to vector<8x128xf32>
    %119 = arith.cmpf oeq, %14, %118 : vector<8x128xf32>
    %cst_44 = arith.constant 9.000000e+00 : f32
    %120 = vector.broadcast %cst_44 : f32 to vector<8x128xf32>
    %121 = arith.cmpf oeq, %14, %120 : vector<8x128xf32>
    %122 = arith.select %121, %23, %41 : vector<8x128xi1>, vector<8x128xf32>
    %123 = arith.select %119, %28, %122 : vector<8x128xi1>, vector<8x128xf32>
    %124 = arith.select %117, %38, %123 : vector<8x128xi1>, vector<8x128xf32>
    %125 = arith.select %115, %40, %124 : vector<8x128xi1>, vector<8x128xf32>
    %cst_45 = arith.constant 7.000000e+00 : f32
    %126 = vector.broadcast %cst_45 : f32 to vector<8x128xf32>
    %127 = arith.cmpf oeq, %14, %126 : vector<8x128xf32>
    %cst_46 = arith.constant 8.000000e+00 : f32
    %128 = vector.broadcast %cst_46 : f32 to vector<8x128xf32>
    %129 = arith.cmpf oeq, %14, %128 : vector<8x128xf32>
    %cst_47 = arith.constant 9.000000e+00 : f32
    %130 = vector.broadcast %cst_47 : f32 to vector<8x128xf32>
    %131 = arith.cmpf oeq, %14, %130 : vector<8x128xf32>
    %cst_48 = arith.constant 1.000000e+01 : f32
    %132 = vector.broadcast %cst_48 : f32 to vector<8x128xf32>
    %133 = arith.cmpf oeq, %14, %132 : vector<8x128xf32>
    %134 = arith.select %133, %23, %41 : vector<8x128xi1>, vector<8x128xf32>
    %135 = arith.select %131, %28, %134 : vector<8x128xi1>, vector<8x128xf32>
    %136 = arith.select %129, %38, %135 : vector<8x128xi1>, vector<8x128xf32>
    %137 = arith.select %127, %40, %136 : vector<8x128xi1>, vector<8x128xf32>
    %138 = tpu.concatenate %9, %53, %65, %77, %89, %101, %113, %125, %137 in 1 : vector<8x128xf32>, vector<8x128xf32>, vector<8x128xf32>, vector<8x128xf32>, vector<8x128xf32>, vector<8x128xf32>, vector<8x128xf32>, vector<8x128xf32>, vector<8x128xf32> -> vector<8x1152xf32>
    %139 = arith.truncf %138 : vector<8x1152xf32> to vector<8x1152xbf16>
    %cst_49 = arith.constant dense<0.000000e+00> : vector<8x128xf32>
    %140 = tpu.matmul %139, %1, %cst_49 {dimension_numbers = #tpu.dot_dimension_numbers<[1], [0], [0], [1], [0, 0, 1, 1], [], []>} : vector<8x1152xbf16>, vector<1152x128xbf16>, vector<8x128xf32> -> vector<8x128xf32>
    %c0_50 = arith.constant 0 : index
    %c0_51 = arith.constant 0 : index
    %141 = vector.load %arg3[%c0_50, %c0_51] : memref<1152x256xbf16, #tpu.memory_space<vmem>>, vector<1152x256xbf16>
    %cst_52 = arith.constant 0.000000e+00 : f32
    %142 = vector.broadcast %cst_52 : f32 to vector<8x128xf32>
    %143 = arith.subf %142, %140 : vector<8x128xf32>
    %144 = math.exp %143 : vector<8x128xf32>
    %cst_53 = arith.constant 1.000000e+00 : f32
    %145 = vector.broadcast %cst_53 : f32 to vector<8x128xf32>
    %146 = arith.addf %145, %144 : vector<8x128xf32>
    %cst_54 = arith.constant 1.000000e+00 : f32
    %147 = vector.broadcast %cst_54 : f32 to vector<8x128xf32>
    %148 = arith.divf %147, %146 : vector<8x128xf32>
    %149 = arith.mulf %140, %148 : vector<8x128xf32>
    %cst_55 = arith.constant -2.200000e+00 : f32
    %150 = vector.broadcast %cst_55 : f32 to vector<8x128xf32>
    %151 = arith.subf %140, %150 : vector<8x128xf32>
    %cst_56 = arith.constant 2.500000e+00 : f32
    %152 = vector.broadcast %cst_56 : f32 to vector<8x128xf32>
    %153 = arith.mulf %151, %152 : vector<8x128xf32>
    %154 = math.floor %153 : vector<8x128xf32>
    %155 = arith.subf %153, %154 : vector<8x128xf32>
    %156 = arith.mulf %155, %155 : vector<8x128xf32>
    %157 = arith.mulf %156, %155 : vector<8x128xf32>
    %cst_57 = arith.constant 1.000000e+00 : f32
    %158 = vector.broadcast %cst_57 : f32 to vector<8x128xf32>
    %159 = arith.subf %158, %155 : vector<8x128xf32>
    %160 = arith.mulf %159, %159 : vector<8x128xf32>
    %161 = arith.mulf %160, %159 : vector<8x128xf32>
    %cst_58 = arith.constant 0.166666672 : f32
    %162 = vector.broadcast %cst_58 : f32 to vector<8x128xf32>
    %163 = arith.mulf %161, %162 : vector<8x128xf32>
    %cst_59 = arith.constant 5.000000e-01 : f32
    %164 = vector.broadcast %cst_59 : f32 to vector<8x128xf32>
    %165 = arith.mulf %164, %157 : vector<8x128xf32>
    %166 = arith.subf %165, %156 : vector<8x128xf32>
    %cst_60 = arith.constant 0.666666686 : f32
    %167 = vector.broadcast %cst_60 : f32 to vector<8x128xf32>
    %168 = arith.addf %166, %167 : vector<8x128xf32>
    %cst_61 = arith.constant -5.000000e-01 : f32
    %169 = vector.broadcast %cst_61 : f32 to vector<8x128xf32>
    %170 = arith.mulf %169, %157 : vector<8x128xf32>
    %cst_62 = arith.constant 5.000000e-01 : f32
    %171 = vector.broadcast %cst_62 : f32 to vector<8x128xf32>
    %172 = arith.mulf %171, %156 : vector<8x128xf32>
    %173 = arith.addf %170, %172 : vector<8x128xf32>
    %cst_63 = arith.constant 5.000000e-01 : f32
    %174 = vector.broadcast %cst_63 : f32 to vector<8x128xf32>
    %175 = arith.mulf %174, %155 : vector<8x128xf32>
    %176 = arith.addf %173, %175 : vector<8x128xf32>
    %cst_64 = arith.constant 0.166666672 : f32
    %177 = vector.broadcast %cst_64 : f32 to vector<8x128xf32>
    %178 = arith.addf %176, %177 : vector<8x128xf32>
    %cst_65 = arith.constant 0.166666672 : f32
    %179 = vector.broadcast %cst_65 : f32 to vector<8x128xf32>
    %180 = arith.mulf %157, %179 : vector<8x128xf32>
    %cst_66 = arith.constant 0.000000e+00 : f32
    %181 = vector.broadcast %cst_66 : f32 to vector<8x128xf32>
    %cst_67 = arith.constant 0.000000e+00 : f32
    %182 = vector.broadcast %cst_67 : f32 to vector<8x128xf32>
    %183 = arith.cmpf oeq, %154, %182 : vector<8x128xf32>
    %cst_68 = arith.constant 1.000000e+00 : f32
    %184 = vector.broadcast %cst_68 : f32 to vector<8x128xf32>
    %185 = arith.cmpf oeq, %154, %184 : vector<8x128xf32>
    %cst_69 = arith.constant 2.000000e+00 : f32
    %186 = vector.broadcast %cst_69 : f32 to vector<8x128xf32>
    %187 = arith.cmpf oeq, %154, %186 : vector<8x128xf32>
    %cst_70 = arith.constant 3.000000e+00 : f32
    %188 = vector.broadcast %cst_70 : f32 to vector<8x128xf32>
    %189 = arith.cmpf oeq, %154, %188 : vector<8x128xf32>
    %190 = arith.select %189, %163, %181 : vector<8x128xi1>, vector<8x128xf32>
    %191 = arith.select %187, %168, %190 : vector<8x128xi1>, vector<8x128xf32>
    %192 = arith.select %185, %178, %191 : vector<8x128xi1>, vector<8x128xf32>
    %193 = arith.select %183, %180, %192 : vector<8x128xi1>, vector<8x128xf32>
    %cst_71 = arith.constant 1.000000e+00 : f32
    %194 = vector.broadcast %cst_71 : f32 to vector<8x128xf32>
    %195 = arith.cmpf oeq, %154, %194 : vector<8x128xf32>
    %cst_72 = arith.constant 2.000000e+00 : f32
    %196 = vector.broadcast %cst_72 : f32 to vector<8x128xf32>
    %197 = arith.cmpf oeq, %154, %196 : vector<8x128xf32>
    %cst_73 = arith.constant 3.000000e+00 : f32
    %198 = vector.broadcast %cst_73 : f32 to vector<8x128xf32>
    %199 = arith.cmpf oeq, %154, %198 : vector<8x128xf32>
    %cst_74 = arith.constant 4.000000e+00 : f32
    %200 = vector.broadcast %cst_74 : f32 to vector<8x128xf32>
    %201 = arith.cmpf oeq, %154, %200 : vector<8x128xf32>
    %202 = arith.select %201, %163, %181 : vector<8x128xi1>, vector<8x128xf32>
    %203 = arith.select %199, %168, %202 : vector<8x128xi1>, vector<8x128xf32>
    %204 = arith.select %197, %178, %203 : vector<8x128xi1>, vector<8x128xf32>
    %205 = arith.select %195, %180, %204 : vector<8x128xi1>, vector<8x128xf32>
    %cst_75 = arith.constant 2.000000e+00 : f32
    %206 = vector.broadcast %cst_75 : f32 to vector<8x128xf32>
    %207 = arith.cmpf oeq, %154, %206 : vector<8x128xf32>
    %cst_76 = arith.constant 3.000000e+00 : f32
    %208 = vector.broadcast %cst_76 : f32 to vector<8x128xf32>
    %209 = arith.cmpf oeq, %154, %208 : vector<8x128xf32>
    %cst_77 = arith.constant 4.000000e+00 : f32
    %210 = vector.broadcast %cst_77 : f32 to vector<8x128xf32>
    %211 = arith.cmpf oeq, %154, %210 : vector<8x128xf32>
    %cst_78 = arith.constant 5.000000e+00 : f32
    %212 = vector.broadcast %cst_78 : f32 to vector<8x128xf32>
    %213 = arith.cmpf oeq, %154, %212 : vector<8x128xf32>
    %214 = arith.select %213, %163, %181 : vector<8x128xi1>, vector<8x128xf32>
    %215 = arith.select %211, %168, %214 : vector<8x128xi1>, vector<8x128xf32>
    %216 = arith.select %209, %178, %215 : vector<8x128xi1>, vector<8x128xf32>
    %217 = arith.select %207, %180, %216 : vector<8x128xi1>, vector<8x128xf32>
    %cst_79 = arith.constant 3.000000e+00 : f32
    %218 = vector.broadcast %cst_79 : f32 to vector<8x128xf32>
    %219 = arith.cmpf oeq, %154, %218 : vector<8x128xf32>
    %cst_80 = arith.constant 4.000000e+00 : f32
    %220 = vector.broadcast %cst_80 : f32 to vector<8x128xf32>
    %221 = arith.cmpf oeq, %154, %220 : vector<8x128xf32>
    %cst_81 = arith.constant 5.000000e+00 : f32
    %222 = vector.broadcast %cst_81 : f32 to vector<8x128xf32>
    %223 = arith.cmpf oeq, %154, %222 : vector<8x128xf32>
    %cst_82 = arith.constant 6.000000e+00 : f32
    %224 = vector.broadcast %cst_82 : f32 to vector<8x128xf32>
    %225 = arith.cmpf oeq, %154, %224 : vector<8x128xf32>
    %226 = arith.select %225, %163, %181 : vector<8x128xi1>, vector<8x128xf32>
    %227 = arith.select %223, %168, %226 : vector<8x128xi1>, vector<8x128xf32>
    %228 = arith.select %221, %178, %227 : vector<8x128xi1>, vector<8x128xf32>
    %229 = arith.select %219, %180, %228 : vector<8x128xi1>, vector<8x128xf32>
    %cst_83 = arith.constant 4.000000e+00 : f32
    %230 = vector.broadcast %cst_83 : f32 to vector<8x128xf32>
    %231 = arith.cmpf oeq, %154, %230 : vector<8x128xf32>
    %cst_84 = arith.constant 5.000000e+00 : f32
    %232 = vector.broadcast %cst_84 : f32 to vector<8x128xf32>
    %233 = arith.cmpf oeq, %154, %232 : vector<8x128xf32>
    %cst_85 = arith.constant 6.000000e+00 : f32
    %234 = vector.broadcast %cst_85 : f32 to vector<8x128xf32>
    %235 = arith.cmpf oeq, %154, %234 : vector<8x128xf32>
    %cst_86 = arith.constant 7.000000e+00 : f32
    %236 = vector.broadcast %cst_86 : f32 to vector<8x128xf32>
    %237 = arith.cmpf oeq, %154, %236 : vector<8x128xf32>
    %238 = arith.select %237, %163, %181 : vector<8x128xi1>, vector<8x128xf32>
    %239 = arith.select %235, %168, %238 : vector<8x128xi1>, vector<8x128xf32>
    %240 = arith.select %233, %178, %239 : vector<8x128xi1>, vector<8x128xf32>
    %241 = arith.select %231, %180, %240 : vector<8x128xi1>, vector<8x128xf32>
    %cst_87 = arith.constant 5.000000e+00 : f32
    %242 = vector.broadcast %cst_87 : f32 to vector<8x128xf32>
    %243 = arith.cmpf oeq, %154, %242 : vector<8x128xf32>
    %cst_88 = arith.constant 6.000000e+00 : f32
    %244 = vector.broadcast %cst_88 : f32 to vector<8x128xf32>
    %245 = arith.cmpf oeq, %154, %244 : vector<8x128xf32>
    %cst_89 = arith.constant 7.000000e+00 : f32
    %246 = vector.broadcast %cst_89 : f32 to vector<8x128xf32>
    %247 = arith.cmpf oeq, %154, %246 : vector<8x128xf32>
    %cst_90 = arith.constant 8.000000e+00 : f32
    %248 = vector.broadcast %cst_90 : f32 to vector<8x128xf32>
    %249 = arith.cmpf oeq, %154, %248 : vector<8x128xf32>
    %250 = arith.select %249, %163, %181 : vector<8x128xi1>, vector<8x128xf32>
    %251 = arith.select %247, %168, %250 : vector<8x128xi1>, vector<8x128xf32>
    %252 = arith.select %245, %178, %251 : vector<8x128xi1>, vector<8x128xf32>
    %253 = arith.select %243, %180, %252 : vector<8x128xi1>, vector<8x128xf32>
    %cst_91 = arith.constant 6.000000e+00 : f32
    %254 = vector.broadcast %cst_91 : f32 to vector<8x128xf32>
    %255 = arith.cmpf oeq, %154, %254 : vector<8x128xf32>
    %cst_92 = arith.constant 7.000000e+00 : f32
    %256 = vector.broadcast %cst_92 : f32 to vector<8x128xf32>
    %257 = arith.cmpf oeq, %154, %256 : vector<8x128xf32>
    %cst_93 = arith.constant 8.000000e+00 : f32
    %258 = vector.broadcast %cst_93 : f32 to vector<8x128xf32>
    %259 = arith.cmpf oeq, %154, %258 : vector<8x128xf32>
    %cst_94 = arith.constant 9.000000e+00 : f32
    %260 = vector.broadcast %cst_94 : f32 to vector<8x128xf32>
    %261 = arith.cmpf oeq, %154, %260 : vector<8x128xf32>
    %262 = arith.select %261, %163, %181 : vector<8x128xi1>, vector<8x128xf32>
    %263 = arith.select %259, %168, %262 : vector<8x128xi1>, vector<8x128xf32>
    %264 = arith.select %257, %178, %263 : vector<8x128xi1>, vector<8x128xf32>
    %265 = arith.select %255, %180, %264 : vector<8x128xi1>, vector<8x128xf32>
    %cst_95 = arith.constant 7.000000e+00 : f32
    %266 = vector.broadcast %cst_95 : f32 to vector<8x128xf32>
    %267 = arith.cmpf oeq, %154, %266 : vector<8x128xf32>
    %cst_96 = arith.constant 8.000000e+00 : f32
    %268 = vector.broadcast %cst_96 : f32 to vector<8x128xf32>
    %269 = arith.cmpf oeq, %154, %268 : vector<8x128xf32>
    %cst_97 = arith.constant 9.000000e+00 : f32
    %270 = vector.broadcast %cst_97 : f32 to vector<8x128xf32>
    %271 = arith.cmpf oeq, %154, %270 : vector<8x128xf32>
    %cst_98 = arith.constant 1.000000e+01 : f32
    %272 = vector.broadcast %cst_98 : f32 to vector<8x128xf32>
    %273 = arith.cmpf oeq, %154, %272 : vector<8x128xf32>
    %274 = arith.select %273, %163, %181 : vector<8x128xi1>, vector<8x128xf32>
    %275 = arith.select %271, %168, %274 : vector<8x128xi1>, vector<8x128xf32>
    %276 = arith.select %269, %178, %275 : vector<8x128xi1>, vector<8x128xf32>
    %277 = arith.select %267, %180, %276 : vector<8x128xi1>, vector<8x128xf32>
    %278 = tpu.concatenate %149, %193, %205, %217, %229, %241, %253, %265, %277 in 1 : vector<8x128xf32>, vector<8x128xf32>, vector<8x128xf32>, vector<8x128xf32>, vector<8x128xf32>, vector<8x128xf32>, vector<8x128xf32>, vector<8x128xf32>, vector<8x128xf32> -> vector<8x1152xf32>
    %279 = arith.truncf %278 : vector<8x1152xf32> to vector<8x1152xbf16>
    %cst_99 = arith.constant dense<0.000000e+00> : vector<8x256xf32>
    %280 = tpu.matmul %279, %141, %cst_99 {dimension_numbers = #tpu.dot_dimension_numbers<[1], [0], [0], [1], [0, 0, 1, 1], [], []>} : vector<8x1152xbf16>, vector<1152x256xbf16>, vector<8x256xf32> -> vector<8x256xf32>
    %c0_100 = arith.constant 0 : index
    %c0_101 = arith.constant 0 : index
    %281 = vector.load %arg6[%c0_100, %c0_101] : memref<1x256xf32, #tpu.memory_space<vmem>>, vector<1x256xf32>
    %c0_102 = arith.constant 0 : index
    %c0_103 = arith.constant 0 : index
    %282 = vector.load %arg7[%c0_102, %c0_103] : memref<1x256xf32, #tpu.memory_space<vmem>>, vector<1x256xf32>
    %cst_104 = arith.constant dense<0.000000e+00> : vector<8xf32>
    %283 = vector.multi_reduction <add>, %280, %cst_104 [1] : vector<8x256xf32> to vector<8xf32>
    %284 = vector.shape_cast %283 : vector<8xf32> to vector<8x1xf32>
    %cst_105 = arith.constant 2.560000e+02 : f32
    %285 = vector.broadcast %cst_105 : f32 to vector<8x1xf32>
    %286 = arith.divf %284, %285 : vector<8x1xf32>
    %287 = vector.broadcast %286 : vector<8x1xf32> to vector<8x256xf32>
    %288 = arith.subf %280, %287 : vector<8x256xf32>
    %289 = arith.mulf %288, %288 : vector<8x256xf32>
    %cst_106 = arith.constant dense<0.000000e+00> : vector<8xf32>
    %290 = vector.multi_reduction <add>, %289, %cst_106 [1] : vector<8x256xf32> to vector<8xf32>
    %291 = vector.shape_cast %290 : vector<8xf32> to vector<8x1xf32>
    %cst_107 = arith.constant 2.560000e+02 : f32
    %292 = vector.broadcast %cst_107 : f32 to vector<8x1xf32>
    %293 = arith.divf %291, %292 : vector<8x1xf32>
    %294 = vector.broadcast %286 : vector<8x1xf32> to vector<8x256xf32>
    %295 = arith.subf %280, %294 : vector<8x256xf32>
    %cst_108 = arith.constant 9.99999974E-6 : f32
    %296 = vector.broadcast %cst_108 : f32 to vector<8x1xf32>
    %297 = arith.addf %293, %296 : vector<8x1xf32>
    %298 = math.rsqrt %297 : vector<8x1xf32>
    %299 = vector.broadcast %298 : vector<8x1xf32> to vector<8x256xf32>
    %300 = arith.mulf %295, %299 : vector<8x256xf32>
    %301 = vector.broadcast %281 : vector<1x256xf32> to vector<8x256xf32>
    %302 = arith.mulf %300, %301 : vector<8x256xf32>
    %303 = vector.broadcast %282 : vector<1x256xf32> to vector<8x256xf32>
    %304 = arith.addf %302, %303 : vector<8x256xf32>
    %c0_109 = arith.constant 0 : index
    %c0_110 = arith.constant 0 : index
    %305 = vector.load %arg4[%c0_109, %c0_110] : memref<2304x128xbf16, #tpu.memory_space<vmem>>, vector<2304x128xbf16>
    %cst_111 = arith.constant 0.000000e+00 : f32
    %306 = vector.broadcast %cst_111 : f32 to vector<8x256xf32>
    %307 = arith.subf %306, %304 : vector<8x256xf32>
    %308 = math.exp %307 : vector<8x256xf32>
    %cst_112 = arith.constant 1.000000e+00 : f32
    %309 = vector.broadcast %cst_112 : f32 to vector<8x256xf32>
    %310 = arith.addf %309, %308 : vector<8x256xf32>
    %cst_113 = arith.constant 1.000000e+00 : f32
    %311 = vector.broadcast %cst_113 : f32 to vector<8x256xf32>
    %312 = arith.divf %311, %310 : vector<8x256xf32>
    %313 = arith.mulf %304, %312 : vector<8x256xf32>
    %cst_114 = arith.constant -2.200000e+00 : f32
    %314 = vector.broadcast %cst_114 : f32 to vector<8x256xf32>
    %315 = arith.subf %304, %314 : vector<8x256xf32>
    %cst_115 = arith.constant 2.500000e+00 : f32
    %316 = vector.broadcast %cst_115 : f32 to vector<8x256xf32>
    %317 = arith.mulf %315, %316 : vector<8x256xf32>
    %318 = math.floor %317 : vector<8x256xf32>
    %319 = arith.subf %317, %318 : vector<8x256xf32>
    %320 = arith.mulf %319, %319 : vector<8x256xf32>
    %321 = arith.mulf %320, %319 : vector<8x256xf32>
    %cst_116 = arith.constant 1.000000e+00 : f32
    %322 = vector.broadcast %cst_116 : f32 to vector<8x256xf32>
    %323 = arith.subf %322, %319 : vector<8x256xf32>
    %324 = arith.mulf %323, %323 : vector<8x256xf32>
    %325 = arith.mulf %324, %323 : vector<8x256xf32>
    %cst_117 = arith.constant 0.166666672 : f32
    %326 = vector.broadcast %cst_117 : f32 to vector<8x256xf32>
    %327 = arith.mulf %325, %326 : vector<8x256xf32>
    %cst_118 = arith.constant 5.000000e-01 : f32
    %328 = vector.broadcast %cst_118 : f32 to vector<8x256xf32>
    %329 = arith.mulf %328, %321 : vector<8x256xf32>
    %330 = arith.subf %329, %320 : vector<8x256xf32>
    %cst_119 = arith.constant 0.666666686 : f32
    %331 = vector.broadcast %cst_119 : f32 to vector<8x256xf32>
    %332 = arith.addf %330, %331 : vector<8x256xf32>
    %cst_120 = arith.constant -5.000000e-01 : f32
    %333 = vector.broadcast %cst_120 : f32 to vector<8x256xf32>
    %334 = arith.mulf %333, %321 : vector<8x256xf32>
    %cst_121 = arith.constant 5.000000e-01 : f32
    %335 = vector.broadcast %cst_121 : f32 to vector<8x256xf32>
    %336 = arith.mulf %335, %320 : vector<8x256xf32>
    %337 = arith.addf %334, %336 : vector<8x256xf32>
    %cst_122 = arith.constant 5.000000e-01 : f32
    %338 = vector.broadcast %cst_122 : f32 to vector<8x256xf32>
    %339 = arith.mulf %338, %319 : vector<8x256xf32>
    %340 = arith.addf %337, %339 : vector<8x256xf32>
    %cst_123 = arith.constant 0.166666672 : f32
    %341 = vector.broadcast %cst_123 : f32 to vector<8x256xf32>
    %342 = arith.addf %340, %341 : vector<8x256xf32>
    %cst_124 = arith.constant 0.166666672 : f32
    %343 = vector.broadcast %cst_124 : f32 to vector<8x256xf32>
    %344 = arith.mulf %321, %343 : vector<8x256xf32>
    %cst_125 = arith.constant 0.000000e+00 : f32
    %345 = vector.broadcast %cst_125 : f32 to vector<8x256xf32>
    %cst_126 = arith.constant 0.000000e+00 : f32
    %346 = vector.broadcast %cst_126 : f32 to vector<8x256xf32>
    %347 = arith.cmpf oeq, %318, %346 : vector<8x256xf32>
    %cst_127 = arith.constant 1.000000e+00 : f32
    %348 = vector.broadcast %cst_127 : f32 to vector<8x256xf32>
    %349 = arith.cmpf oeq, %318, %348 : vector<8x256xf32>
    %cst_128 = arith.constant 2.000000e+00 : f32
    %350 = vector.broadcast %cst_128 : f32 to vector<8x256xf32>
    %351 = arith.cmpf oeq, %318, %350 : vector<8x256xf32>
    %cst_129 = arith.constant 3.000000e+00 : f32
    %352 = vector.broadcast %cst_129 : f32 to vector<8x256xf32>
    %353 = arith.cmpf oeq, %318, %352 : vector<8x256xf32>
    %354 = arith.select %353, %327, %345 : vector<8x256xi1>, vector<8x256xf32>
    %355 = arith.select %351, %332, %354 : vector<8x256xi1>, vector<8x256xf32>
    %356 = arith.select %349, %342, %355 : vector<8x256xi1>, vector<8x256xf32>
    %357 = arith.select %347, %344, %356 : vector<8x256xi1>, vector<8x256xf32>
    %cst_130 = arith.constant 1.000000e+00 : f32
    %358 = vector.broadcast %cst_130 : f32 to vector<8x256xf32>
    %359 = arith.cmpf oeq, %318, %358 : vector<8x256xf32>
    %cst_131 = arith.constant 2.000000e+00 : f32
    %360 = vector.broadcast %cst_131 : f32 to vector<8x256xf32>
    %361 = arith.cmpf oeq, %318, %360 : vector<8x256xf32>
    %cst_132 = arith.constant 3.000000e+00 : f32
    %362 = vector.broadcast %cst_132 : f32 to vector<8x256xf32>
    %363 = arith.cmpf oeq, %318, %362 : vector<8x256xf32>
    %cst_133 = arith.constant 4.000000e+00 : f32
    %364 = vector.broadcast %cst_133 : f32 to vector<8x256xf32>
    %365 = arith.cmpf oeq, %318, %364 : vector<8x256xf32>
    %366 = arith.select %365, %327, %345 : vector<8x256xi1>, vector<8x256xf32>
    %367 = arith.select %363, %332, %366 : vector<8x256xi1>, vector<8x256xf32>
    %368 = arith.select %361, %342, %367 : vector<8x256xi1>, vector<8x256xf32>
    %369 = arith.select %359, %344, %368 : vector<8x256xi1>, vector<8x256xf32>
    %cst_134 = arith.constant 2.000000e+00 : f32
    %370 = vector.broadcast %cst_134 : f32 to vector<8x256xf32>
    %371 = arith.cmpf oeq, %318, %370 : vector<8x256xf32>
    %cst_135 = arith.constant 3.000000e+00 : f32
    %372 = vector.broadcast %cst_135 : f32 to vector<8x256xf32>
    %373 = arith.cmpf oeq, %318, %372 : vector<8x256xf32>
    %cst_136 = arith.constant 4.000000e+00 : f32
    %374 = vector.broadcast %cst_136 : f32 to vector<8x256xf32>
    %375 = arith.cmpf oeq, %318, %374 : vector<8x256xf32>
    %cst_137 = arith.constant 5.000000e+00 : f32
    %376 = vector.broadcast %cst_137 : f32 to vector<8x256xf32>
    %377 = arith.cmpf oeq, %318, %376 : vector<8x256xf32>
    %378 = arith.select %377, %327, %345 : vector<8x256xi1>, vector<8x256xf32>
    %379 = arith.select %375, %332, %378 : vector<8x256xi1>, vector<8x256xf32>
    %380 = arith.select %373, %342, %379 : vector<8x256xi1>, vector<8x256xf32>
    %381 = arith.select %371, %344, %380 : vector<8x256xi1>, vector<8x256xf32>
    %cst_138 = arith.constant 3.000000e+00 : f32
    %382 = vector.broadcast %cst_138 : f32 to vector<8x256xf32>
    %383 = arith.cmpf oeq, %318, %382 : vector<8x256xf32>
    %cst_139 = arith.constant 4.000000e+00 : f32
    %384 = vector.broadcast %cst_139 : f32 to vector<8x256xf32>
    %385 = arith.cmpf oeq, %318, %384 : vector<8x256xf32>
    %cst_140 = arith.constant 5.000000e+00 : f32
    %386 = vector.broadcast %cst_140 : f32 to vector<8x256xf32>
    %387 = arith.cmpf oeq, %318, %386 : vector<8x256xf32>
    %cst_141 = arith.constant 6.000000e+00 : f32
    %388 = vector.broadcast %cst_141 : f32 to vector<8x256xf32>
    %389 = arith.cmpf oeq, %318, %388 : vector<8x256xf32>
    %390 = arith.select %389, %327, %345 : vector<8x256xi1>, vector<8x256xf32>
    %391 = arith.select %387, %332, %390 : vector<8x256xi1>, vector<8x256xf32>
    %392 = arith.select %385, %342, %391 : vector<8x256xi1>, vector<8x256xf32>
    %393 = arith.select %383, %344, %392 : vector<8x256xi1>, vector<8x256xf32>
    %cst_142 = arith.constant 4.000000e+00 : f32
    %394 = vector.broadcast %cst_142 : f32 to vector<8x256xf32>
    %395 = arith.cmpf oeq, %318, %394 : vector<8x256xf32>
    %cst_143 = arith.constant 5.000000e+00 : f32
    %396 = vector.broadcast %cst_143 : f32 to vector<8x256xf32>
    %397 = arith.cmpf oeq, %318, %396 : vector<8x256xf32>
    %cst_144 = arith.constant 6.000000e+00 : f32
    %398 = vector.broadcast %cst_144 : f32 to vector<8x256xf32>
    %399 = arith.cmpf oeq, %318, %398 : vector<8x256xf32>
    %cst_145 = arith.constant 7.000000e+00 : f32
    %400 = vector.broadcast %cst_145 : f32 to vector<8x256xf32>
    %401 = arith.cmpf oeq, %318, %400 : vector<8x256xf32>
    %402 = arith.select %401, %327, %345 : vector<8x256xi1>, vector<8x256xf32>
    %403 = arith.select %399, %332, %402 : vector<8x256xi1>, vector<8x256xf32>
    %404 = arith.select %397, %342, %403 : vector<8x256xi1>, vector<8x256xf32>
    %405 = arith.select %395, %344, %404 : vector<8x256xi1>, vector<8x256xf32>
    %cst_146 = arith.constant 5.000000e+00 : f32
    %406 = vector.broadcast %cst_146 : f32 to vector<8x256xf32>
    %407 = arith.cmpf oeq, %318, %406 : vector<8x256xf32>
    %cst_147 = arith.constant 6.000000e+00 : f32
    %408 = vector.broadcast %cst_147 : f32 to vector<8x256xf32>
    %409 = arith.cmpf oeq, %318, %408 : vector<8x256xf32>
    %cst_148 = arith.constant 7.000000e+00 : f32
    %410 = vector.broadcast %cst_148 : f32 to vector<8x256xf32>
    %411 = arith.cmpf oeq, %318, %410 : vector<8x256xf32>
    %cst_149 = arith.constant 8.000000e+00 : f32
    %412 = vector.broadcast %cst_149 : f32 to vector<8x256xf32>
    %413 = arith.cmpf oeq, %318, %412 : vector<8x256xf32>
    %414 = arith.select %413, %327, %345 : vector<8x256xi1>, vector<8x256xf32>
    %415 = arith.select %411, %332, %414 : vector<8x256xi1>, vector<8x256xf32>
    %416 = arith.select %409, %342, %415 : vector<8x256xi1>, vector<8x256xf32>
    %417 = arith.select %407, %344, %416 : vector<8x256xi1>, vector<8x256xf32>
    %cst_150 = arith.constant 6.000000e+00 : f32
    %418 = vector.broadcast %cst_150 : f32 to vector<8x256xf32>
    %419 = arith.cmpf oeq, %318, %418 : vector<8x256xf32>
    %cst_151 = arith.constant 7.000000e+00 : f32
    %420 = vector.broadcast %cst_151 : f32 to vector<8x256xf32>
    %421 = arith.cmpf oeq, %318, %420 : vector<8x256xf32>
    %cst_152 = arith.constant 8.000000e+00 : f32
    %422 = vector.broadcast %cst_152 : f32 to vector<8x256xf32>
    %423 = arith.cmpf oeq, %318, %422 : vector<8x256xf32>
    %cst_153 = arith.constant 9.000000e+00 : f32
    %424 = vector.broadcast %cst_153 : f32 to vector<8x256xf32>
    %425 = arith.cmpf oeq, %318, %424 : vector<8x256xf32>
    %426 = arith.select %425, %327, %345 : vector<8x256xi1>, vector<8x256xf32>
    %427 = arith.select %423, %332, %426 : vector<8x256xi1>, vector<8x256xf32>
    %428 = arith.select %421, %342, %427 : vector<8x256xi1>, vector<8x256xf32>
    %429 = arith.select %419, %344, %428 : vector<8x256xi1>, vector<8x256xf32>
    %cst_154 = arith.constant 7.000000e+00 : f32
    %430 = vector.broadcast %cst_154 : f32 to vector<8x256xf32>
    %431 = arith.cmpf oeq, %318, %430 : vector<8x256xf32>
    %cst_155 = arith.constant 8.000000e+00 : f32
    %432 = vector.broadcast %cst_155 : f32 to vector<8x256xf32>
    %433 = arith.cmpf oeq, %318, %432 : vector<8x256xf32>
    %cst_156 = arith.constant 9.000000e+00 : f32
    %434 = vector.broadcast %cst_156 : f32 to vector<8x256xf32>
    %435 = arith.cmpf oeq, %318, %434 : vector<8x256xf32>
    %cst_157 = arith.constant 1.000000e+01 : f32
    %436 = vector.broadcast %cst_157 : f32 to vector<8x256xf32>
    %437 = arith.cmpf oeq, %318, %436 : vector<8x256xf32>
    %438 = arith.select %437, %327, %345 : vector<8x256xi1>, vector<8x256xf32>
    %439 = arith.select %435, %332, %438 : vector<8x256xi1>, vector<8x256xf32>
    %440 = arith.select %433, %342, %439 : vector<8x256xi1>, vector<8x256xf32>
    %441 = arith.select %431, %344, %440 : vector<8x256xi1>, vector<8x256xf32>
    %442 = tpu.concatenate %313, %357, %369, %381, %393, %405, %417, %429, %441 in 1 : vector<8x256xf32>, vector<8x256xf32>, vector<8x256xf32>, vector<8x256xf32>, vector<8x256xf32>, vector<8x256xf32>, vector<8x256xf32>, vector<8x256xf32>, vector<8x256xf32> -> vector<8x2304xf32>
    %443 = arith.truncf %442 : vector<8x2304xf32> to vector<8x2304xbf16>
    %cst_158 = arith.constant dense<0.000000e+00> : vector<8x128xf32>
    %444 = tpu.matmul %443, %305, %cst_158 {dimension_numbers = #tpu.dot_dimension_numbers<[1], [0], [0], [1], [0, 0, 1, 1], [], []>} : vector<8x2304xbf16>, vector<2304x128xbf16>, vector<8x128xf32> -> vector<8x128xf32>
    %cst_159 = arith.constant 0.000000e+00 : f32
    %445 = vector.broadcast %cst_159 : f32 to vector<8x128xf32>
    %446 = arith.subf %445, %444 : vector<8x128xf32>
    %447 = math.exp %446 : vector<8x128xf32>
    %cst_160 = arith.constant 1.000000e+00 : f32
    %448 = vector.broadcast %cst_160 : f32 to vector<8x128xf32>
    %449 = arith.addf %448, %447 : vector<8x128xf32>
    %cst_161 = arith.constant 1.000000e+00 : f32
    %450 = vector.broadcast %cst_161 : f32 to vector<8x128xf32>
    %451 = arith.divf %450, %449 : vector<8x128xf32>
    %452 = arith.mulf %444, %451 : vector<8x128xf32>
    %cst_162 = arith.constant -2.200000e+00 : f32
    %453 = vector.broadcast %cst_162 : f32 to vector<8x128xf32>
    %454 = arith.subf %444, %453 : vector<8x128xf32>
    %cst_163 = arith.constant 2.500000e+00 : f32
    %455 = vector.broadcast %cst_163 : f32 to vector<8x128xf32>
    %456 = arith.mulf %454, %455 : vector<8x128xf32>
    %457 = math.floor %456 : vector<8x128xf32>
    %458 = arith.subf %456, %457 : vector<8x128xf32>
    %459 = arith.mulf %458, %458 : vector<8x128xf32>
    %460 = arith.mulf %459, %458 : vector<8x128xf32>
    %cst_164 = arith.constant 1.000000e+00 : f32
    %461 = vector.broadcast %cst_164 : f32 to vector<8x128xf32>
    %462 = arith.subf %461, %458 : vector<8x128xf32>
    %463 = arith.mulf %462, %462 : vector<8x128xf32>
    %464 = arith.mulf %463, %462 : vector<8x128xf32>
    %cst_165 = arith.constant 0.166666672 : f32
    %465 = vector.broadcast %cst_165 : f32 to vector<8x128xf32>
    %466 = arith.mulf %464, %465 : vector<8x128xf32>
    %cst_166 = arith.constant 5.000000e-01 : f32
    %467 = vector.broadcast %cst_166 : f32 to vector<8x128xf32>
    %468 = arith.mulf %467, %460 : vector<8x128xf32>
    %469 = arith.subf %468, %459 : vector<8x128xf32>
    %cst_167 = arith.constant 0.666666686 : f32
    %470 = vector.broadcast %cst_167 : f32 to vector<8x128xf32>
    %471 = arith.addf %469, %470 : vector<8x128xf32>
    %cst_168 = arith.constant -5.000000e-01 : f32
    %472 = vector.broadcast %cst_168 : f32 to vector<8x128xf32>
    %473 = arith.mulf %472, %460 : vector<8x128xf32>
    %cst_169 = arith.constant 5.000000e-01 : f32
    %474 = vector.broadcast %cst_169 : f32 to vector<8x128xf32>
    %475 = arith.mulf %474, %459 : vector<8x128xf32>
    %476 = arith.addf %473, %475 : vector<8x128xf32>
    %cst_170 = arith.constant 5.000000e-01 : f32
    %477 = vector.broadcast %cst_170 : f32 to vector<8x128xf32>
    %478 = arith.mulf %477, %458 : vector<8x128xf32>
    %479 = arith.addf %476, %478 : vector<8x128xf32>
    %cst_171 = arith.constant 0.166666672 : f32
    %480 = vector.broadcast %cst_171 : f32 to vector<8x128xf32>
    %481 = arith.addf %479, %480 : vector<8x128xf32>
    %cst_172 = arith.constant 0.166666672 : f32
    %482 = vector.broadcast %cst_172 : f32 to vector<8x128xf32>
    %483 = arith.mulf %460, %482 : vector<8x128xf32>
    %cst_173 = arith.constant 0.000000e+00 : f32
    %484 = vector.broadcast %cst_173 : f32 to vector<8x128xf32>
    %cst_174 = arith.constant 0.000000e+00 : f32
    %485 = vector.broadcast %cst_174 : f32 to vector<8x128xf32>
    %486 = arith.cmpf oeq, %457, %485 : vector<8x128xf32>
    %cst_175 = arith.constant 1.000000e+00 : f32
    %487 = vector.broadcast %cst_175 : f32 to vector<8x128xf32>
    %488 = arith.cmpf oeq, %457, %487 : vector<8x128xf32>
    %cst_176 = arith.constant 2.000000e+00 : f32
    %489 = vector.broadcast %cst_176 : f32 to vector<8x128xf32>
    %490 = arith.cmpf oeq, %457, %489 : vector<8x128xf32>
    %cst_177 = arith.constant 3.000000e+00 : f32
    %491 = vector.broadcast %cst_177 : f32 to vector<8x128xf32>
    %492 = arith.cmpf oeq, %457, %491 : vector<8x128xf32>
    %493 = arith.select %492, %466, %484 : vector<8x128xi1>, vector<8x128xf32>
    %494 = arith.select %490, %471, %493 : vector<8x128xi1>, vector<8x128xf32>
    %495 = arith.select %488, %481, %494 : vector<8x128xi1>, vector<8x128xf32>
    %496 = arith.select %486, %483, %495 : vector<8x128xi1>, vector<8x128xf32>
    %cst_178 = arith.constant 1.000000e+00 : f32
    %497 = vector.broadcast %cst_178 : f32 to vector<8x128xf32>
    %498 = arith.cmpf oeq, %457, %497 : vector<8x128xf32>
    %cst_179 = arith.constant 2.000000e+00 : f32
    %499 = vector.broadcast %cst_179 : f32 to vector<8x128xf32>
    %500 = arith.cmpf oeq, %457, %499 : vector<8x128xf32>
    %cst_180 = arith.constant 3.000000e+00 : f32
    %501 = vector.broadcast %cst_180 : f32 to vector<8x128xf32>
    %502 = arith.cmpf oeq, %457, %501 : vector<8x128xf32>
    %cst_181 = arith.constant 4.000000e+00 : f32
    %503 = vector.broadcast %cst_181 : f32 to vector<8x128xf32>
    %504 = arith.cmpf oeq, %457, %503 : vector<8x128xf32>
    %505 = arith.select %504, %466, %484 : vector<8x128xi1>, vector<8x128xf32>
    %506 = arith.select %502, %471, %505 : vector<8x128xi1>, vector<8x128xf32>
    %507 = arith.select %500, %481, %506 : vector<8x128xi1>, vector<8x128xf32>
    %508 = arith.select %498, %483, %507 : vector<8x128xi1>, vector<8x128xf32>
    %cst_182 = arith.constant 2.000000e+00 : f32
    %509 = vector.broadcast %cst_182 : f32 to vector<8x128xf32>
    %510 = arith.cmpf oeq, %457, %509 : vector<8x128xf32>
    %cst_183 = arith.constant 3.000000e+00 : f32
    %511 = vector.broadcast %cst_183 : f32 to vector<8x128xf32>
    %512 = arith.cmpf oeq, %457, %511 : vector<8x128xf32>
    %cst_184 = arith.constant 4.000000e+00 : f32
    %513 = vector.broadcast %cst_184 : f32 to vector<8x128xf32>
    %514 = arith.cmpf oeq, %457, %513 : vector<8x128xf32>
    %cst_185 = arith.constant 5.000000e+00 : f32
    %515 = vector.broadcast %cst_185 : f32 to vector<8x128xf32>
    %516 = arith.cmpf oeq, %457, %515 : vector<8x128xf32>
    %517 = arith.select %516, %466, %484 : vector<8x128xi1>, vector<8x128xf32>
    %518 = arith.select %514, %471, %517 : vector<8x128xi1>, vector<8x128xf32>
    %519 = arith.select %512, %481, %518 : vector<8x128xi1>, vector<8x128xf32>
    %520 = arith.select %510, %483, %519 : vector<8x128xi1>, vector<8x128xf32>
    %cst_186 = arith.constant 3.000000e+00 : f32
    %521 = vector.broadcast %cst_186 : f32 to vector<8x128xf32>
    %522 = arith.cmpf oeq, %457, %521 : vector<8x128xf32>
    %cst_187 = arith.constant 4.000000e+00 : f32
    %523 = vector.broadcast %cst_187 : f32 to vector<8x128xf32>
    %524 = arith.cmpf oeq, %457, %523 : vector<8x128xf32>
    %cst_188 = arith.constant 5.000000e+00 : f32
    %525 = vector.broadcast %cst_188 : f32 to vector<8x128xf32>
    %526 = arith.cmpf oeq, %457, %525 : vector<8x128xf32>
    %cst_189 = arith.constant 6.000000e+00 : f32
    %527 = vector.broadcast %cst_189 : f32 to vector<8x128xf32>
    %528 = arith.cmpf oeq, %457, %527 : vector<8x128xf32>
    %529 = arith.select %528, %466, %484 : vector<8x128xi1>, vector<8x128xf32>
    %530 = arith.select %526, %471, %529 : vector<8x128xi1>, vector<8x128xf32>
    %531 = arith.select %524, %481, %530 : vector<8x128xi1>, vector<8x128xf32>
    %532 = arith.select %522, %483, %531 : vector<8x128xi1>, vector<8x128xf32>
    %cst_190 = arith.constant 4.000000e+00 : f32
    %533 = vector.broadcast %cst_190 : f32 to vector<8x128xf32>
    %534 = arith.cmpf oeq, %457, %533 : vector<8x128xf32>
    %cst_191 = arith.constant 5.000000e+00 : f32
    %535 = vector.broadcast %cst_191 : f32 to vector<8x128xf32>
    %536 = arith.cmpf oeq, %457, %535 : vector<8x128xf32>
    %cst_192 = arith.constant 6.000000e+00 : f32
    %537 = vector.broadcast %cst_192 : f32 to vector<8x128xf32>
    %538 = arith.cmpf oeq, %457, %537 : vector<8x128xf32>
    %cst_193 = arith.constant 7.000000e+00 : f32
    %539 = vector.broadcast %cst_193 : f32 to vector<8x128xf32>
    %540 = arith.cmpf oeq, %457, %539 : vector<8x128xf32>
    %541 = arith.select %540, %466, %484 : vector<8x128xi1>, vector<8x128xf32>
    %542 = arith.select %538, %471, %541 : vector<8x128xi1>, vector<8x128xf32>
    %543 = arith.select %536, %481, %542 : vector<8x128xi1>, vector<8x128xf32>
    %544 = arith.select %534, %483, %543 : vector<8x128xi1>, vector<8x128xf32>
    %cst_194 = arith.constant 5.000000e+00 : f32
    %545 = vector.broadcast %cst_194 : f32 to vector<8x128xf32>
    %546 = arith.cmpf oeq, %457, %545 : vector<8x128xf32>
    %cst_195 = arith.constant 6.000000e+00 : f32
    %547 = vector.broadcast %cst_195 : f32 to vector<8x128xf32>
    %548 = arith.cmpf oeq, %457, %547 : vector<8x128xf32>
    %cst_196 = arith.constant 7.000000e+00 : f32
    %549 = vector.broadcast %cst_196 : f32 to vector<8x128xf32>
    %550 = arith.cmpf oeq, %457, %549 : vector<8x128xf32>
    %cst_197 = arith.constant 8.000000e+00 : f32
    %551 = vector.broadcast %cst_197 : f32 to vector<8x128xf32>
    %552 = arith.cmpf oeq, %457, %551 : vector<8x128xf32>
    %553 = arith.select %552, %466, %484 : vector<8x128xi1>, vector<8x128xf32>
    %554 = arith.select %550, %471, %553 : vector<8x128xi1>, vector<8x128xf32>
    %555 = arith.select %548, %481, %554 : vector<8x128xi1>, vector<8x128xf32>
    %556 = arith.select %546, %483, %555 : vector<8x128xi1>, vector<8x128xf32>
    %cst_198 = arith.constant 6.000000e+00 : f32
    %557 = vector.broadcast %cst_198 : f32 to vector<8x128xf32>
    %558 = arith.cmpf oeq, %457, %557 : vector<8x128xf32>
    %cst_199 = arith.constant 7.000000e+00 : f32
    %559 = vector.broadcast %cst_199 : f32 to vector<8x128xf32>
    %560 = arith.cmpf oeq, %457, %559 : vector<8x128xf32>
    %cst_200 = arith.constant 8.000000e+00 : f32
    %561 = vector.broadcast %cst_200 : f32 to vector<8x128xf32>
    %562 = arith.cmpf oeq, %457, %561 : vector<8x128xf32>
    %cst_201 = arith.constant 9.000000e+00 : f32
    %563 = vector.broadcast %cst_201 : f32 to vector<8x128xf32>
    %564 = arith.cmpf oeq, %457, %563 : vector<8x128xf32>
    %565 = arith.select %564, %466, %484 : vector<8x128xi1>, vector<8x128xf32>
    %566 = arith.select %562, %471, %565 : vector<8x128xi1>, vector<8x128xf32>
    %567 = arith.select %560, %481, %566 : vector<8x128xi1>, vector<8x128xf32>
    %568 = arith.select %558, %483, %567 : vector<8x128xi1>, vector<8x128xf32>
    %cst_202 = arith.constant 7.000000e+00 : f32
    %569 = vector.broadcast %cst_202 : f32 to vector<8x128xf32>
    %570 = arith.cmpf oeq, %457, %569 : vector<8x128xf32>
    %cst_203 = arith.constant 8.000000e+00 : f32
    %571 = vector.broadcast %cst_203 : f32 to vector<8x128xf32>
    %572 = arith.cmpf oeq, %457, %571 : vector<8x128xf32>
    %cst_204 = arith.constant 9.000000e+00 : f32
    %573 = vector.broadcast %cst_204 : f32 to vector<8x128xf32>
    %574 = arith.cmpf oeq, %457, %573 : vector<8x128xf32>
    %cst_205 = arith.constant 1.000000e+01 : f32
    %575 = vector.broadcast %cst_205 : f32 to vector<8x128xf32>
    %576 = arith.cmpf oeq, %457, %575 : vector<8x128xf32>
    %577 = arith.select %576, %466, %484 : vector<8x128xi1>, vector<8x128xf32>
    %578 = arith.select %574, %471, %577 : vector<8x128xi1>, vector<8x128xf32>
    %579 = arith.select %572, %481, %578 : vector<8x128xi1>, vector<8x128xf32>
    %580 = arith.select %570, %483, %579 : vector<8x128xi1>, vector<8x128xf32>
    %581 = tpu.concatenate %452, %496, %508, %520, %532, %544, %556, %568, %580 in 1 : vector<8x128xf32>, vector<8x128xf32>, vector<8x128xf32>, vector<8x128xf32>, vector<8x128xf32>, vector<8x128xf32>, vector<8x128xf32>, vector<8x128xf32>, vector<8x128xf32> -> vector<8x1152xf32>
    %c0_206 = arith.constant 0 : index
    %c0_207 = arith.constant 0 : index
    %582 = vector.load %arg5[%c0_206, %c0_207] : memref<1x1152xf32, #tpu.memory_space<vmem>>, vector<1x1152xf32>
    %583 = vector.broadcast %582 : vector<1x1152xf32> to vector<8x1152xf32>
    %584 = arith.mulf %581, %583 : vector<8x1152xf32>
    %cst_208 = arith.constant dense<0.000000e+00> : vector<8xf32>
    %585 = vector.multi_reduction <add>, %584, %cst_208 [1] : vector<8x1152xf32> to vector<8xf32>
    %586 = vector.shape_cast %585 : vector<8xf32> to vector<8x1xf32>
    %587 = vector.shape_cast %586 : vector<8x1xf32> to vector<8x1xf32>
    %588 = vector.broadcast %587 : vector<8x1xf32> to vector<8x128xf32>
    %c0_209 = arith.constant 0 : index
    %c0_210 = arith.constant 0 : index
    %589 = vector.load %arg8[%c0_209, %c0_210] : memref<8x128xf32, #tpu.memory_space<vmem>>, vector<8x128xf32>
    tpu.vector_store %arg8[%c0_209, %c0_210], %588 {strides = array<i32>} : memref<8x128xf32, #tpu.memory_space<vmem>>, vector<8x128xf32>,
    return
  }
  func.func @transform_0(%arg0: i32) -> (i32, i32) {
    %c0_i32 = arith.constant 0 : i32
    %c0_i32_0 = arith.constant 0 : i32
    return %arg0, %c0_i32 : i32, i32
  }
  func.func @transform_1(%arg0: i32) -> (i32, i32) {
    %c0_i32 = arith.constant 0 : i32
    %c0_i32_0 = arith.constant 0 : i32
    %c0_i32_1 = arith.constant 0 : i32
    return %c0_i32, %c0_i32_0 : i32, i32
  }
  func.func @transform_2(%arg0: i32) -> (i32, i32) {
    %c0_i32 = arith.constant 0 : i32
    %c0_i32_0 = arith.constant 0 : i32
    %c0_i32_1 = arith.constant 0 : i32
    return %c0_i32, %c0_i32_0 : i32, i32
  }
  func.func @transform_3(%arg0: i32) -> (i32, i32) {
    %c0_i32 = arith.constant 0 : i32
    %c0_i32_0 = arith.constant 0 : i32
    %c0_i32_1 = arith.constant 0 : i32
    return %c0_i32, %c0_i32_0 : i32, i32
  }
  func.func @transform_4(%arg0: i32) -> (i32, i32) {
    %c0_i32 = arith.constant 0 : i32
    %c0_i32_0 = arith.constant 0 : i32
    %c0_i32_1 = arith.constant 0 : i32
    return %c0_i32, %c0_i32_0 : i32, i32
  }
  func.func @transform_5(%arg0: i32) -> (i32, i32) {
    %c0_i32 = arith.constant 0 : i32
    %c0_i32_0 = arith.constant 0 : i32
    %c0_i32_1 = arith.constant 0 : i32
    return %c0_i32, %c0_i32_0 : i32, i32
  }
  func.func @transform_6(%arg0: i32) -> (i32, i32) {
    %c0_i32 = arith.constant 0 : i32
    %c0_i32_0 = arith.constant 0 : i32
    %c0_i32_1 = arith.constant 0 : i32
    return %c0_i32, %c0_i32_0 : i32, i32
  }
  func.func @transform_7(%arg0: i32) -> (i32, i32) {
    %c0_i32 = arith.constant 0 : i32
    %c0_i32_0 = arith.constant 0 : i32
    return %arg0, %c0_i32 : i32, i32
  }
}

</mosaic_0001>

<llo_original>
// kernel: tpu_custom_call.1
$region0: #{tpu_custom_call.1}
  #allocation0 [shape = 'u32[]', space=smem, size = 0x4, offset = 0x4, fixed_abs, tag = 'smem constant byte address 0x4 - core index']
  #allocation1 [shape = 'u32[144,128]{1,0:T(1,128)}', space=vmem, size = 0x12000, scoped, tag = 'internal scratch']
  %s0 = inlined_call_operand.hbm [shape: f32[8,128], index: 0, kind: input, shape index: {}]
  %s1 = inlined_call_operand.hbm [shape: bf16[1152,128], index: 1, kind: input, shape index: {}]
  %s2 = inlined_call_operand.hbm [shape: bf16[1152,256], index: 2, kind: input, shape index: {}]
  %s3 = inlined_call_operand.hbm [shape: bf16[2304,128], index: 3, kind: input, shape index: {}]
  %s4 = inlined_call_operand.hbm [shape: f32[1,1152], index: 4, kind: input, shape index: {}]
  %s5 = inlined_call_operand.hbm [shape: f32[1,256], index: 5, kind: input, shape index: {}]
  %s6 = inlined_call_operand.hbm [shape: f32[1,256], index: 6, kind: input, shape index: {}]
  %s7 = inlined_call_operand.hbm [shape: f32[8,128], index: 7, kind: output, shape index: {}]
  %s8 = sld [smem:[#allocation0]]
  $region66: #{tpu_custom_call.1} parent=0
    _
  %s10 = ssub.s32 1, %s8
  %s11 = scalar_select 0, %s10, %s8
  $region1: #{tpu_custom_call.1} parent=0
    #allocation2 [shape = 'u8[4096]{0}', space=vmem, size = 0x1000, scoped, tag = 'input window, operand 0, single buffered']
    #allocation3 [shape = 's32[1]{0}', space=sflag, size = 0x4, scoped, tag = 'scoped memory for tpu_custom_call.1']
    #allocation4 [shape = 's32[1]{0}', space=sflag, size = 0x4, scoped, tag = 'scoped memory for tpu_custom_call.1']
    #allocation5 [shape = 'u8[294912]{0}', space=vmem, size = 0x48000, scoped, tag = 'input window, operand 1, single buffered']
    #allocation6 [shape = 's32[1]{0}', space=sflag, size = 0x4, scoped, tag = 'scoped memory for tpu_custom_call.1']
    #allocation7 [shape = 'u8[589824]{0}', space=vmem, size = 0x90000, scoped, tag = 'input window, operand 2, single buffered']
    #allocation8 [shape = 'u8[589824]{0}', space=vmem, size = 0x90000, scoped, tag = 'input window, operand 3, single buffered']
    #allocation9 [shape = 's32[1]{0}', space=sflag, size = 0x4, scoped, tag = 'scoped memory for tpu_custom_call.1']
    #allocation10 [shape = 'u8[4608]{0}', space=vmem, size = 0x1400, scoped, tag = 'input window, operand 4, single buffered']
    #allocation11 [shape = 'u8[1024]{0}', space=vmem, size = 0x400, scoped, tag = 'input window, operand 5, single buffered']
    #allocation12 [shape = 's32[1]{0}', space=sflag, size = 0x4, scoped, tag = 'scoped memory for tpu_custom_call.1']
    #allocation13 [shape = 'u8[1024]{0}', space=vmem, size = 0x400, scoped, tag = 'input window, operand 6, single buffered']
    #allocation14 [shape = 'u8[4096]{0}', space=vmem, size = 0x1000, scoped, tag = 'output window, operand 0, single buffered']
    %12 = vsyncpa [#allocation3], 0
    %13 = vsyncpa [#allocation6], 0
    %14 = vsyncpa [#allocation9], 0
    %15 = vsyncpa [#allocation12], 0
    %16 = vsyncpa [#allocation4], 0
    // Predicated region
    $region2: #{tpu_custom_call.1} parent=1 // pred_check
      _
    $region3: #{tpu_custom_call.1} parent=1 // pred_check_branch
      %18 = sbr.rel (0) target = $region5
    $region4: #{tpu_custom_call.1} parent=1 // pred_region
      %s20 = ssub.s32 128, 128
      %21 = vsyncadd [#allocation3], %s20
      %s23 = sshll.u32 [#allocation2], 4
      %s24 = int_to_ptr.vmem [resolvable:$true] %s23
      %26 = dma.hbm_to_vmem [thread:$0]  %s0, 128, %s24, [#allocation3]
    $region5: #{tpu_custom_call.1} parent=1 // pred_fallthru
      _
    // Predicated region
    $region6: #{tpu_custom_call.1} parent=1 // pred_check
      _
    $region7: #{tpu_custom_call.1} parent=1 // pred_check_branch
      %28 = sbr.rel (0) target = $region9
    $region8: #{tpu_custom_call.1} parent=1 // pred_region
      %s30 = ssub.s32 9216, 9216
      %31 = vsyncadd [#allocation6], %s30
      %s32 = sshll.u32 [#allocation5], 4
      %s33 = int_to_ptr.vmem [resolvable:$true] %s32
      %38 = dma.hbm_to_vmem [thread:$0]  %s1, 9216, %s33, [#allocation6], 64, 64, 4
    $region9: #{tpu_custom_call.1} parent=1 // pred_fallthru
      _
    // Predicated region
    $region10: #{tpu_custom_call.1} parent=1 // pred_check
      _
    $region11: #{tpu_custom_call.1} parent=1 // pred_check_branch
      %40 = sbr.rel (0) target = $region13
    $region12: #{tpu_custom_call.1} parent=1 // pred_region
      %s42 = ssub.s32 18432, 18432
      %43 = vsyncadd [#allocation6], %s42
      %s44 = sshll.u32 [#allocation7], 4
      %s45 = int_to_ptr.vmem [resolvable:$true] %s44
      %50 = dma.hbm_to_vmem [thread:$0]  %s2, 18432, %s45, [#allocation6], 128, 128, 8
    $region13: #{tpu_custom_call.1} parent=1 // pred_fallthru
      _
    // Predicated region
    $region14: #{tpu_custom_call.1} parent=1 // pred_check
      _
    $region15: #{tpu_custom_call.1} parent=1 // pred_check_branch
      %52 = sbr.rel (0) target = $region17
    $region16: #{tpu_custom_call.1} parent=1 // pred_region
      %s54 = ssub.s32 18432, 18432
      %55 = vsyncadd [#allocation9], %s54
      %s56 = sshll.u32 [#allocation8], 4
      %s57 = int_to_ptr.vmem [resolvable:$true] %s56
      %62 = dma.hbm_to_vmem [thread:$0]  %s3, 18432, %s57, [#allocation9], 64, 64, 4
    $region17: #{tpu_custom_call.1} parent=1 // pred_fallthru
      _
    // Predicated region
    $region18: #{tpu_custom_call.1} parent=1 // pred_check
      _
    $region19: #{tpu_custom_call.1} parent=1 // pred_check_branch
      %64 = sbr.rel (0) target = $region21
    $region20: #{tpu_custom_call.1} parent=1 // pred_region
      %s66 = ssub.s32 144, 144
      %67 = vsyncadd [#allocation9], %s66
      %s69 = sshll.u32 [#allocation10], 4
      %s70 = int_to_ptr.vmem [resolvable:$true] %s69
      %72 = dma.hbm_to_vmem [thread:$0]  %s4, 144, %s70, [#allocation9]
    $region21: #{tpu_custom_call.1} parent=1 // pred_fallthru
      _
    // Predicated region
    $region22: #{tpu_custom_call.1} parent=1 // pred_check
      _
    $region23: #{tpu_custom_call.1} parent=1 // pred_check_branch
      %74 = sbr.rel (0) target = $region25
    $region24: #{tpu_custom_call.1} parent=1 // pred_region
      %s76 = ssub.s32 32, 32
      %77 = vsyncadd [#allocation12], %s76
      %s79 = sshll.u32 [#allocation11], 4
      %s80 = int_to_ptr.vmem [resolvable:$true] %s79
      %82 = dma.hbm_to_vmem [thread:$0]  %s5, 32, %s80, [#allocation12]
    $region25: #{tpu_custom_call.1} parent=1 // pred_fallthru
      _
    // Predicated region
    $region26: #{tpu_custom_call.1} parent=1 // pred_check
      _
    $region27: #{tpu_custom_call.1} parent=1 // pred_check_branch
      %84 = sbr.rel (0) target = $region29
    $region28: #{tpu_custom_call.1} parent=1 // pred_region
      %s86 = ssub.s32 32, 32
      %87 = vsyncadd [#allocation12], %s86
      %s89 = sshll.u32 [#allocation13], 4
      %s90 = int_to_ptr.vmem [resolvable:$true] %s89
      %92 = dma.hbm_to_vmem [thread:$0]  %s6, 32, %s90, [#allocation12]
    $region29: #{tpu_custom_call.1} parent=1 // pred_fallthru
      _
    // Predicated region
    $region30: #{tpu_custom_call.1} parent=1 // pred_check
      _
    $region31: #{tpu_custom_call.1} parent=1 // pred_check_branch
      %94 = sbr.rel (0) target = $region33
    $region32: #{tpu_custom_call.1} parent=1 // pred_region
      %95 = dma.done [#allocation3], 128
    $region33: #{tpu_custom_call.1} parent=1 // pred_fallthru
      _
    // Predicated region
    $region34: #{tpu_custom_call.1} parent=1 // pred_check
      _
    $region35: #{tpu_custom_call.1} parent=1 // pred_check_branch
      %97 = sbr.rel (0) target = $region37
    $region36: #{tpu_custom_call.1} parent=1 // pred_region
      %98 = dma.done [#allocation6], 9216
    $region37: #{tpu_custom_call.1} parent=1 // pred_fallthru
      _
    // Predicated region
    $region38: #{tpu_custom_call.1} parent=1 // pred_check
      _
    $region39: #{tpu_custom_call.1} parent=1 // pred_check_branch
      %100 = sbr.rel (0) target = $region41
    $region40: #{tpu_custom_call.1} parent=1 // pred_region
      %101 = dma.done [#allocation6], 18432
    $region41: #{tpu_custom_call.1} parent=1 // pred_fallthru
      _
    // Predicated region
    $region42: #{tpu_custom_call.1} parent=1 // pred_check
      _
    $region43: #{tpu_custom_call.1} parent=1 // pred_check_branch
      %103 = sbr.rel (0) target = $region45
    $region44: #{tpu_custom_call.1} parent=1 // pred_region
      %104 = dma.done [#allocation9], 18432
    $region45: #{tpu_custom_call.1} parent=1 // pred_fallthru
      _
    // Predicated region
    $region46: #{tpu_custom_call.1} parent=1 // pred_check
      _
    $region47: #{tpu_custom_call.1} parent=1 // pred_check_branch
      %106 = sbr.rel (0) target = $region49
    $region48: #{tpu_custom_call.1} parent=1 // pred_region
      %107 = dma.done [#allocation9], 144
    $region49: #{tpu_custom_call.1} parent=1 // pred_fallthru
      _
    // Predicated region
    $region50: #{tpu_custom_call.1} parent=1 // pred_check
      _
    $region51: #{tpu_custom_call.1} parent=1 // pred_check_branch
      %109 = sbr.rel (0) target = $region53
    $region52: #{tpu_custom_call.1} parent=1 // pred_region
      %110 = dma.done [#allocation12], 32
    $region53: #{tpu_custom_call.1} parent=1 // pred_fallthru
      _
    // Predicated region
    $region54: #{tpu_custom_call.1} parent=1 // pred_check
      _
    $region55: #{tpu_custom_call.1} parent=1 // pred_check_branch
      %112 = sbr.rel (0) target = $region57
    $region56: #{tpu_custom_call.1} parent=1 // pred_region
      %113 = dma.done [#allocation12], 32
    $region57: #{tpu_custom_call.1} parent=1 // pred_fallthru
      _
    %v115 = vld [vmem:[#allocation2] sm:$0xff]
    %v116 = vld [vmem:[#allocation5] sm:$0xf]
    %v117 = vld [vmem:[#allocation5 + $0x4] sm:$0xf]
    %v118 = vld [vmem:[#allocation5 + $0x8] sm:$0xf]
    %v119 = vld [vmem:[#allocation5 + $0xc] sm:$0xf]
    %v120 = vld [vmem:[#allocation5 + $0x10] sm:$0xf]
    %v121 = vld [vmem:[#allocation5 + $0x14] sm:$0xf]
    %v122 = vld [vmem:[#allocation5 + $0x18] sm:$0xf]
    %v123 = vld [vmem:[#allocation5 + $0x1c] sm:$0xf]
    %v124 = vld [vmem:[#allocation5 + $0x20] sm:$0xf]
    %v125 = vld [vmem:[#allocation5 + $0x24] sm:$0xf]
    %v126 = vld [vmem:[#allocation5 + $0x28] sm:$0xf]
    %v127 = vld [vmem:[#allocation5 + $0x2c] sm:$0xf]
    %v128 = vld [vmem:[#allocation5 + $0x30] sm:$0xf]
    %v129 = vld [vmem:[#allocation5 + $0x34] sm:$0xf]
    %v130 = vld [vmem:[#allocation5 + $0x38] sm:$0xf]
    %v131 = vld [vmem:[#allocation5 + $0x3c] sm:$0xf]
    %v132 = vld [vmem:[#allocation5 + $0x40] sm:$0xf]
    %v133 = vld [vmem:[#allocation5 + $0x44] sm:$0xf]
    %v134 = vld [vmem:[#allocation5 + $0x48] sm:$0xf]
    %v135 = vld [vmem:[#allocation5 + $0x4c] sm:$0xf]
    %v136 = vld [vmem:[#allocation5 + $0x50] sm:$0xf]
    %v137 = vld [vmem:[#allocation5 + $0x54] sm:$0xf]
    %v138 = vld [vmem:[#allocation5 + $0x58] sm:$0xf]
    %v139 = vld [vmem:[#allocation5 + $0x5c] sm:$0xf]
    %v140 = vld [vmem:[#allocation5 + $0x60] sm:$0xf]
    %v141 = vld [vmem:[#allocation5 + $0x64] sm:$0xf]
    %v142 = vld [vmem:[#allocation5 + $0x68] sm:$0xf]
    %v143 = vld [vmem:[#allocation5 + $0x6c] sm:$0xf]
    %v144 = vld [vmem:[#allocation5 + $0x70] sm:$0xf]
    %v145 = vld [vmem:[#allocation5 + $0x74] sm:$0xf]
    %v146 = vld [vmem:[#allocation5 + $0x78] sm:$0xf]
    %v147 = vld [vmem:[#allocation5 + $0x7c] sm:$0xf]
    %v148 = vld [vmem:[#allocation5 + $0x80] sm:$0xf]
    %v149 = vld [vmem:[#allocation5 + $0x84] sm:$0xf]
    %v150 = vld [vmem:[#allocation5 + $0x88] sm:$0xf]
    %v151 = vld [vmem:[#allocation5 + $0x8c] sm:$0xf]
    %v152 = vld [vmem:[#allocation5 + $0x90] sm:$0xf]
    %v153 = vld [vmem:[#allocation5 + $0x94] sm:$0xf]
    %v154 = vld [vmem:[#allocation5 + $0x98] sm:$0xf]
    %v155 = vld [vmem:[#allocation5 + $0x9c] sm:$0xf]
    %v156 = vld [vmem:[#allocation5 + $0xa0] sm:$0xf]
    %v157 = vld [vmem:[#allocation5 + $0xa4] sm:$0xf]
    %v158 = vld [vmem:[#allocation5 + $0xa8] sm:$0xf]
    %v159 = vld [vmem:[#allocation5 + $0xac] sm:$0xf]
    %v160 = vld [vmem:[#allocation5 + $0xb0] sm:$0xf]
    %v161 = vld [vmem:[#allocation5 + $0xb4] sm:$0xf]
    %v162 = vld [vmem:[#allocation5 + $0xb8] sm:$0xf]
    %v163 = vld [vmem:[#allocation5 + $0xbc] sm:$0xf]
    %v164 = vld [vmem:[#allocation5 + $0xc0] sm:$0xf]
    %v165 = vld [vmem:[#allocation5 + $0xc4] sm:$0xf]
    %v166 = vld [vmem:[#allocation5 + $0xc8] sm:$0xf]
    %v167 = vld [vmem:[#allocation5 + $0xcc] sm:$0xf]
    %v168 = vld [vmem:[#allocation5 + $0xd0] sm:$0xf]
    %v169 = vld [vmem:[#allocation5 + $0xd4] sm:$0xf]
    %v170 = vld [vmem:[#allocation5 + $0xd8] sm:$0xf]
    %v171 = vld [vmem:[#allocation5 + $0xdc] sm:$0xf]
    %v172 = vld [vmem:[#allocation5 + $0xe0] sm:$0xf]
    %v173 = vld [vmem:[#allocation5 + $0xe4] sm:$0xf]
    %v174 = vld [vmem:[#allocation5 + $0xe8] sm:$0xf]
    %v175 = vld [vmem:[#allocation5 + $0xec] sm:$0xf]
    %v176 = vld [vmem:[#allocation5 + $0xf0] sm:$0xf]
    %v177 = vld [vmem:[#allocation5 + $0xf4] sm:$0xf]
    %v178 = vld [vmem:[#allocation5 + $0xf8] sm:$0xf]
    %v179 = vld [vmem:[#allocation5 + $0xfc] sm:$0xf]
    %v180 = vld [vmem:[#allocation5 + $0x100] sm:$0xf]
    %v181 = vld [vmem:[#allocation5 + $0x104] sm:$0xf]
    %v182 = vld [vmem:[#allocation5 + $0x108] sm:$0xf]
    %v183 = vld [vmem:[#allocation5 + $0x10c] sm:$0xf]
    %v184 = vld [vmem:[#allocation5 + $0x110] sm:$0xf]
    %v185 = vld [vmem:[#allocation5 + $0x114] sm:$0xf]
    %v186 = vld [vmem:[#allocation5 + $0x118] sm:$0xf]
    %v187 = vld [vmem:[#allocation5 + $0x11c] sm:$0xf]
    %v188 = vld [vmem:[#allocation5 + $0x120] sm:$0xf]
    %v189 = vld [vmem:[#allocation5 + $0x124] sm:$0xf]
    %v190 = vld [vmem:[#allocation5 + $0x128] sm:$0xf]
    %v191 = vld [vmem:[#allocation5 + $0x12c] sm:$0xf]
    %v192 = vld [vmem:[#allocation5 + $0x130] sm:$0xf]
    %v193 = vld [vmem:[#allocation5 + $0x134] sm:$0xf]
    %v194 = vld [vmem:[#allocation5 + $0x138] sm:$0xf]
    %v195 = vld [vmem:[#allocation5 + $0x13c] sm:$0xf]
    %v196 = vld [vmem:[#allocation5 + $0x140] sm:$0xf]
    %v197 = vld [vmem:[#allocation5 + $0x144] sm:$0xf]
    %v198 = vld [vmem:[#allocation5 + $0x148] sm:$0xf]
    %v199 = vld [vmem:[#allocation5 + $0x14c] sm:$0xf]
    %v200 = vld [vmem:[#allocation5 + $0x150] sm:$0xf]
    %v201 = vld [vmem:[#allocation5 + $0x154] sm:$0xf]
    %v202 = vld [vmem:[#allocation5 + $0x158] sm:$0xf]
    %v203 = vld [vmem:[#allocation5 + $0x15c] sm:$0xf]
    %v204 = vld [vmem:[#allocation5 + $0x160] sm:$0xf]
    %v205 = vld [vmem:[#allocation5 + $0x164] sm:$0xf]
    %v206 = vld [vmem:[#allocation5 + $0x168] sm:$0xf]
    %v207 = vld [vmem:[#allocation5 + $0x16c] sm:$0xf]
    %v208 = vld [vmem:[#allocation5 + $0x170] sm:$0xf]
    %v209 = vld [vmem:[#allocation5 + $0x174] sm:$0xf]
    %v210 = vld [vmem:[#allocation5 + $0x178] sm:$0xf]
    %v211 = vld [vmem:[#allocation5 + $0x17c] sm:$0xf]
    %v212 = vld [vmem:[#allocation5 + $0x180] sm:$0xf]
    %v213 = vld [vmem:[#allocation5 + $0x184] sm:$0xf]
    %v214 = vld [vmem:[#allocation5 + $0x188] sm:$0xf]
    %v215 = vld [vmem:[#allocation5 + $0x18c] sm:$0xf]
    %v216 = vld [vmem:[#allocation5 + $0x190] sm:$0xf]
    %v217 = vld [vmem:[#allocation5 + $0x194] sm:$0xf]
    %v218 = vld [vmem:[#allocation5 + $0x198] sm:$0xf]
    %v219 = vld [vmem:[#allocation5 + $0x19c] sm:$0xf]
    %v220 = vld [vmem:[#allocation5 + $0x1a0] sm:$0xf]
    %v221 = vld [vmem:[#allocation5 + $0x1a4] sm:$0xf]
    %v222 = vld [vmem:[#allocation5 + $0x1a8] sm:$0xf]
    %v223 = vld [vmem:[#allocation5 + $0x1ac] sm:$0xf]
    %v224 = vld [vmem:[#allocation5 + $0x1b0] sm:$0xf]
    %v225 = vld [vmem:[#allocation5 + $0x1b4] sm:$0xf]
    %v226 = vld [vmem:[#allocation5 + $0x1b8] sm:$0xf]
    %v227 = vld [vmem:[#allocation5 + $0x1bc] sm:$0xf]
    %v228 = vld [vmem:[#allocation5 + $0x1c0] sm:$0xf]
    %v229 = vld [vmem:[#allocation5 + $0x1c4] sm:$0xf]
    %v230 = vld [vmem:[#allocation5 + $0x1c8] sm:$0xf]
    %v231 = vld [vmem:[#allocation5 + $0x1cc] sm:$0xf]
    %v232 = vld [vmem:[#allocation5 + $0x1d0] sm:$0xf]
    %v233 = vld [vmem:[#allocation5 + $0x1d4] sm:$0xf]
    %v234 = vld [vmem:[#allocation5 + $0x1d8] sm:$0xf]
    %v235 = vld [vmem:[#allocation5 + $0x1dc] sm:$0xf]
    %v236 = vld [vmem:[#allocation5 + $0x1e0] sm:$0xf]
    %v237 = vld [vmem:[#allocation5 + $0x1e4] sm:$0xf]
    %v238 = vld [vmem:[#allocation5 + $0x1e8] sm:$0xf]
    %v239 = vld [vmem:[#allocation5 + $0x1ec] sm:$0xf]
    %v240 = vld [vmem:[#allocation5 + $0x1f0] sm:$0xf]
    %v241 = vld [vmem:[#allocation5 + $0x1f4] sm:$0xf]
    %v242 = vld [vmem:[#allocation5 + $0x1f8] sm:$0xf]
    %v243 = vld [vmem:[#allocation5 + $0x1fc] sm:$0xf]
    %v244 = vld [vmem:[#allocation5 + $0x200] sm:$0xf]
    %v245 = vld [vmem:[#allocation5 + $0x204] sm:$0xf]
    %v246 = vld [vmem:[#allocation5 + $0x208] sm:$0xf]
    %v247 = vld [vmem:[#allocation5 + $0x20c] sm:$0xf]
    %v248 = vld [vmem:[#allocation5 + $0x210] sm:$0xf]
    %v249 = vld [vmem:[#allocation5 + $0x214] sm:$0xf]
    %v250 = vld [vmem:[#allocation5 + $0x218] sm:$0xf]
    %v251 = vld [vmem:[#allocation5 + $0x21c] sm:$0xf]
    %v252 = vld [vmem:[#allocation5 + $0x220] sm:$0xf]
    %v253 = vld [vmem:[#allocation5 + $0x224] sm:$0xf]
    %v254 = vld [vmem:[#allocation5 + $0x228] sm:$0xf]
    %v255 = vld [vmem:[#allocation5 + $0x22c] sm:$0xf]
    %v256 = vld [vmem:[#allocation5 + $0x230] sm:$0xf]
    %v257 = vld [vmem:[#allocation5 + $0x234] sm:$0xf]
    %v258 = vld [vmem:[#allocation5 + $0x238] sm:$0xf]
    %v259 = vld [vmem:[#allocation5 + $0x23c] sm:$0xf]
    %v260 = vsub.f32 0.0, %v115
    %v261 = vmul.f32 %v260, 1.442695
    %v262 = vpow.pop %v261
    %v263 = vadd.f32 %v262, 1.0
    %v264 = vrcp.pop %v263
    %v265 = vmul.f32 1.0, %v264
    %v266 = vmul.f32 %v115, %v265
    %v267 = vsub.f32 %v115, -2.2
    %v268 = vmul.f32 %v267, 2.5
    %v269 = vfloor.f32 %v268
    %v270 = vsub.f32 %v268, %v269
    %v271 = vmul.f32 %v270, %v270
    %v272 = vmul.f32 %v271, %v270
    %v273 = vsub.f32 1.0, %v270
    %v274 = vmul.f32 %v273, %v273
    %v275 = vmul.f32 %v274, %v273
    %v276 = vmul.f32 %v275, 0.16666667
    %v277 = vmul.f32 %v272, 0.5
    %v278 = vsub.f32 %v277, %v271
    %v279 = vadd.f32 %v278, 0.6666667
    %v280 = vmul.f32 %v272, -0.5
    %v281 = vmul.f32 %v271, 0.5
    %v282 = vadd.f32 %v280, %v281
    %v283 = vmul.f32 %v270, 0.5
    %v284 = vadd.f32 %v282, %v283
    %v285 = vadd.f32 %v284, 0.16666667
    %v286 = vmul.f32 %v272, 0.16666667
    %vm287 = vcmp.eq.f32.partialorder %v269, 0.0
    %vm288 = vcmp.eq.f32.partialorder %v269, 1.0
    %vm289 = vcmp.eq.f32.partialorder %v269, 2.0
    %vm290 = vcmp.eq.f32.partialorder %v269, 3.0
    %v291 = vsel %vm290, %v276, 0.0
    %v292 = vsel %vm289, %v279, %v291
    %v293 = vsel %vm288, %v285, %v292
    %v294 = vsel %vm287, %v286, %v293
    %vm295 = vcmp.eq.f32.partialorder %v269, 4.0
    %v296 = vsel %vm295, %v276, 0.0
    %v297 = vsel %vm290, %v279, %v296
    %v298 = vsel %vm289, %v285, %v297
    %v299 = vsel %vm288, %v286, %v298
    %vm300 = vcmp.eq.f32.partialorder %v269, 5.0
    %v301 = vsel %vm300, %v276, 0.0
    %v302 = vsel %vm295, %v279, %v301
    %v303 = vsel %vm290, %v285, %v302
    %v304 = vsel %vm289, %v286, %v303
    %vm305 = vcmp.eq.f32.partialorder %v269, 6.0
    %v306 = vsel %vm305, %v276, 0.0
    %v307 = vsel %vm300, %v279, %v306
    %v308 = vsel %vm295, %v285, %v307
    %v309 = vsel %vm290, %v286, %v308
    %vm310 = vcmp.eq.f32.partialorder %v269, 7.0
    %v311 = vsel %vm310, %v276, 0.0
    %v312 = vsel %vm305, %v279, %v311
    %v313 = vsel %vm300, %v285, %v312
    %v314 = vsel %vm295, %v286, %v313
    %vm315 = vcmp.eq.f32.partialorder %v269, 8.0
    %v316 = vsel %vm315, %v276, 0.0
    %v317 = vsel %vm310, %v279, %v316
    %v318 = vsel %vm305, %v285, %v317
    %v319 = vsel %vm300, %v286, %v318
    %vm320 = vcmp.eq.f32.partialorder %v269, 9.0
    %v321 = vsel %vm320, %v276, 0.0
    %v322 = vsel %vm315, %v279, %v321
    %v323 = vsel %vm310, %v285, %v322
    %v324 = vsel %vm305, %v286, %v323
    %vm325 = vcmp.eq.f32.partialorder %v269, 10.0
    %v326 = vsel %vm325, %v276, 0.0
    %v327 = vsel %vm320, %v279, %v326
    %v328 = vsel %vm315, %v285, %v327
    %v329 = vsel %vm310, %v286, %v328
    %v330 = vpack.c.bf16 %v266, %v266
    %v331 = vpack.c.bf16 %v294, %v294
    %v332 = vpack.c.bf16 %v299, %v299
    %v333 = vpack.c.bf16 %v304, %v304
    %v334 = vpack.c.bf16 %v309, %v309
    %v335 = vpack.c.bf16 %v314, %v314
    %v336 = vpack.c.bf16 %v319, %v319
    %v337 = vpack.c.bf16 %v324, %v324
    %v338 = vpack.c.bf16 %v329, %v329
    %v483 = vunpack.c.l.b16 %v116
    %v484 = vunpack.c.l.b16 %v117
    %v485 = vunpack.c.l.b16 %v118
    %v486 = vunpack.c.l.b16 %v119
    %v487 = vunpack.c.l.b16 %v120
    %v488 = vunpack.c.l.b16 %v121
    %v489 = vunpack.c.l.b16 %v122
    %v490 = vunpack.c.l.b16 %v123
    %v491 = vunpack.c.l.b16 %v124
    %v492 = vunpack.c.l.b16 %v125
    %v493 = vunpack.c.l.b16 %v126
    %v494 = vunpack.c.l.b16 %v127
    %v495 = vunpack.c.l.b16 %v128
    %v496 = vunpack.c.l.b16 %v129
    %v497 = vunpack.c.l.b16 %v130
    %v498 = vunpack.c.l.b16 %v131
    %v499 = vunpack.c.l.b16 %v132
    %v500 = vunpack.c.l.b16 %v133
    %v501 = vunpack.c.l.b16 %v134
    %v502 = vunpack.c.l.b16 %v135
    %v503 = vunpack.c.l.b16 %v136
    %v504 = vunpack.c.l.b16 %v137
    %v505 = vunpack.c.l.b16 %v138
    %v506 = vunpack.c.l.b16 %v139
    %v507 = vunpack.c.l.b16 %v140
    %v508 = vunpack.c.l.b16 %v141
    %v509 = vunpack.c.l.b16 %v142
    %v510 = vunpack.c.l.b16 %v143
    %v511 = vunpack.c.l.b16 %v144
    %v512 = vunpack.c.l.b16 %v145
    %v513 = vunpack.c.l.b16 %v146
    %v514 = vunpack.c.l.b16 %v147
    %v515 = vunpack.c.l.b16 %v148
    %v516 = vunpack.c.l.b16 %v149
    %v517 = vunpack.c.l.b16 %v150
    %v518 = vunpack.c.l.b16 %v151
    %v519 = vunpack.c.l.b16 %v152
    %v520 = vunpack.c.l.b16 %v153
    %v521 = vunpack.c.l.b16 %v154
    %v522 = vunpack.c.l.b16 %v155
    %v523 = vunpack.c.l.b16 %v156
    %v524 = vunpack.c.l.b16 %v157
    %v525 = vunpack.c.l.b16 %v158
    %v526 = vunpack.c.l.b16 %v159
    %v527 = vunpack.c.l.b16 %v160
    %v528 = vunpack.c.l.b16 %v161
    %v529 = vunpack.c.l.b16 %v162
    %v530 = vunpack.c.l.b16 %v163
    %v531 = vunpack.c.l.b16 %v164
    %v532 = vunpack.c.l.b16 %v165
    %v533 = vunpack.c.l.b16 %v166
    %v534 = vunpack.c.l.b16 %v167
    %v535 = vunpack.c.l.b16 %v168
    %v536 = vunpack.c.l.b16 %v169
    %v537 = vunpack.c.l.b16 %v170
    %v538 = vunpack.c.l.b16 %v171
    %v539 = vunpack.c.l.b16 %v172
    %v540 = vunpack.c.l.b16 %v173
    %v541 = vunpack.c.l.b16 %v174
    %v542 = vunpack.c.l.b16 %v175
    %v543 = vunpack.c.l.b16 %v176
    %v544 = vunpack.c.l.b16 %v177
    %v545 = vunpack.c.l.b16 %v178
    %v546 = vunpack.c.l.b16 %v179
    %v547 = vunpack.c.l.b16 %v180
    %v548 = vunpack.c.l.b16 %v181
    %v549 = vunpack.c.l.b16 %v182
    %v550 = vunpack.c.l.b16 %v183
    %v551 = vunpack.c.l.b16 %v184
    %v552 = vunpack.c.l.b16 %v185
    %v553 = vunpack.c.l.b16 %v186
    %v554 = vunpack.c.l.b16 %v187
    %v555 = vunpack.c.l.b16 %v188
    %v556 = vunpack.c.l.b16 %v189
    %v557 = vunpack.c.l.b16 %v190
    %v558 = vunpack.c.l.b16 %v191
    %v559 = vunpack.c.l.b16 %v192
    %v560 = vunpack.c.l.b16 %v193
    %v561 = vunpack.c.l.b16 %v194
    %v562 = vunpack.c.l.b16 %v195
    %v563 = vunpack.c.l.b16 %v196
    %v564 = vunpack.c.l.b16 %v197
    %v565 = vunpack.c.l.b16 %v198
    %v566 = vunpack.c.l.b16 %v199
    %v567 = vunpack.c.l.b16 %v200
    %v568 = vunpack.c.l.b16 %v201
    %v569 = vunpack.c.l.b16 %v202
    %v570 = vunpack.c.l.b16 %v203
    %v571 = vunpack.c.l.b16 %v204
    %v572 = vunpack.c.l.b16 %v205
    %v573 = vunpack.c.l.b16 %v206
    %v574 = vunpack.c.l.b16 %v207
    %v575 = vunpack.c.l.b16 %v208
    %v576 = vunpack.c.l.b16 %v209
    %v577 = vunpack.c.l.b16 %v210
    %v578 = vunpack.c.l.b16 %v211
    %v579 = vunpack.c.l.b16 %v212
    %v580 = vunpack.c.l.b16 %v213
    %v581 = vunpack.c.l.b16 %v214
    %v582 = vunpack.c.l.b16 %v215
    %v583 = vunpack.c.l.b16 %v216
    %v584 = vunpack.c.l.b16 %v217
    %v585 = vunpack.c.l.b16 %v218
    %v586 = vunpack.c.l.b16 %v219
    %v587 = vunpack.c.l.b16 %v220
    %v588 = vunpack.c.l.b16 %v221
    %v589 = vunpack.c.l.b16 %v222
    %v590 = vunpack.c.l.b16 %v223
    %v591 = vunpack.c.l.b16 %v224
    %v592 = vunpack.c.l.b16 %v225
    %v593 = vunpack.c.l.b16 %v226
    %v594 = vunpack.c.l.b16 %v227
    %v595 = vunpack.c.l.b16 %v228
    %v596 = vunpack.c.l.b16 %v229
    %v597 = vunpack.c.l.b16 %v230
    %v598 = vunpack.c.l.b16 %v231
    %v599 = vunpack.c.l.b16 %v232
    %v600 = vunpack.c.l.b16 %v233
    %v601 = vunpack.c.l.b16 %v234
    %v602 = vunpack.c.l.b16 %v235
    %v603 = vunpack.c.l.b16 %v236
    %v604 = vunpack.c.l.b16 %v237
    %v605 = vunpack.c.l.b16 %v238
    %v606 = vunpack.c.l.b16 %v239
    %v607 = vunpack.c.l.b16 %v240
    %v608 = vunpack.c.l.b16 %v241
    %v609 = vunpack.c.l.b16 %v242
    %v610 = vunpack.c.l.b16 %v243
    %v611 = vunpack.c.l.b16 %v244
    %v612 = vunpack.c.l.b16 %v245
    %v613 = vunpack.c.l.b16 %v246
    %v614 = vunpack.c.l.b16 %v247
    %v615 = vunpack.c.l.b16 %v248
    %v616 = vunpack.c.l.b16 %v249
    %v617 = vunpack.c.l.b16 %v250
    %v618 = vunpack.c.l.b16 %v251
    %v619 = vunpack.c.l.b16 %v252
    %v620 = vunpack.c.l.b16 %v253
    %v621 = vunpack.c.l.b16 %v254
    %v622 = vunpack.c.l.b16 %v255
    %v623 = vunpack.c.l.b16 %v256
    %v624 = vunpack.c.l.b16 %v257
    %v625 = vunpack.c.l.b16 %v258
    %v626 = vunpack.c.l.b16 %v259
    %v627 = vpack.c.b16 %v484, %v483
    %v628 = vpack.c.b16 %v486, %v485
    %v629 = vpack.c.b16 %v488, %v487
    %v630 = vpack.c.b16 %v490, %v489
    %v631 = vpack.c.b16 %v492, %v491
    %v632 = vpack.c.b16 %v494, %v493
    %v633 = vpack.c.b16 %v496, %v495
    %v634 = vpack.c.b16 %v498, %v497
    %v635 = vpack.c.b16 %v500, %v499
    %v636 = vpack.c.b16 %v502, %v501
    %v637 = vpack.c.b16 %v504, %v503
    %v638 = vpack.c.b16 %v506, %v505
    %v639 = vpack.c.b16 %v508, %v507
    %v640 = vpack.c.b16 %v510, %v509
    %v641 = vpack.c.b16 %v512, %v511
    %v642 = vpack.c.b16 %v514, %v513
    %v643 = vpack.c.b16 %v516, %v515
    %v644 = vpack.c.b16 %v518, %v517
    %v645 = vpack.c.b16 %v520, %v519
    %v646 = vpack.c.b16 %v522, %v521
    %v647 = vpack.c.b16 %v524, %v523
    %v648 = vpack.c.b16 %v526, %v525
    %v649 = vpack.c.b16 %v528, %v527
    %v650 = vpack.c.b16 %v530, %v529
    %v651 = vpack.c.b16 %v532, %v531
    %v652 = vpack.c.b16 %v534, %v533
    %v653 = vpack.c.b16 %v536, %v535
    %v654 = vpack.c.b16 %v538, %v537
    %v655 = vpack.c.b16 %v540, %v539
    %v656 = vpack.c.b16 %v542, %v541
    %v657 = vpack.c.b16 %v544, %v543
    %v658 = vpack.c.b16 %v546, %v545
    %v659 = vpack.c.b16 %v548, %v547
    %v660 = vpack.c.b16 %v550, %v549
    %v661 = vpack.c.b16 %v552, %v551
    %v662 = vpack.c.b16 %v554, %v553
    %v663 = vpack.c.b16 %v556, %v555
    %v664 = vpack.c.b16 %v558, %v557
    %v665 = vpack.c.b16 %v560, %v559
    %v666 = vpack.c.b16 %v562, %v561
    %v667 = vpack.c.b16 %v564, %v563
    %v668 = vpack.c.b16 %v566, %v565
    %v669 = vpack.c.b16 %v568, %v567
    %v670 = vpack.c.b16 %v570, %v569
    %v671 = vpack.c.b16 %v572, %v571
    %v672 = vpack.c.b16 %v574, %v573
    %v673 = vpack.c.b16 %v576, %v575
    %v674 = vpack.c.b16 %v578, %v577
    %v675 = vpack.c.b16 %v580, %v579
    %v676 = vpack.c.b16 %v582, %v581
    %v677 = vpack.c.b16 %v584, %v583
    %v678 = vpack.c.b16 %v586, %v585
    %v679 = vpack.c.b16 %v588, %v587
    %v680 = vpack.c.b16 %v590, %v589
    %v681 = vpack.c.b16 %v592, %v591
    %v682 = vpack.c.b16 %v594, %v593
    %v683 = vpack.c.b16 %v596, %v595
    %v684 = vpack.c.b16 %v598, %v597
    %v685 = vpack.c.b16 %v600, %v599
    %v686 = vpack.c.b16 %v602, %v601
    %v687 = vpack.c.b16 %v604, %v603
    %v688 = vpack.c.b16 %v606, %v605
    %v689 = vpack.c.b16 %v608, %v607
    %v690 = vpack.c.b16 %v610, %v609
    %v691 = vpack.c.b16 %v612, %v611
    %v692 = vpack.c.b16 %v614, %v613
    %v693 = vpack.c.b16 %v616, %v615
    %v694 = vpack.c.b16 %v618, %v617
    %v695 = vpack.c.b16 %v620, %v619
    %v696 = vpack.c.b16 %v622, %v621
    %v697 = vpack.c.b16 %v624, %v623
    %v698 = vpack.c.b16 %v626, %v625
    %771 = vmatprep.subr.bf16.mxu0 0
    %772 = vmatpush1.bf16.msra.mxu0 %v627
    %773 = vmatprep.subr.bf16.mxu0 0
    %774 = vmatpush1.bf16.msra.mxu0 %v628
    %775 = vmatprep.subr.bf16.mxu0 0
    %776 = vmatpush1.bf16.msra.mxu0 %v629
    %777 = vmatprep.subr.bf16.mxu0 0
    %778 = vmatpush1.bf16.msra.mxu0 %v630
    %779 = vmatprep.subr.bf16.mxu0 0
    %780 = vmatpush1.bf16.msra.mxu0 %v631
    %781 = vmatprep.subr.bf16.mxu0 0
    %782 = vmatpush1.bf16.msra.mxu0 %v632
    %783 = vmatprep.subr.bf16.mxu0 0
    %784 = vmatpush1.bf16.msra.mxu0 %v633
    %785 = vmatprep.subr.bf16.mxu0 0
    %786 = vmatpush1.bf16.msra.mxu0 %v634
    %787 = vmatprep.subr.bf16.mxu0 0
    %788 = vmatpush1.bf16.msra.mxu0 %v635
    %789 = vmatprep.subr.bf16.mxu0 0
    %790 = vmatpush1.bf16.msra.mxu0 %v636
    %791 = vmatprep.subr.bf16.mxu0 0
    %792 = vmatpush1.bf16.msra.mxu0 %v637
    %793 = vmatprep.subr.bf16.mxu0 0
    %794 = vmatpush1.bf16.msra.mxu0 %v638
    %795 = vmatprep.subr.bf16.mxu0 0
    %796 = vmatpush1.bf16.msra.mxu0 %v639
    %797 = vmatprep.subr.bf16.mxu0 0
    %798 = vmatpush1.bf16.msra.mxu0 %v640
    %799 = vmatprep.subr.bf16.mxu0 0
    %800 = vmatpush1.bf16.msra.mxu0 %v641
    %801 = vmatprep.subr.bf16.mxu0 0
    %802 = vmatpush1.bf16.msra.mxu0 %v642
    %803 = vmatprep.mubr.bf16.mxu0 %v331
    %804 = vmatmul.mubr.bf16.gmra.mrb[0].mxu0 %v330
    %v805 = vpop.f32.mrb[0].mxu0
    %v806 = vadd.f32 0.0, %v805
    %v807 = vpop.f32.mrb[0].mxu0
    %v808 = vpop.f32.mrb[0].mxu0
    %v809 = vpop.f32.mrb[0].mxu0
    %810 = vdwg.mxu0
    %811 = vmatprep.subr.bf16.mxu0 0
    %812 = vmatpush1.bf16.msra.mxu0 %v643
    %813 = vmatprep.subr.bf16.mxu0 0
    %814 = vmatpush1.bf16.msra.mxu0 %v644
    %815 = vmatprep.subr.bf16.mxu0 0
    %816 = vmatpush1.bf16.msra.mxu0 %v645
    %817 = vmatprep.subr.bf16.mxu0 0
    %818 = vmatpush1.bf16.msra.mxu0 %v646
    %819 = vmatprep.subr.bf16.mxu0 0
    %820 = vmatpush1.bf16.msra.mxu0 %v647
    %821 = vmatprep.subr.bf16.mxu0 0
    %822 = vmatpush1.bf16.msra.mxu0 %v648
    %823 = vmatprep.subr.bf16.mxu0 0
    %824 = vmatpush1.bf16.msra.mxu0 %v649
    %825 = vmatprep.subr.bf16.mxu0 0
    %826 = vmatpush1.bf16.msra.mxu0 %v650
    %827 = vmatprep.subr.bf16.mxu0 0
    %828 = vmatpush1.bf16.msra.mxu0 %v651
    %829 = vmatprep.subr.bf16.mxu0 0
    %830 = vmatpush1.bf16.msra.mxu0 %v652
    %831 = vmatprep.subr.bf16.mxu0 0
    %832 = vmatpush1.bf16.msra.mxu0 %v653
    %833 = vmatprep.subr.bf16.mxu0 0
    %834 = vmatpush1.bf16.msra.mxu0 %v654
    %835 = vmatprep.subr.bf16.mxu0 0
    %836 = vmatpush1.bf16.msra.mxu0 %v655
    %837 = vmatprep.subr.bf16.mxu0 0
    %838 = vmatpush1.bf16.msra.mxu0 %v656
    %839 = vmatprep.subr.bf16.mxu0 0
    %840 = vmatpush1.bf16.msra.mxu0 %v657
    %841 = vmatprep.subr.bf16.mxu0 0
    %842 = vmatpush1.bf16.msra.mxu0 %v658
    %843 = vmatprep.mubr.bf16.mxu0 %v333
    %844 = vmatmul.mubr.bf16.gmra.mrb[0].mxu0 %v332
    %v845 = vpop.f32.mrb[0].mxu0
    %v846 = vadd.f32 %v806, %v845
    %v847 = vpop.f32.mrb[0].mxu0
    %v848 = vpop.f32.mrb[0].mxu0
    %v849 = vpop.f32.mrb[0].mxu0
    %850 = vdwg.mxu0
    %851 = vmatprep.subr.bf16.mxu0 0
    %852 = vmatpush1.bf16.msra.mxu0 %v659
    %853 = vmatprep.subr.bf16.mxu0 0
    %854 = vmatpush1.bf16.msra.mxu0 %v660
    %855 = vmatprep.subr.bf16.mxu0 0
    %856 = vmatpush1.bf16.msra.mxu0 %v661
    %857 = vmatprep.subr.bf16.mxu0 0
    %858 = vmatpush1.bf16.msra.mxu0 %v662
    %859 = vmatprep.subr.bf16.mxu0 0
    %860 = vmatpush1.bf16.msra.mxu0 %v663
    %861 = vmatprep.subr.bf16.mxu0 0
    %862 = vmatpush1.bf16.msra.mxu0 %v664
    %863 = vmatprep.subr.bf16.mxu0 0
    %864 = vmatpush1.bf16.msra.mxu0 %v665
    %865 = vmatprep.subr.bf16.mxu0 0
    %866 = vmatpush1.bf16.msra.mxu0 %v666
    %867 = vmatprep.subr.bf16.mxu0 0
    %868 = vmatpush1.bf16.msra.mxu0 %v667
    %869 = vmatprep.subr.bf16.mxu0 0
    %870 = vmatpush1.bf16.msra.mxu0 %v668
    %871 = vmatprep.subr.bf16.mxu0 0
    %872 = vmatpush1.bf16.msra.mxu0 %v669
    %873 = vmatprep.subr.bf16.mxu0 0
    %874 = vmatpush1.bf16.msra.mxu0 %v670
    %875 = vmatprep.subr.bf16.mxu0 0
    %876 = vmatpush1.bf16.msra.mxu0 %v671
    %877 = vmatprep.subr.bf16.mxu0 0
    %878 = vmatpush1.bf16.msra.mxu0 %v672
    %879 = vmatprep.subr.bf16.mxu0 0
    %880 = vmatpush1.bf16.msra.mxu0 %v673
    %881 = vmatprep.subr.bf16.mxu0 0
    %882 = vmatpush1.bf16.msra.mxu0 %v674
    %883 = vmatprep.mubr.bf16.mxu0 %v335
    %884 = vmatmul.mubr.bf16.gmra.mrb[0].mxu0 %v334
    %v885 = vpop.f32.mrb[0].mxu0
    %v886 = vadd.f32 %v846, %v885
    %v887 = vpop.f32.mrb[0].mxu0
    %v888 = vpop.f32.mrb[0].mxu0
    %v889 = vpop.f32.mrb[0].mxu0
    %890 = vdwg.mxu0
    %891 = vmatprep.subr.bf16.mxu0 0
    %892 = vmatpush1.bf16.msra.mxu0 %v675
    %893 = vmatprep.subr.bf16.mxu0 0
    %894 = vmatpush1.bf16.msra.mxu0 %v676
    %895 = vmatprep.subr.bf16.mxu0 0
    %896 = vmatpush1.bf16.msra.mxu0 %v677
    %897 = vmatprep.subr.bf16.mxu0 0
    %898 = vmatpush1.bf16.msra.mxu0 %v678
    %899 = vmatprep.subr.bf16.mxu0 0
    %900 = vmatpush1.bf16.msra.mxu0 %v679
    %901 = vmatprep.subr.bf16.mxu0 0
    %902 = vmatpush1.bf16.msra.mxu0 %v680
    %903 = vmatprep.subr.bf16.mxu0 0
    %904 = vmatpush1.bf16.msra.mxu0 %v681
    %905 = vmatprep.subr.bf16.mxu0 0
    %906 = vmatpush1.bf16.msra.mxu0 %v682
    %907 = vmatprep.subr.bf16.mxu0 0
    %908 = vmatpush1.bf16.msra.mxu0 %v683
    %909 = vmatprep.subr.bf16.mxu0 0
    %910 = vmatpush1.bf16.msra.mxu0 %v684
    %911 = vmatprep.subr.bf16.mxu0 0
    %912 = vmatpush1.bf16.msra.mxu0 %v685
    %913 = vmatprep.subr.bf16.mxu0 0
    %914 = vmatpush1.bf16.msra.mxu0 %v686
    %915 = vmatprep.subr.bf16.mxu0 0
    %916 = vmatpush1.bf16.msra.mxu0 %v687
    %917 = vmatprep.subr.bf16.mxu0 0
    %918 = vmatpush1.bf16.msra.mxu0 %v688
    %919 = vmatprep.subr.bf16.mxu0 0
    %920 = vmatpush1.bf16.msra.mxu0 %v689
    %921 = vmatprep.subr.bf16.mxu0 0
    %922 = vmatpush1.bf16.msra.mxu0 %v690
    %923 = vmatprep.mubr.bf16.mxu0 %v337
    %924 = vmatmul.mubr.bf16.gmra.mrb[0].mxu0 %v336
    %v925 = vpop.f32.mrb[0].mxu0
    %v926 = vadd.f32 %v886, %v925
    %v927 = vpop.f32.mrb[0].mxu0
    %v928 = vpop.f32.mrb[0].mxu0
    %v929 = vpop.f32.mrb[0].mxu0
    %930 = vdwg.mxu0
    %931 = vmatprep.subr.bf16.mxu0 0
    %932 = vmatpush1.bf16.msra.mxu0 %v691
    %933 = vmatprep.subr.bf16.mxu0 0
    %934 = vmatpush1.bf16.msra.mxu0 %v692
    %935 = vmatprep.subr.bf16.mxu0 0
    %936 = vmatpush1.bf16.msra.mxu0 %v693
    %937 = vmatprep.subr.bf16.mxu0 0
    %938 = vmatpush1.bf16.msra.mxu0 %v694
    %939 = vmatprep.subr.bf16.mxu0 0
    %940 = vmatpush1.bf16.msra.mxu0 %v695
    %941 = vmatprep.subr.bf16.mxu0 0
    %942 = vmatpush1.bf16.msra.mxu0 %v696
    %943 = vmatprep.subr.bf16.mxu0 0
    %944 = vmatpush1.bf16.msra.mxu0 %v697
    %945 = vmatprep.subr.bf16.mxu0 0
    %946 = vmatpush1.bf16.msra.mxu0 %v698
    %947 = vmatprep.subr.bf16.mxu0 0
    %948 = vmatpush1.bf16.msra.mxu0 0
    %949 = vmatprep.subr.bf16.mxu0 0
    %950 = vmatpush1.bf16.msra.mxu0 0
    %951 = vmatprep.subr.bf16.mxu0 0
    %952 = vmatpush1.bf16.msra.mxu0 0
    %953 = vmatprep.subr.bf16.mxu0 0
    %954 = vmatpush1.bf16.msra.mxu0 0
    %955 = vmatprep.subr.bf16.mxu0 0
    %956 = vmatpush1.bf16.msra.mxu0 0
    %957 = vmatprep.subr.bf16.mxu0 0
    %958 = vmatpush1.bf16.msra.mxu0 0
    %959 = vmatprep.subr.bf16.mxu0 0
    %960 = vmatpush1.bf16.msra.mxu0 0
    %961 = vmatprep.subr.bf16.mxu0 0
    %962 = vmatpush1.bf16.msra.mxu0 0
    %963 = vmatprep.mubr.bf16.mxu0 0
    %964 = vmatmul.mubr.bf16.gmra.mrb[0].mxu0 %v338
    %v965 = vpop.f32.mrb[0].mxu0
    %v966 = vadd.f32 %v926, %v965
    %v967 = vpop.f32.mrb[0].mxu0
    %v968 = vpop.f32.mrb[0].mxu0
    %v969 = vpop.f32.mrb[0].mxu0
    %970 = vdwg.mxu0
    %v971 = vld [vmem:[#allocation7] sm:$0xff]
    %v972 = vld [vmem:[#allocation7 + $0x8] sm:$0xff]
    %v973 = vld [vmem:[#allocation7 + $0x10] sm:$0xff]
    %v974 = vld [vmem:[#allocation7 + $0x18] sm:$0xff]
    %v975 = vld [vmem:[#allocation7 + $0x20] sm:$0xff]
    %v976 = vld [vmem:[#allocation7 + $0x28] sm:$0xff]
    %v977 = vld [vmem:[#allocation7 + $0x30] sm:$0xff]
    %v978 = vld [vmem:[#allocation7 + $0x38] sm:$0xff]
    %v979 = vld [vmem:[#allocation7 + $0x40] sm:$0xff]
    %v980 = vld [vmem:[#allocation7 + $0x48] sm:$0xff]
    %v981 = vld [vmem:[#allocation7 + $0x50] sm:$0xff]
    %v982 = vld [vmem:[#allocation7 + $0x58] sm:$0xff]
    %v983 = vld [vmem:[#allocation7 + $0x60] sm:$0xff]
    %v984 = vld [vmem:[#allocation7 + $0x68] sm:$0xff]
    %v985 = vld [vmem:[#allocation7 + $0x70] sm:$0xff]
    %v986 = vld [vmem:[#allocation7 + $0x78] sm:$0xff]
    %v987 = vld [vmem:[#allocation7 + $0x80] sm:$0xff]
    %v988 = vld [vmem:[#allocation7 + $0x88] sm:$0xff]
    %v989 = vld [vmem:[#allocation7 + $0x90] sm:$0xff]
    %v990 = vld [vmem:[#allocation7 + $0x98] sm:$0xff]
    %v991 = vld [vmem:[#allocation7 + $0xa0] sm:$0xff]
    %v992 = vld [vmem:[#allocation7 + $0xa8] sm:$0xff]
    %v993 = vld [vmem:[#allocation7 + $0xb0] sm:$0xff]
    %v994 = vld [vmem:[#allocation7 + $0xb8] sm:$0xff]
    %v995 = vld [vmem:[#allocation7 + $0xc0] sm:$0xff]
    %v996 = vld [vmem:[#allocation7 + $0xc8] sm:$0xff]
    %v997 = vld [vmem:[#allocation7 + $0xd0] sm:$0xff]
    %v998 = vld [vmem:[#allocation7 + $0xd8] sm:$0xff]
    %v999 = vld [vmem:[#allocation7 + $0xe0] sm:$0xff]
    %v1000 = vld [vmem:[#allocation7 + $0xe8] sm:$0xff]
    %v1001 = vld [vmem:[#allocation7 + $0xf0] sm:$0xff]
    %v1002 = vld [vmem:[#allocation7 + $0xf8] sm:$0xff]
    %v1003 = vld [vmem:[#allocation7 + $0x100] sm:$0xff]
    %v1004 = vld [vmem:[#allocation7 + $0x108] sm:$0xff]
    %v1005 = vld [vmem:[#allocation7 + $0x110] sm:$0xff]
    %v1006 = vld [vmem:[#allocation7 + $0x118] sm:$0xff]
    %v1007 = vld [vmem:[#allocation7 + $0x120] sm:$0xff]
    %v1008 = vld [vmem:[#allocation7 + $0x128] sm:$0xff]
    %v1009 = vld [vmem:[#allocation7 + $0x130] sm:$0xff]
    %v1010 = vld [vmem:[#allocation7 + $0x138] sm:$0xff]
    %v1011 = vld [vmem:[#allocation7 + $0x140] sm:$0xff]
    %v1012 = vld [vmem:[#allocation7 + $0x148] sm:$0xff]
    %v1013 = vld [vmem:[#allocation7 + $0x150] sm:$0xff]
    %v1014 = vld [vmem:[#allocation7 + $0x158] sm:$0xff]
    %v1015 = vld [vmem:[#allocation7 + $0x160] sm:$0xff]
    %v1016 = vld [vmem:[#allocation7 + $0x168] sm:$0xff]
    %v1017 = vld [vmem:[#allocation7 + $0x170] sm:$0xff]
    %v1018 = vld [vmem:[#allocation7 + $0x178] sm:$0xff]
    %v1019 = vld [vmem:[#allocation7 + $0x180] sm:$0xff]
    %v1020 = vld [vmem:[#allocation7 + $0x188] sm:$0xff]
    %v1021 = vld [vmem:[#allocation7 + $0x190] sm:$0xff]
    %v1022 = vld [vmem:[#allocation7 + $0x198] sm:$0xff]
    %v1023 = vld [vmem:[#allocation7 + $0x1a0] sm:$0xff]
    %v1024 = vld [vmem:[#allocation7 + $0x1a8] sm:$0xff]
    %v1025 = vld [vmem:[#allocation7 + $0x1b0] sm:$0xff]
    %v1026 = vld [vmem:[#allocation7 + $0x1b8] sm:$0xff]
    %v1027 = vld [vmem:[#allocation7 + $0x1c0] sm:$0xff]
    %v1028 = vld [vmem:[#allocation7 + $0x1c8] sm:$0xff]
    %v1029 = vld [vmem:[#allocation7 + $0x1d0] sm:$0xff]
    %v1030 = vld [vmem:[#allocation7 + $0x1d8] sm:$0xff]
    %v1031 = vld [vmem:[#allocation7 + $0x1e0] sm:$0xff]
    %v1032 = vld [vmem:[#allocation7 + $0x1e8] sm:$0xff]
    %v1033 = vld [vmem:[#allocation7 + $0x1f0] sm:$0xff]
    %v1034 = vld [vmem:[#allocation7 + $0x1f8] sm:$0xff]
    %v1035 = vld [vmem:[#allocation7 + $0x200] sm:$0xff]
    %v1036 = vld [vmem:[#allocation7 + $0x208] sm:$0xff]
    %v1037 = vld [vmem:[#allocation7 + $0x210] sm:$0xff]
    %v1038 = vld [vmem:[#allocation7 + $0x218] sm:$0xff]
    %v1039 = vld [vmem:[#allocation7 + $0x220] sm:$0xff]
    %v1040 = vld [vmem:[#allocation7 + $0x228] sm:$0xff]
    %v1041 = vld [vmem:[#allocation7 + $0x230] sm:$0xff]
    %v1042 = vld [vmem:[#allocation7 + $0x238] sm:$0xff]
    %v1043 = vld [vmem:[#allocation7 + $0x240] sm:$0xff]
    %v1044 = vld [vmem:[#allocation7 + $0x248] sm:$0xff]
    %v1045 = vld [vmem:[#allocation7 + $0x250] sm:$0xff]
    %v1046 = vld [vmem:[#allocation7 + $0x258] sm:$0xff]
    %v1047 = vld [vmem:[#allocation7 + $0x260] sm:$0xff]
    %v1048 = vld [vmem:[#allocation7 + $0x268] sm:$0xff]
    %v1049 = vld [vmem:[#allocation7 + $0x270] sm:$0xff]
    %v1050 = vld [vmem:[#allocation7 + $0x278] sm:$0xff]
    %v1051 = vld [vmem:[#allocation7 + $0x280] sm:$0xff]
    %v1052 = vld [vmem:[#allocation7 + $0x288] sm:$0xff]
    %v1053 = vld [vmem:[#allocation7 + $0x290] sm:$0xff]
    %v1054 = vld [vmem:[#allocation7 + $0x298] sm:$0xff]
    %v1055 = vld [vmem:[#allocation7 + $0x2a0] sm:$0xff]
    %v1056 = vld [vmem:[#allocation7 + $0x2a8] sm:$0xff]
    %v1057 = vld [vmem:[#allocation7 + $0x2b0] sm:$0xff]
    %v1058 = vld [vmem:[#allocation7 + $0x2b8] sm:$0xff]
    %v1059 = vld [vmem:[#allocation7 + $0x2c0] sm:$0xff]
    %v1060 = vld [vmem:[#allocation7 + $0x2c8] sm:$0xff]
    %v1061 = vld [vmem:[#allocation7 + $0x2d0] sm:$0xff]
    %v1062 = vld [vmem:[#allocation7 + $0x2d8] sm:$0xff]
    %v1063 = vld [vmem:[#allocation7 + $0x2e0] sm:$0xff]
    %v1064 = vld [vmem:[#allocation7 + $0x2e8] sm:$0xff]
    %v1065 = vld [vmem:[#allocation7 + $0x2f0] sm:$0xff]
    %v1066 = vld [vmem:[#allocation7 + $0x2f8] sm:$0xff]
    %v1067 = vld [vmem:[#allocation7 + $0x300] sm:$0xff]
    %v1068 = vld [vmem:[#allocation7 + $0x308] sm:$0xff]
    %v1069 = vld [vmem:[#allocation7 + $0x310] sm:$0xff]
    %v1070 = vld [vmem:[#allocation7 + $0x318] sm:$0xff]
    %v1071 = vld [vmem:[#allocation7 + $0x320] sm:$0xff]
    %v1072 = vld [vmem:[#allocation7 + $0x328] sm:$0xff]
    %v1073 = vld [vmem:[#allocation7 + $0x330] sm:$0xff]
    %v1074 = vld [vmem:[#allocation7 + $0x338] sm:$0xff]
    %v1075 = vld [vmem:[#allocation7 + $0x340] sm:$0xff]
    %v1076 = vld [vmem:[#allocation7 + $0x348] sm:$0xff]
    %v1077 = vld [vmem:[#allocation7 + $0x350] sm:$0xff]
    %v1078 = vld [vmem:[#allocation7 + $0x358] sm:$0xff]
    %v1079 = vld [vmem:[#allocation7 + $0x360] sm:$0xff]
    %v1080 = vld [vmem:[#allocation7 + $0x368] sm:$0xff]
    %v1081 = vld [vmem:[#allocation7 + $0x370] sm:$0xff]
    %v1082 = vld [vmem:[#allocation7 + $0x378] sm:$0xff]
    %v1083 = vld [vmem:[#allocation7 + $0x380] sm:$0xff]
    %v1084 = vld [vmem:[#allocation7 + $0x388] sm:$0xff]
    %v1085 = vld [vmem:[#allocation7 + $0x390] sm:$0xff]
    %v1086 = vld [vmem:[#allocation7 + $0x398] sm:$0xff]
    %v1087 = vld [vmem:[#allocation7 + $0x3a0] sm:$0xff]
    %v1088 = vld [vmem:[#allocation7 + $0x3a8] sm:$0xff]
    %v1089 = vld [vmem:[#allocation7 + $0x3b0] sm:$0xff]
    %v1090 = vld [vmem:[#allocation7 + $0x3b8] sm:$0xff]
    %v1091 = vld [vmem:[#allocation7 + $0x3c0] sm:$0xff]
    %v1092 = vld [vmem:[#allocation7 + $0x3c8] sm:$0xff]
    %v1093 = vld [vmem:[#allocation7 + $0x3d0] sm:$0xff]
    %v1094 = vld [vmem:[#allocation7 + $0x3d8] sm:$0xff]
    %v1095 = vld [vmem:[#allocation7 + $0x3e0] sm:$0xff]
    %v1096 = vld [vmem:[#allocation7 + $0x3e8] sm:$0xff]
    %v1097 = vld [vmem:[#allocation7 + $0x3f0] sm:$0xff]
    %v1098 = vld [vmem:[#allocation7 + $0x3f8] sm:$0xff]
    %v1099 = vld [vmem:[#allocation7 + $0x400] sm:$0xff]
    %v1100 = vld [vmem:[#allocation7 + $0x408] sm:$0xff]
    %v1101 = vld [vmem:[#allocation7 + $0x410] sm:$0xff]
    %v1102 = vld [vmem:[#allocation7 + $0x418] sm:$0xff]
    %v1103 = vld [vmem:[#allocation7 + $0x420] sm:$0xff]
    %v1104 = vld [vmem:[#allocation7 + $0x428] sm:$0xff]
    %v1105 = vld [vmem:[#allocation7 + $0x430] sm:$0xff]
    %v1106 = vld [vmem:[#allocation7 + $0x438] sm:$0xff]
    %v1107 = vld [vmem:[#allocation7 + $0x440] sm:$0xff]
    %v1108 = vld [vmem:[#allocation7 + $0x448] sm:$0xff]
    %v1109 = vld [vmem:[#allocation7 + $0x450] sm:$0xff]
    %v1110 = vld [vmem:[#allocation7 + $0x458] sm:$0xff]
    %v1111 = vld [vmem:[#allocation7 + $0x460] sm:$0xff]
    %v1112 = vld [vmem:[#allocation7 + $0x468] sm:$0xff]
    %v1113 = vld [vmem:[#allocation7 + $0x470] sm:$0xff]
    %v1114 = vld [vmem:[#allocation7 + $0x478] sm:$0xff]
    %v1115 = vsub.f32 0.0, %v966
    %v1116 = vmul.f32 %v1115, 1.442695
    %v1117 = vpow.pop %v1116
    %v1118 = vadd.f32 %v1117, 1.0
    %v1119 = vrcp.pop %v1118
    %v1120 = vmul.f32 1.0, %v1119
    %v1121 = vmul.f32 %v966, %v1120
    %v1122 = vsub.f32 %v966, -2.2
    %v1123 = vmul.f32 %v1122, 2.5
    %v1124 = vfloor.f32 %v1123
    %v1125 = vsub.f32 %v1123, %v1124
    %v1126 = vmul.f32 %v1125, %v1125
    %v1127 = vmul.f32 %v1126, %v1125
    %v1128 = vsub.f32 1.0, %v1125
    %v1129 = vmul.f32 %v1128, %v1128
    %v1130 = vmul.f32 %v1129, %v1128
    %v1131 = vmul.f32 %v1130, 0.16666667
    %v1132 = vmul.f32 %v1127, 0.5
    %v1133 = vsub.f32 %v1132, %v1126
    %v1134 = vadd.f32 %v1133, 0.6666667
    %v1135 = vmul.f32 %v1127, -0.5
    %v1136 = vmul.f32 %v1126, 0.5
    %v1137 = vadd.f32 %v1135, %v1136
    %v1138 = vmul.f32 %v1125, 0.5
    %v1139 = vadd.f32 %v1137, %v1138
    %v1140 = vadd.f32 %v1139, 0.16666667
    %v1141 = vmul.f32 %v1127, 0.16666667
    %vm1142 = vcmp.eq.f32.partialorder %v1124, 0.0
    %vm1143 = vcmp.eq.f32.partialorder %v1124, 1.0
    %vm1144 = vcmp.eq.f32.partialorder %v1124, 2.0
    %vm1145 = vcmp.eq.f32.partialorder %v1124, 3.0
    %v1146 = vsel %vm1145, %v1131, 0.0
    %v1147 = vsel %vm1144, %v1134, %v1146
    %v1148 = vsel %vm1143, %v1140, %v1147
    %v1149 = vsel %vm1142, %v1141, %v1148
    %vm1150 = vcmp.eq.f32.partialorder %v1124, 4.0
    %v1151 = vsel %vm1150, %v1131, 0.0
    %v1152 = vsel %vm1145, %v1134, %v1151
    %v1153 = vsel %vm1144, %v1140, %v1152
    %v1154 = vsel %vm1143, %v1141, %v1153
    %vm1155 = vcmp.eq.f32.partialorder %v1124, 5.0
    %v1156 = vsel %vm1155, %v1131, 0.0
    %v1157 = vsel %vm1150, %v1134, %v1156
    %v1158 = vsel %vm1145, %v1140, %v1157
    %v1159 = vsel %vm1144, %v1141, %v1158
    %vm1160 = vcmp.eq.f32.partialorder %v1124, 6.0
    %v1161 = vsel %vm1160, %v1131, 0.0
    %v1162 = vsel %vm1155, %v1134, %v1161
    %v1163 = vsel %vm1150, %v1140, %v1162
    %v1164 = vsel %vm1145, %v1141, %v1163
    %vm1165 = vcmp.eq.f32.partialorder %v1124, 7.0
    %v1166 = vsel %vm1165, %v1131, 0.0
    %v1167 = vsel %vm1160, %v1134, %v1166
    %v1168 = vsel %vm1155, %v1140, %v1167
    %v1169 = vsel %vm1150, %v1141, %v1168
    %vm1170 = vcmp.eq.f32.partialorder %v1124, 8.0
    %v1171 = vsel %vm1170, %v1131, 0.0
    %v1172 = vsel %vm1165, %v1134, %v1171
    %v1173 = vsel %vm1160, %v1140, %v1172
    %v1174 = vsel %vm1155, %v1141, %v1173
    %vm1175 = vcmp.eq.f32.partialorder %v1124, 9.0
    %v1176 = vsel %vm1175, %v1131, 0.0
    %v1177 = vsel %vm1170, %v1134, %v1176
    %v1178 = vsel %vm1165, %v1140, %v1177
    %v1179 = vsel %vm1160, %v1141, %v1178
    %vm1180 = vcmp.eq.f32.partialorder %v1124, 10.0
    %v1181 = vsel %vm1180, %v1131, 0.0
    %v1182 = vsel %vm1175, %v1134, %v1181
    %v1183 = vsel %vm1170, %v1140, %v1182
    %v1184 = vsel %vm1165, %v1141, %v1183
    %v1185 = vpack.c.bf16 %v1121, %v1121
    %v1186 = vpack.c.bf16 %v1149, %v1149
    %v1187 = vpack.c.bf16 %v1154, %v1154
    %v1188 = vpack.c.bf16 %v1159, %v1159
    %v1189 = vpack.c.bf16 %v1164, %v1164
    %v1190 = vpack.c.bf16 %v1169, %v1169
    %v1191 = vpack.c.bf16 %v1174, %v1174
    %v1192 = vpack.c.bf16 %v1179, %v1179
    %v1193 = vpack.c.bf16 %v1184, %v1184
    %v1338 = vunpack.c.l.b16 %v971
    %v1339 = vunpack.c.h.b16 %v971
    %v1340 = vunpack.c.l.b16 %v972
    %v1341 = vunpack.c.h.b16 %v972
    %v1342 = vunpack.c.l.b16 %v973
    %v1343 = vunpack.c.h.b16 %v973
    %v1344 = vunpack.c.l.b16 %v974
    %v1345 = vunpack.c.h.b16 %v974
    %v1346 = vunpack.c.l.b16 %v975
    %v1347 = vunpack.c.h.b16 %v975
    %v1348 = vunpack.c.l.b16 %v976
    %v1349 = vunpack.c.h.b16 %v976
    %v1350 = vunpack.c.l.b16 %v977
    %v1351 = vunpack.c.h.b16 %v977
    %v1352 = vunpack.c.l.b16 %v978
    %v1353 = vunpack.c.h.b16 %v978
    %v1354 = vunpack.c.l.b16 %v979
    %v1355 = vunpack.c.h.b16 %v979
    %v1356 = vunpack.c.l.b16 %v980
    %v1357 = vunpack.c.h.b16 %v980
    %v1358 = vunpack.c.l.b16 %v981
    %v1359 = vunpack.c.h.b16 %v981
    %v1360 = vunpack.c.l.b16 %v982
    %v1361 = vunpack.c.h.b16 %v982
    %v1362 = vunpack.c.l.b16 %v983
    %v1363 = vunpack.c.h.b16 %v983
    %v1364 = vunpack.c.l.b16 %v984
    %v1365 = vunpack.c.h.b16 %v984
    %v1366 = vunpack.c.l.b16 %v985
    %v1367 = vunpack.c.h.b16 %v985
    %v1368 = vunpack.c.l.b16 %v986
    %v1369 = vunpack.c.h.b16 %v986
    %v1370 = vunpack.c.l.b16 %v987
    %v1371 = vunpack.c.h.b16 %v987
    %v1372 = vunpack.c.l.b16 %v988
    %v1373 = vunpack.c.h.b16 %v988
    %v1374 = vunpack.c.l.b16 %v989
    %v1375 = vunpack.c.h.b16 %v989
    %v1376 = vunpack.c.l.b16 %v990
    %v1377 = vunpack.c.h.b16 %v990
    %v1378 = vunpack.c.l.b16 %v991
    %v1379 = vunpack.c.h.b16 %v991
    %v1380 = vunpack.c.l.b16 %v992
    %v1381 = vunpack.c.h.b16 %v992
    %v1382 = vunpack.c.l.b16 %v993
    %v1383 = vunpack.c.h.b16 %v993
    %v1384 = vunpack.c.l.b16 %v994
    %v1385 = vunpack.c.h.b16 %v994
    %v1386 = vunpack.c.l.b16 %v995
    %v1387 = vunpack.c.h.b16 %v995
    %v1388 = vunpack.c.l.b16 %v996
    %v1389 = vunpack.c.h.b16 %v996
    %v1390 = vunpack.c.l.b16 %v997
    %v1391 = vunpack.c.h.b16 %v997
    %v1392 = vunpack.c.l.b16 %v998
    %v1393 = vunpack.c.h.b16 %v998
    %v1394 = vunpack.c.l.b16 %v999
    %v1395 = vunpack.c.h.b16 %v999
    %v1396 = vunpack.c.l.b16 %v1000
    %v1397 = vunpack.c.h.b16 %v1000
    %v1398 = vunpack.c.l.b16 %v1001
    %v1399 = vunpack.c.h.b16 %v1001
    %v1400 = vunpack.c.l.b16 %v1002
    %v1401 = vunpack.c.h.b16 %v1002
    %v1402 = vunpack.c.l.b16 %v1003
    %v1403 = vunpack.c.h.b16 %v1003
    %v1404 = vunpack.c.l.b16 %v1004
    %v1405 = vunpack.c.h.b16 %v1004
    %v1406 = vunpack.c.l.b16 %v1005
    %v1407 = vunpack.c.h.b16 %v1005
    %v1408 = vunpack.c.l.b16 %v1006
    %v1409 = vunpack.c.h.b16 %v1006
    %v1410 = vunpack.c.l.b16 %v1007
    %v1411 = vunpack.c.h.b16 %v1007
    %v1412 = vunpack.c.l.b16 %v1008
    %v1413 = vunpack.c.h.b16 %v1008
    %v1414 = vunpack.c.l.b16 %v1009
    %v1415 = vunpack.c.h.b16 %v1009
    %v1416 = vunpack.c.l.b16 %v1010
    %v1417 = vunpack.c.h.b16 %v1010
    %v1418 = vunpack.c.l.b16 %v1011
    %v1419 = vunpack.c.h.b16 %v1011
    %v1420 = vunpack.c.l.b16 %v1012
    %v1421 = vunpack.c.h.b16 %v1012
    %v1422 = vunpack.c.l.b16 %v1013
    %v1423 = vunpack.c.h.b16 %v1013
    %v1424 = vunpack.c.l.b16 %v1014
    %v1425 = vunpack.c.h.b16 %v1014
    %v1426 = vunpack.c.l.b16 %v1015
    %v1427 = vunpack.c.h.b16 %v1015
    %v1428 = vunpack.c.l.b16 %v1016
    %v1429 = vunpack.c.h.b16 %v1016
    %v1430 = vunpack.c.l.b16 %v1017
    %v1431 = vunpack.c.h.b16 %v1017
    %v1432 = vunpack.c.l.b16 %v1018
    %v1433 = vunpack.c.h.b16 %v1018
    %v1434 = vunpack.c.l.b16 %v1019
    %v1435 = vunpack.c.h.b16 %v1019
    %v1436 = vunpack.c.l.b16 %v1020
    %v1437 = vunpack.c.h.b16 %v1020
    %v1438 = vunpack.c.l.b16 %v1021
    %v1439 = vunpack.c.h.b16 %v1021
    %v1440 = vunpack.c.l.b16 %v1022
    %v1441 = vunpack.c.h.b16 %v1022
    %v1442 = vunpack.c.l.b16 %v1023
    %v1443 = vunpack.c.h.b16 %v1023
    %v1444 = vunpack.c.l.b16 %v1024
    %v1445 = vunpack.c.h.b16 %v1024
    %v1446 = vunpack.c.l.b16 %v1025
    %v1447 = vunpack.c.h.b16 %v1025
    %v1448 = vunpack.c.l.b16 %v1026
    %v1449 = vunpack.c.h.b16 %v1026
    %v1450 = vunpack.c.l.b16 %v1027
    %v1451 = vunpack.c.h.b16 %v1027
    %v1452 = vunpack.c.l.b16 %v1028
    %v1453 = vunpack.c.h.b16 %v1028
    %v1454 = vunpack.c.l.b16 %v1029
    %v1455 = vunpack.c.h.b16 %v1029
    %v1456 = vunpack.c.l.b16 %v1030
    %v1457 = vunpack.c.h.b16 %v1030
    %v1458 = vunpack.c.l.b16 %v1031
    %v1459 = vunpack.c.h.b16 %v1031
    %v1460 = vunpack.c.l.b16 %v1032
    %v1461 = vunpack.c.h.b16 %v1032
    %v1462 = vunpack.c.l.b16 %v1033
    %v1463 = vunpack.c.h.b16 %v1033
    %v1464 = vunpack.c.l.b16 %v1034
    %v1465 = vunpack.c.h.b16 %v1034
    %v1466 = vunpack.c.l.b16 %v1035
    %v1467 = vunpack.c.h.b16 %v1035
    %v1468 = vunpack.c.l.b16 %v1036
    %v1469 = vunpack.c.h.b16 %v1036
    %v1470 = vunpack.c.l.b16 %v1037
    %v1471 = vunpack.c.h.b16 %v1037
    %v1472 = vunpack.c.l.b16 %v1038
    %v1473 = vunpack.c.h.b16 %v1038
    %v1474 = vunpack.c.l.b16 %v1039
    %v1475 = vunpack.c.h.b16 %v1039
    %v1476 = vunpack.c.l.b16 %v1040
    %v1477 = vunpack.c.h.b16 %v1040
    %v1478 = vunpack.c.l.b16 %v1041
    %v1479 = vunpack.c.h.b16 %v1041
    %v1480 = vunpack.c.l.b16 %v1042
    %v1481 = vunpack.c.h.b16 %v1042
    %v1482 = vunpack.c.l.b16 %v1043
    %v1483 = vunpack.c.h.b16 %v1043
    %v1484 = vunpack.c.l.b16 %v1044
    %v1485 = vunpack.c.h.b16 %v1044
    %v1486 = vunpack.c.l.b16 %v1045
    %v1487 = vunpack.c.h.b16 %v1045
    %v1488 = vunpack.c.l.b16 %v1046
    %v1489 = vunpack.c.h.b16 %v1046
    %v1490 = vunpack.c.l.b16 %v1047
    %v1491 = vunpack.c.h.b16 %v1047
    %v1492 = vunpack.c.l.b16 %v1048
    %v1493 = vunpack.c.h.b16 %v1048
    %v1494 = vunpack.c.l.b16 %v1049
    %v1495 = vunpack.c.h.b16 %v1049
    %v1496 = vunpack.c.l.b16 %v1050
    %v1497 = vunpack.c.h.b16 %v1050
    %v1498 = vunpack.c.l.b16 %v1051
    %v1499 = vunpack.c.h.b16 %v1051
    %v1500 = vunpack.c.l.b16 %v1052
    %v1501 = vunpack.c.h.b16 %v1052
    %v1502 = vunpack.c.l.b16 %v1053
    %v1503 = vunpack.c.h.b16 %v1053
    %v1504 = vunpack.c.l.b16 %v1054
    %v1505 = vunpack.c.h.b16 %v1054
    %v1506 = vunpack.c.l.b16 %v1055
    %v1507 = vunpack.c.h.b16 %v1055
    %v1508 = vunpack.c.l.b16 %v1056
    %v1509 = vunpack.c.h.b16 %v1056
    %v1510 = vunpack.c.l.b16 %v1057
    %v1511 = vunpack.c.h.b16 %v1057
    %v1512 = vunpack.c.l.b16 %v1058
    %v1513 = vunpack.c.h.b16 %v1058
    %v1514 = vunpack.c.l.b16 %v1059
    %v1515 = vunpack.c.h.b16 %v1059
    %v1516 = vunpack.c.l.b16 %v1060
    %v1517 = vunpack.c.h.b16 %v1060
    %v1518 = vunpack.c.l.b16 %v1061
    %v1519 = vunpack.c.h.b16 %v1061
    %v1520 = vunpack.c.l.b16 %v1062
    %v1521 = vunpack.c.h.b16 %v1062
    %v1522 = vunpack.c.l.b16 %v1063
    %v1523 = vunpack.c.h.b16 %v1063
    %v1524 = vunpack.c.l.b16 %v1064
    %v1525 = vunpack.c.h.b16 %v1064
    %v1526 = vunpack.c.l.b16 %v1065
    %v1527 = vunpack.c.h.b16 %v1065
    %v1528 = vunpack.c.l.b16 %v1066
    %v1529 = vunpack.c.h.b16 %v1066
    %v1530 = vunpack.c.l.b16 %v1067
    %v1531 = vunpack.c.h.b16 %v1067
    %v1532 = vunpack.c.l.b16 %v1068
    %v1533 = vunpack.c.h.b16 %v1068
    %v1534 = vunpack.c.l.b16 %v1069
    %v1535 = vunpack.c.h.b16 %v1069
    %v1536 = vunpack.c.l.b16 %v1070
    %v1537 = vunpack.c.h.b16 %v1070
    %v1538 = vunpack.c.l.b16 %v1071
    %v1539 = vunpack.c.h.b16 %v1071
    %v1540 = vunpack.c.l.b16 %v1072
    %v1541 = vunpack.c.h.b16 %v1072
    %v1542 = vunpack.c.l.b16 %v1073
    %v1543 = vunpack.c.h.b16 %v1073
    %v1544 = vunpack.c.l.b16 %v1074
    %v1545 = vunpack.c.h.b16 %v1074
    %v1546 = vunpack.c.l.b16 %v1075
    %v1547 = vunpack.c.h.b16 %v1075
    %v1548 = vunpack.c.l.b16 %v1076
    %v1549 = vunpack.c.h.b16 %v1076
    %v1550 = vunpack.c.l.b16 %v1077
    %v1551 = vunpack.c.h.b16 %v1077
    %v1552 = vunpack.c.l.b16 %v1078
    %v1553 = vunpack.c.h.b16 %v1078
    %v1554 = vunpack.c.l.b16 %v1079
    %v1555 = vunpack.c.h.b16 %v1079
    %v1556 = vunpack.c.l.b16 %v1080
    %v1557 = vunpack.c.h.b16 %v1080
    %v1558 = vunpack.c.l.b16 %v1081
    %v1559 = vunpack.c.h.b16 %v1081
    %v1560 = vunpack.c.l.b16 %v1082
    %v1561 = vunpack.c.h.b16 %v1082
    %v1562 = vunpack.c.l.b16 %v1083
    %v1563 = vunpack.c.h.b16 %v1083
    %v1564 = vunpack.c.l.b16 %v1084
    %v1565 = vunpack.c.h.b16 %v1084
    %v1566 = vunpack.c.l.b16 %v1085
    %v1567 = vunpack.c.h.b16 %v1085
    %v1568 = vunpack.c.l.b16 %v1086
    %v1569 = vunpack.c.h.b16 %v1086
    %v1570 = vunpack.c.l.b16 %v1087
    %v1571 = vunpack.c.h.b16 %v1087
    %v1572 = vunpack.c.l.b16 %v1088
    %v1573 = vunpack.c.h.b16 %v1088
    %v1574 = vunpack.c.l.b16 %v1089
    %v1575 = vunpack.c.h.b16 %v1089
    %v1576 = vunpack.c.l.b16 %v1090
    %v1577 = vunpack.c.h.b16 %v1090
    %v1578 = vunpack.c.l.b16 %v1091
    %v1579 = vunpack.c.h.b16 %v1091
    %v1580 = vunpack.c.l.b16 %v1092
    %v1581 = vunpack.c.h.b16 %v1092
    %v1582 = vunpack.c.l.b16 %v1093
    %v1583 = vunpack.c.h.b16 %v1093
    %v1584 = vunpack.c.l.b16 %v1094
    %v1585 = vunpack.c.h.b16 %v1094
    %v1586 = vunpack.c.l.b16 %v1095
    %v1587 = vunpack.c.h.b16 %v1095
    %v1588 = vunpack.c.l.b16 %v1096
    %v1589 = vunpack.c.h.b16 %v1096
    %v1590 = vunpack.c.l.b16 %v1097
    %v1591 = vunpack.c.h.b16 %v1097
    %v1592 = vunpack.c.l.b16 %v1098
    %v1593 = vunpack.c.h.b16 %v1098
    %v1594 = vunpack.c.l.b16 %v1099
    %v1595 = vunpack.c.h.b16 %v1099
    %v1596 = vunpack.c.l.b16 %v1100
    %v1597 = vunpack.c.h.b16 %v1100
    %v1598 = vunpack.c.l.b16 %v1101
    %v1599 = vunpack.c.h.b16 %v1101
    %v1600 = vunpack.c.l.b16 %v1102
    %v1601 = vunpack.c.h.b16 %v1102
    %v1602 = vunpack.c.l.b16 %v1103
    %v1603 = vunpack.c.h.b16 %v1103
    %v1604 = vunpack.c.l.b16 %v1104
    %v1605 = vunpack.c.h.b16 %v1104
    %v1606 = vunpack.c.l.b16 %v1105
    %v1607 = vunpack.c.h.b16 %v1105
    %v1608 = vunpack.c.l.b16 %v1106
    %v1609 = vunpack.c.h.b16 %v1106
    %v1610 = vunpack.c.l.b16 %v1107
    %v1611 = vunpack.c.h.b16 %v1107
    %v1612 = vunpack.c.l.b16 %v1108
    %v1613 = vunpack.c.h.b16 %v1108
    %v1614 = vunpack.c.l.b16 %v1109
    %v1615 = vunpack.c.h.b16 %v1109
    %v1616 = vunpack.c.l.b16 %v1110
    %v1617 = vunpack.c.h.b16 %v1110
    %v1618 = vunpack.c.l.b16 %v1111
    %v1619 = vunpack.c.h.b16 %v1111
    %v1620 = vunpack.c.l.b16 %v1112
    %v1621 = vunpack.c.h.b16 %v1112
    %v1622 = vunpack.c.l.b16 %v1113
    %v1623 = vunpack.c.h.b16 %v1113
    %v1624 = vunpack.c.l.b16 %v1114
    %v1625 = vunpack.c.h.b16 %v1114
    %v1626 = vpack.c.b16 %v1340, %v1338
    %v1627 = vpack.c.b16 %v1341, %v1339
    %v1628 = vpack.c.b16 %v1344, %v1342
    %v1629 = vpack.c.b16 %v1345, %v1343
    %v1630 = vpack.c.b16 %v1348, %v1346
    %v1631 = vpack.c.b16 %v1349, %v1347
    %v1632 = vpack.c.b16 %v1352, %v1350
    %v1633 = vpack.c.b16 %v1353, %v1351
    %v1634 = vpack.c.b16 %v1356, %v1354
    %v1635 = vpack.c.b16 %v1357, %v1355
    %v1636 = vpack.c.b16 %v1360, %v1358
    %v1637 = vpack.c.b16 %v1361, %v1359
    %v1638 = vpack.c.b16 %v1364, %v1362
    %v1639 = vpack.c.b16 %v1365, %v1363
    %v1640 = vpack.c.b16 %v1368, %v1366
    %v1641 = vpack.c.b16 %v1369, %v1367
    %v1642 = vpack.c.b16 %v1372, %v1370
    %v1643 = vpack.c.b16 %v1373, %v1371
    %v1644 = vpack.c.b16 %v1376, %v1374
    %v1645 = vpack.c.b16 %v1377, %v1375
    %v1646 = vpack.c.b16 %v1380, %v1378
    %v1647 = vpack.c.b16 %v1381, %v1379
    %v1648 = vpack.c.b16 %v1384, %v1382
    %v1649 = vpack.c.b16 %v1385, %v1383
    %v1650 = vpack.c.b16 %v1388, %v1386
    %v1651 = vpack.c.b16 %v1389, %v1387
    %v1652 = vpack.c.b16 %v1392, %v1390
    %v1653 = vpack.c.b16 %v1393, %v1391
    %v1654 = vpack.c.b16 %v1396, %v1394
    %v1655 = vpack.c.b16 %v1397, %v1395
    %v1656 = vpack.c.b16 %v1400, %v1398
    %v1657 = vpack.c.b16 %v1401, %v1399
    %v1658 = vpack.c.b16 %v1404, %v1402
    %v1659 = vpack.c.b16 %v1405, %v1403
    %v1660 = vpack.c.b16 %v1408, %v1406
    %v1661 = vpack.c.b16 %v1409, %v1407
    %v1662 = vpack.c.b16 %v1412, %v1410
    %v1663 = vpack.c.b16 %v1413, %v1411
    %v1664 = vpack.c.b16 %v1416, %v1414
    %v1665 = vpack.c.b16 %v1417, %v1415
    %v1666 = vpack.c.b16 %v1420, %v1418
    %v1667 = vpack.c.b16 %v1421, %v1419
    %v1668 = vpack.c.b16 %v1424, %v1422
    %v1669 = vpack.c.b16 %v1425, %v1423
    %v1670 = vpack.c.b16 %v1428, %v1426
    %v1671 = vpack.c.b16 %v1429, %v1427
    %v1672 = vpack.c.b16 %v1432, %v1430
    %v1673 = vpack.c.b16 %v1433, %v1431
    %v1674 = vpack.c.b16 %v1436, %v1434
    %v1675 = vpack.c.b16 %v1437, %v1435
    %v1676 = vpack.c.b16 %v1440, %v1438
    %v1677 = vpack.c.b16 %v1441, %v1439
    %v1678 = vpack.c.b16 %v1444, %v1442
    %v1679 = vpack.c.b16 %v1445, %v1443
    %v1680 = vpack.c.b16 %v1448, %v1446
    %v1681 = vpack.c.b16 %v1449, %v1447
    %v1682 = vpack.c.b16 %v1452, %v1450
    %v1683 = vpack.c.b16 %v1453, %v1451
    %v1684 = vpack.c.b16 %v1456, %v1454
    %v1685 = vpack.c.b16 %v1457, %v1455
    %v1686 = vpack.c.b16 %v1460, %v1458
    %v1687 = vpack.c.b16 %v1461, %v1459
    %v1688 = vpack.c.b16 %v1464, %v1462
    %v1689 = vpack.c.b16 %v1465, %v1463
    %v1690 = vpack.c.b16 %v1468, %v1466
    %v1691 = vpack.c.b16 %v1469, %v1467
    %v1692 = vpack.c.b16 %v1472, %v1470
    %v1693 = vpack.c.b16 %v1473, %v1471
    %v1694 = vpack.c.b16 %v1476, %v1474
    %v1695 = vpack.c.b16 %v1477, %v1475
    %v1696 = vpack.c.b16 %v1480, %v1478
    %v1697 = vpack.c.b16 %v1481, %v1479
    %v1698 = vpack.c.b16 %v1484, %v1482
    %v1699 = vpack.c.b16 %v1485, %v1483
    %v1700 = vpack.c.b16 %v1488, %v1486
    %v1701 = vpack.c.b16 %v1489, %v1487
    %v1702 = vpack.c.b16 %v1492, %v1490
    %v1703 = vpack.c.b16 %v1493, %v1491
    %v1704 = vpack.c.b16 %v1496, %v1494
    %v1705 = vpack.c.b16 %v1497, %v1495
    %v1706 = vpack.c.b16 %v1500, %v1498
    %v1707 = vpack.c.b16 %v1501, %v1499
    %v1708 = vpack.c.b16 %v1504, %v1502
    %v1709 = vpack.c.b16 %v1505, %v1503
    %v1710 = vpack.c.b16 %v1508, %v1506
    %v1711 = vpack.c.b16 %v1509, %v1507
    %v1712 = vpack.c.b16 %v1512, %v1510
    %v1713 = vpack.c.b16 %v1513, %v1511
    %v1714 = vpack.c.b16 %v1516, %v1514
    %v1715 = vpack.c.b16 %v1517, %v1515
    %v1716 = vpack.c.b16 %v1520, %v1518
    %v1717 = vpack.c.b16 %v1521, %v1519
    %v1718 = vpack.c.b16 %v1524, %v1522
    %v1719 = vpack.c.b16 %v1525, %v1523
    %v1720 = vpack.c.b16 %v1528, %v1526
    %v1721 = vpack.c.b16 %v1529, %v1527
    %v1722 = vpack.c.b16 %v1532, %v1530
    %v1723 = vpack.c.b16 %v1533, %v1531
    %v1724 = vpack.c.b16 %v1536, %v1534
    %v1725 = vpack.c.b16 %v1537, %v1535
    %v1726 = vpack.c.b16 %v1540, %v1538
    %v1727 = vpack.c.b16 %v1541, %v1539
    %v1728 = vpack.c.b16 %v1544, %v1542
    %v1729 = vpack.c.b16 %v1545, %v1543
    %v1730 = vpack.c.b16 %v1548, %v1546
    %v1731 = vpack.c.b16 %v1549, %v1547
    %v1732 = vpack.c.b16 %v1552, %v1550
    %v1733 = vpack.c.b16 %v1553, %v1551
    %v1734 = vpack.c.b16 %v1556, %v1554
    %v1735 = vpack.c.b16 %v1557, %v1555
    %v1736 = vpack.c.b16 %v1560, %v1558
    %v1737 = vpack.c.b16 %v1561, %v1559
    %v1738 = vpack.c.b16 %v1564, %v1562
    %v1739 = vpack.c.b16 %v1565, %v1563
    %v1740 = vpack.c.b16 %v1568, %v1566
    %v1741 = vpack.c.b16 %v1569, %v1567
    %v1742 = vpack.c.b16 %v1572, %v1570
    %v1743 = vpack.c.b16 %v1573, %v1571
    %v1744 = vpack.c.b16 %v1576, %v1574
    %v1745 = vpack.c.b16 %v1577, %v1575
    %v1746 = vpack.c.b16 %v1580, %v1578
    %v1747 = vpack.c.b16 %v1581, %v1579
    %v1748 = vpack.c.b16 %v1584, %v1582
    %v1749 = vpack.c.b16 %v1585, %v1583
    %v1750 = vpack.c.b16 %v1588, %v1586
    %v1751 = vpack.c.b16 %v1589, %v1587
    %v1752 = vpack.c.b16 %v1592, %v1590
    %v1753 = vpack.c.b16 %v1593, %v1591
    %v1754 = vpack.c.b16 %v1596, %v1594
    %v1755 = vpack.c.b16 %v1597, %v1595
    %v1756 = vpack.c.b16 %v1600, %v1598
    %v1757 = vpack.c.b16 %v1601, %v1599
    %v1758 = vpack.c.b16 %v1604, %v1602
    %v1759 = vpack.c.b16 %v1605, %v1603
    %v1760 = vpack.c.b16 %v1608, %v1606
    %v1761 = vpack.c.b16 %v1609, %v1607
    %v1762 = vpack.c.b16 %v1612, %v1610
    %v1763 = vpack.c.b16 %v1613, %v1611
    %v1764 = vpack.c.b16 %v1616, %v1614
    %v1765 = vpack.c.b16 %v1617, %v1615
    %v1766 = vpack.c.b16 %v1620, %v1618
    %v1767 = vpack.c.b16 %v1621, %v1619
    %v1768 = vpack.c.b16 %v1624, %v1622
    %v1769 = vpack.c.b16 %v1625, %v1623
    %1914 = vmatprep.subr.bf16.mxu0 %v1627
    %1915 = vmatpush1.bf16.msra.mxu0 %v1626
    %1916 = vmatprep.subr.bf16.mxu0 %v1629
    %1917 = vmatpush1.bf16.msra.mxu0 %v1628
    %1918 = vmatprep.subr.bf16.mxu0 %v1631
    %1919 = vmatpush1.bf16.msra.mxu0 %v1630
    %1920 = vmatprep.subr.bf16.mxu0 %v1633
    %1921 = vmatpush1.bf16.msra.mxu0 %v1632
    %1922 = vmatprep.subr.bf16.mxu0 %v1635
    %1923 = vmatpush1.bf16.msra.mxu0 %v1634
    %1924 = vmatprep.subr.bf16.mxu0 %v1637
    %1925 = vmatpush1.bf16.msra.mxu0 %v1636
    %1926 = vmatprep.subr.bf16.mxu0 %v1639
    %1927 = vmatpush1.bf16.msra.mxu0 %v1638
    %1928 = vmatprep.subr.bf16.mxu0 %v1641
    %1929 = vmatpush1.bf16.msra.mxu0 %v1640
    %1930 = vmatprep.subr.bf16.mxu0 %v1643
    %1931 = vmatpush1.bf16.msra.mxu0 %v1642
    %1932 = vmatprep.subr.bf16.mxu0 %v1645
    %1933 = vmatpush1.bf16.msra.mxu0 %v1644
    %1934 = vmatprep.subr.bf16.mxu0 %v1647
    %1935 = vmatpush1.bf16.msra.mxu0 %v1646
    %1936 = vmatprep.subr.bf16.mxu0 %v1649
    %1937 = vmatpush1.bf16.msra.mxu0 %v1648
    %1938 = vmatprep.subr.bf16.mxu0 %v1651
    %1939 = vmatpush1.bf16.msra.mxu0 %v1650
    %1940 = vmatprep.subr.bf16.mxu0 %v1653
    %1941 = vmatpush1.bf16.msra.mxu0 %v1652
    %1942 = vmatprep.subr.bf16.mxu0 %v1655
    %1943 = vmatpush1.bf16.msra.mxu0 %v1654
    %1944 = vmatprep.subr.bf16.mxu0 %v1657
    %1945 = vmatpush1.bf16.msra.mxu0 %v1656
    %1946 = vmatprep.mubr.bf16.mxu0 %v1186
    %1947 = vmatmul.mubr.bf16.gmra.mrb[0].mxu0 %v1185
    %v1948 = vpop.f32.mrb[0].mxu0
    %v1949 = vadd.f32 0.0, %v1948
    %v1950 = vpop.f32.mrb[0].mxu0
    %v1951 = vadd.f32 0.0, %v1950
    %v1952 = vpop.f32.mrb[0].mxu0
    %v1953 = vpop.f32.mrb[0].mxu0
    %1954 = vdwg.mxu0
    %1955 = vmatprep.subr.bf16.mxu0 %v1659
    %1956 = vmatpush1.bf16.msra.mxu0 %v1658
    %1957 = vmatprep.subr.bf16.mxu0 %v1661
    %1958 = vmatpush1.bf16.msra.mxu0 %v1660
    %1959 = vmatprep.subr.bf16.mxu0 %v1663
    %1960 = vmatpush1.bf16.msra.mxu0 %v1662
    %1961 = vmatprep.subr.bf16.mxu0 %v1665
    %1962 = vmatpush1.bf16.msra.mxu0 %v1664
    %1963 = vmatprep.subr.bf16.mxu0 %v1667
    %1964 = vmatpush1.bf16.msra.mxu0 %v1666
    %1965 = vmatprep.subr.bf16.mxu0 %v1669
    %1966 = vmatpush1.bf16.msra.mxu0 %v1668
    %1967 = vmatprep.subr.bf16.mxu0 %v1671
    %1968 = vmatpush1.bf16.msra.mxu0 %v1670
    %1969 = vmatprep.subr.bf16.mxu0 %v1673
    %1970 = vmatpush1.bf16.msra.mxu0 %v1672
    %1971 = vmatprep.subr.bf16.mxu0 %v1675
    %1972 = vmatpush1.bf16.msra.mxu0 %v1674
    %1973 = vmatprep.subr.bf16.mxu0 %v1677
    %1974 = vmatpush1.bf16.msra.mxu0 %v1676
    %1975 = vmatprep.subr.bf16.mxu0 %v1679
    %1976 = vmatpush1.bf16.msra.mxu0 %v1678
    %1977 = vmatprep.subr.bf16.mxu0 %v1681
    %1978 = vmatpush1.bf16.msra.mxu0 %v1680
    %1979 = vmatprep.subr.bf16.mxu0 %v1683
    %1980 = vmatpush1.bf16.msra.mxu0 %v1682
    %1981 = vmatprep.subr.bf16.mxu0 %v1685
    %1982 = vmatpush1.bf16.msra.mxu0 %v1684
    %1983 = vmatprep.subr.bf16.mxu0 %v1687
    %1984 = vmatpush1.bf16.msra.mxu0 %v1686
    %1985 = vmatprep.subr.bf16.mxu0 %v1689
    %1986 = vmatpush1.bf16.msra.mxu0 %v1688
    %1987 = vmatprep.mubr.bf16.mxu0 %v1188
    %1988 = vmatmul.mubr.bf16.gmra.mrb[0].mxu0 %v1187
    %v1989 = vpop.f32.mrb[0].mxu0
    %v1990 = vadd.f32 %v1949, %v1989
    %v1991 = vpop.f32.mrb[0].mxu0
    %v1992 = vadd.f32 %v1951, %v1991
    %v1993 = vpop.f32.mrb[0].mxu0
    %v1994 = vpop.f32.mrb[0].mxu0
    %1995 = vdwg.mxu0
    %1996 = vmatprep.subr.bf16.mxu0 %v1691
    %1997 = vmatpush1.bf16.msra.mxu0 %v1690
    %1998 = vmatprep.subr.bf16.mxu0 %v1693
    %1999 = vmatpush1.bf16.msra.mxu0 %v1692
    %2000 = vmatprep.subr.bf16.mxu0 %v1695
    %2001 = vmatpush1.bf16.msra.mxu0 %v1694
    %2002 = vmatprep.subr.bf16.mxu0 %v1697
    %2003 = vmatpush1.bf16.msra.mxu0 %v1696
    %2004 = vmatprep.subr.bf16.mxu0 %v1699
    %2005 = vmatpush1.bf16.msra.mxu0 %v1698
    %2006 = vmatprep.subr.bf16.mxu0 %v1701
    %2007 = vmatpush1.bf16.msra.mxu0 %v1700
    %2008 = vmatprep.subr.bf16.mxu0 %v1703
    %2009 = vmatpush1.bf16.msra.mxu0 %v1702
    %2010 = vmatprep.subr.bf16.mxu0 %v1705
    %2011 = vmatpush1.bf16.msra.mxu0 %v1704
    %2012 = vmatprep.subr.bf16.mxu0 %v1707
    %2013 = vmatpush1.bf16.msra.mxu0 %v1706
    %2014 = vmatprep.subr.bf16.mxu0 %v1709
    %2015 = vmatpush1.bf16.msra.mxu0 %v1708
    %2016 = vmatprep.subr.bf16.mxu0 %v1711
    %2017 = vmatpush1.bf16.msra.mxu0 %v1710
    %2018 = vmatprep.subr.bf16.mxu0 %v1713
    %2019 = vmatpush1.bf16.msra.mxu0 %v1712
    %2020 = vmatprep.subr.bf16.mxu0 %v1715
    %2021 = vmatpush1.bf16.msra.mxu0 %v1714
    %2022 = vmatprep.subr.bf16.mxu0 %v1717
    %2023 = vmatpush1.bf16.msra.mxu0 %v1716
    %2024 = vmatprep.subr.bf16.mxu0 %v1719
    %2025 = vmatpush1.bf16.msra.mxu0 %v1718
    %2026 = vmatprep.subr.bf16.mxu0 %v1721
    %2027 = vmatpush1.bf16.msra.mxu0 %v1720
    %2028 = vmatprep.mubr.bf16.mxu0 %v1190
    %2029 = vmatmul.mubr.bf16.gmra.mrb[0].mxu0 %v1189
    %v2030 = vpop.f32.mrb[0].mxu0
    %v2031 = vadd.f32 %v1990, %v2030
    %v2032 = vpop.f32.mrb[0].mxu0
    %v2033 = vadd.f32 %v1992, %v2032
    %v2034 = vpop.f32.mrb[0].mxu0
    %v2035 = vpop.f32.mrb[0].mxu0
    %2036 = vdwg.mxu0
    %2037 = vmatprep.subr.bf16.mxu0 %v1723
    %2038 = vmatpush1.bf16.msra.mxu0 %v1722
    %2039 = vmatprep.subr.bf16.mxu0 %v1725
    %2040 = vmatpush1.bf16.msra.mxu0 %v1724
    %2041 = vmatprep.subr.bf16.mxu0 %v1727
    %2042 = vmatpush1.bf16.msra.mxu0 %v1726
    %2043 = vmatprep.subr.bf16.mxu0 %v1729
    %2044 = vmatpush1.bf16.msra.mxu0 %v1728
    %2045 = vmatprep.subr.bf16.mxu0 %v1731
    %2046 = vmatpush1.bf16.msra.mxu0 %v1730
    %2047 = vmatprep.subr.bf16.mxu0 %v1733
    %2048 = vmatpush1.bf16.msra.mxu0 %v1732
    %2049 = vmatprep.subr.bf16.mxu0 %v1735
    %2050 = vmatpush1.bf16.msra.mxu0 %v1734
    %2051 = vmatprep.subr.bf16.mxu0 %v1737
    %2052 = vmatpush1.bf16.msra.mxu0 %v1736
    %2053 = vmatprep.subr.bf16.mxu0 %v1739
    %2054 = vmatpush1.bf16.msra.mxu0 %v1738
    %2055 = vmatprep.subr.bf16.mxu0 %v1741
    %2056 = vmatpush1.bf16.msra.mxu0 %v1740
    %2057 = vmatprep.subr.bf16.mxu0 %v1743
    %2058 = vmatpush1.bf16.msra.mxu0 %v1742
    %2059 = vmatprep.subr.bf16.mxu0 %v1745
    %2060 = vmatpush1.bf16.msra.mxu0 %v1744
    %2061 = vmatprep.subr.bf16.mxu0 %v1747
    %2062 = vmatpush1.bf16.msra.mxu0 %v1746
    %2063 = vmatprep.subr.bf16.mxu0 %v1749
    %2064 = vmatpush1.bf16.msra.mxu0 %v1748
    %2065 = vmatprep.subr.bf16.mxu0 %v1751
    %2066 = vmatpush1.bf16.msra.mxu0 %v1750
    %2067 = vmatprep.subr.bf16.mxu0 %v1753
    %2068 = vmatpush1.bf16.msra.mxu0 %v1752
    %2069 = vmatprep.mubr.bf16.mxu0 %v1192
    %2070 = vmatmul.mubr.bf16.gmra.mrb[0].mxu0 %v1191
    %v2071 = vpop.f32.mrb[0].mxu0
    %v2072 = vadd.f32 %v2031, %v2071
    %v2073 = vpop.f32.mrb[0].mxu0
    %v2074 = vadd.f32 %v2033, %v2073
    %v2075 = vpop.f32.mrb[0].mxu0
    %v2076 = vpop.f32.mrb[0].mxu0
    %2077 = vdwg.mxu0
    %2078 = vmatprep.subr.bf16.mxu0 %v1755
    %2079 = vmatpush1.bf16.msra.mxu0 %v1754
    %2080 = vmatprep.subr.bf16.mxu0 %v1757
    %2081 = vmatpush1.bf16.msra.mxu0 %v1756
    %2082 = vmatprep.subr.bf16.mxu0 %v1759
    %2083 = vmatpush1.bf16.msra.mxu0 %v1758
    %2084 = vmatprep.subr.bf16.mxu0 %v1761
    %2085 = vmatpush1.bf16.msra.mxu0 %v1760
    %2086 = vmatprep.subr.bf16.mxu0 %v1763
    %2087 = vmatpush1.bf16.msra.mxu0 %v1762
    %2088 = vmatprep.subr.bf16.mxu0 %v1765
    %2089 = vmatpush1.bf16.msra.mxu0 %v1764
    %2090 = vmatprep.subr.bf16.mxu0 %v1767
    %2091 = vmatpush1.bf16.msra.mxu0 %v1766
    %2092 = vmatprep.subr.bf16.mxu0 %v1769
    %2093 = vmatpush1.bf16.msra.mxu0 %v1768
    %2094 = vmatprep.subr.bf16.mxu0 0
    %2095 = vmatpush1.bf16.msra.mxu0 0
    %2096 = vmatprep.subr.bf16.mxu0 0
    %2097 = vmatpush1.bf16.msra.mxu0 0
    %2098 = vmatprep.subr.bf16.mxu0 0
    %2099 = vmatpush1.bf16.msra.mxu0 0
    %2100 = vmatprep.subr.bf16.mxu0 0
    %2101 = vmatpush1.bf16.msra.mxu0 0
    %2102 = vmatprep.subr.bf16.mxu0 0
    %2103 = vmatpush1.bf16.msra.mxu0 0
    %2104 = vmatprep.subr.bf16.mxu0 0
    %2105 = vmatpush1.bf16.msra.mxu0 0
    %2106 = vmatprep.subr.bf16.mxu0 0
    %2107 = vmatpush1.bf16.msra.mxu0 0
    %2108 = vmatprep.subr.bf16.mxu0 0
    %2109 = vmatpush1.bf16.msra.mxu0 0
    %2110 = vmatprep.mubr.bf16.mxu0 0
    %2111 = vmatmul.mubr.bf16.gmra.mrb[0].mxu0 %v1193
    %v2112 = vpop.f32.mrb[0].mxu0
    %v2113 = vadd.f32 %v2072, %v2112
    %v2114 = vpop.f32.mrb[0].mxu0
    %v2115 = vadd.f32 %v2074, %v2114
    %v2116 = vpop.f32.mrb[0].mxu0
    %v2117 = vpop.f32.mrb[0].mxu0
    %2118 = vdwg.mxu0
    %v2119 = vld [vmem:[#allocation11] sm:$0x3]
    %v2120 = vld [vmem:[#allocation13] sm:$0x3]
    %v2121 = vadd.f32 %v2113, %v2115
    %2122 = vadd.xlane.f32.xlu0 %v2121
    %v2123 = vpop.xlane.xlu0 %2122
    %v2124 = vrcp.pop 256.0
    %v2125 = vmul.f32 %v2123, %v2124
    %v2126 = vsub.f32 %v2113, %v2125
    %v2127 = vsub.f32 %v2115, %v2125
    %v2128 = vmul.f32 %v2126, %v2126
    %v2129 = vmul.f32 %v2127, %v2127
    %v2130 = vadd.f32 %v2128, %v2129
    %2131 = vadd.xlane.f32.xlu0 %v2130
    %v2132 = vpop.xlane.xlu0 %2131
    %v2133 = vmul.f32 %v2132, %v2124
    %v2134 = vadd.f32 %v2133, 1e-05
    %v2135 = vrsqrt.pop %v2134
    %v2136 = vmul.f32 %v2126, %v2135
    %v2137 = vmul.f32 %v2127, %v2135
    %v2139 = vlaneseq
    %v2140 = vshrl.u32 %v2139, 7
    %v2141 = vsub.s32 0, %v2140
    %v2142 = vrot.slane %v2119, %v2141
    %v2143 = vlaneseq
    %v2144 = vshrl.u32 %v2143, 7
    %v2145 = vsub.s32 1, %v2144
    %v2146 = vrot.slane %v2119, %v2145
    %v2149 = vmul.f32 %v2136, %v2142
    %v2150 = vmul.f32 %v2137, %v2146
    %v2152 = vlaneseq
    %v2153 = vshrl.u32 %v2152, 7
    %v2154 = vsub.s32 0, %v2153
    %v2155 = vrot.slane %v2120, %v2154
    %v2156 = vlaneseq
    %v2157 = vshrl.u32 %v2156, 7
    %v2158 = vsub.s32 1, %v2157
    %v2159 = vrot.slane %v2120, %v2158
    %v2162 = vadd.f32 %v2149, %v2155
    %v2163 = vadd.f32 %v2150, %v2159
    %v2164 = vld [vmem:[#allocation8] sm:$0xf]
    %v2165 = vld [vmem:[#allocation8 + $0x4] sm:$0xf]
    %v2166 = vld [vmem:[#allocation8 + $0x8] sm:$0xf]
    %v2167 = vld [vmem:[#allocation8 + $0xc] sm:$0xf]
    %v2168 = vld [vmem:[#allocation8 + $0x10] sm:$0xf]
    %v2169 = vld [vmem:[#allocation8 + $0x14] sm:$0xf]
    %v2170 = vld [vmem:[#allocation8 + $0x18] sm:$0xf]
    %v2171 = vld [vmem:[#allocation8 + $0x1c] sm:$0xf]
    %v2172 = vld [vmem:[#allocation8 + $0x20] sm:$0xf]
    %v2173 = vld [vmem:[#allocation8 + $0x24] sm:$0xf]
    %v2174 = vld [vmem:[#allocation8 + $0x28] sm:$0xf]
    %v2175 = vld [vmem:[#allocation8 + $0x2c] sm:$0xf]
    %v2176 = vld [vmem:[#allocation8 + $0x30] sm:$0xf]
    %v2177 = vld [vmem:[#allocation8 + $0x34] sm:$0xf]
    %v2178 = vld [vmem:[#allocation8 + $0x38] sm:$0xf]
    %v2179 = vld [vmem:[#allocation8 + $0x3c] sm:$0xf]
    %v2180 = vld [vmem:[#allocation8 + $0x40] sm:$0xf]
    %v2181 = vld [vmem:[#allocation8 + $0x44] sm:$0xf]
    %v2182 = vld [vmem:[#allocation8 + $0x48] sm:$0xf]
    %v2183 = vld [vmem:[#allocation8 + $0x4c] sm:$0xf]
    %v2184 = vld [vmem:[#allocation8 + $0x50] sm:$0xf]
    %v2185 = vld [vmem:[#allocation8 + $0x54] sm:$0xf]
    %v2186 = vld [vmem:[#allocation8 + $0x58] sm:$0xf]
    %v2187 = vld [vmem:[#allocation8 + $0x5c] sm:$0xf]
    %v2188 = vld [vmem:[#allocation8 + $0x60] sm:$0xf]
    %v2189 = vld [vmem:[#allocation8 + $0x64] sm:$0xf]
    %v2190 = vld [vmem:[#allocation8 + $0x68] sm:$0xf]
    %v2191 = vld [vmem:[#allocation8 + $0x6c] sm:$0xf]
    %v2192 = vld [vmem:[#allocation8 + $0x70] sm:$0xf]
    %v2193 = vld [vmem:[#allocation8 + $0x74] sm:$0xf]
    %v2194 = vld [vmem:[#allocation8 + $0x78] sm:$0xf]
    %v2195 = vld [vmem:[#allocation8 + $0x7c] sm:$0xf]
    %v2196 = vld [vmem:[#allocation8 + $0x80] sm:$0xf]
    %v2197 = vld [vmem:[#allocation8 + $0x84] sm:$0xf]
    %v2198 = vld [vmem:[#allocation8 + $0x88] sm:$0xf]
    %v2199 = vld [vmem:[#allocation8 + $0x8c] sm:$0xf]
    %v2200 = vld [vmem:[#allocation8 + $0x90] sm:$0xf]
    %v2201 = vld [vmem:[#allocation8 + $0x94] sm:$0xf]
    %v2202 = vld [vmem:[#allocation8 + $0x98] sm:$0xf]
    %v2203 = vld [vmem:[#allocation8 + $0x9c] sm:$0xf]
    %v2204 = vld [vmem:[#allocation8 + $0xa0] sm:$0xf]
    %v2205 = vld [vmem:[#allocation8 + $0xa4] sm:$0xf]
    %v2206 = vld [vmem:[#allocation8 + $0xa8] sm:$0xf]
    %v2207 = vld [vmem:[#allocation8 + $0xac] sm:$0xf]
    %v2208 = vld [vmem:[#allocation8 + $0xb0] sm:$0xf]
    %v2209 = vld [vmem:[#allocation8 + $0xb4] sm:$0xf]
    %v2210 = vld [vmem:[#allocation8 + $0xb8] sm:$0xf]
    %v2211 = vld [vmem:[#allocation8 + $0xbc] sm:$0xf]
    %v2212 = vld [vmem:[#allocation8 + $0xc0] sm:$0xf]
    %v2213 = vld [vmem:[#allocation8 + $0xc4] sm:$0xf]
    %v2214 = vld [vmem:[#allocation8 + $0xc8] sm:$0xf]
    %v2215 = vld [vmem:[#allocation8 + $0xcc] sm:$0xf]
    %v2216 = vld [vmem:[#allocation8 + $0xd0] sm:$0xf]
    %v2217 = vld [vmem:[#allocation8 + $0xd4] sm:$0xf]
    %v2218 = vld [vmem:[#allocation8 + $0xd8] sm:$0xf]
    %v2219 = vld [vmem:[#allocation8 + $0xdc] sm:$0xf]
    %v2220 = vld [vmem:[#allocation8 + $0xe0] sm:$0xf]
    %v2221 = vld [vmem:[#allocation8 + $0xe4] sm:$0xf]
    %v2222 = vld [vmem:[#allocation8 + $0xe8] sm:$0xf]
    %v2223 = vld [vmem:[#allocation8 + $0xec] sm:$0xf]
    %v2224 = vld [vmem:[#allocation8 + $0xf0] sm:$0xf]
    %v2225 = vld [vmem:[#allocation8 + $0xf4] sm:$0xf]
    %v2226 = vld [vmem:[#allocation8 + $0xf8] sm:$0xf]
    %v2227 = vld [vmem:[#allocation8 + $0xfc] sm:$0xf]
    %v2228 = vld [vmem:[#allocation8 + $0x100] sm:$0xf]
    %v2229 = vld [vmem:[#allocation8 + $0x104] sm:$0xf]
    %v2230 = vld [vmem:[#allocation8 + $0x108] sm:$0xf]
    %v2231 = vld [vmem:[#allocation8 + $0x10c] sm:$0xf]
    %v2232 = vld [vmem:[#allocation8 + $0x110] sm:$0xf]
    %v2233 = vld [vmem:[#allocation8 + $0x114] sm:$0xf]
    %v2234 = vld [vmem:[#allocation8 + $0x118] sm:$0xf]
    %v2235 = vld [vmem:[#allocation8 + $0x11c] sm:$0xf]
    %v2236 = vld [vmem:[#allocation8 + $0x120] sm:$0xf]
    %v2237 = vld [vmem:[#allocation8 + $0x124] sm:$0xf]
    %v2238 = vld [vmem:[#allocation8 + $0x128] sm:$0xf]
    %v2239 = vld [vmem:[#allocation8 + $0x12c] sm:$0xf]
    %v2240 = vld [vmem:[#allocation8 + $0x130] sm:$0xf]
    %v2241 = vld [vmem:[#allocation8 + $0x134] sm:$0xf]
    %v2242 = vld [vmem:[#allocation8 + $0x138] sm:$0xf]
    %v2243 = vld [vmem:[#allocation8 + $0x13c] sm:$0xf]
    %v2244 = vld [vmem:[#allocation8 + $0x140] sm:$0xf]
    %v2245 = vld [vmem:[#allocation8 + $0x144] sm:$0xf]
    %v2246 = vld [vmem:[#allocation8 + $0x148] sm:$0xf]
    %v2247 = vld [vmem:[#allocation8 + $0x14c] sm:$0xf]
    %v2248 = vld [vmem:[#allocation8 + $0x150] sm:$0xf]
    %v2249 = vld [vmem:[#allocation8 + $0x154] sm:$0xf]
    %v2250 = vld [vmem:[#allocation8 + $0x158] sm:$0xf]
    %v2251 = vld [vmem:[#allocation8 + $0x15c] sm:$0xf]
    %v2252 = vld [vmem:[#allocation8 + $0x160] sm:$0xf]
    %v2253 = vld [vmem:[#allocation8 + $0x164] sm:$0xf]
    %v2254 = vld [vmem:[#allocation8 + $0x168] sm:$0xf]
    %v2255 = vld [vmem:[#allocation8 + $0x16c] sm:$0xf]
    %v2256 = vld [vmem:[#allocation8 + $0x170] sm:$0xf]
    %v2257 = vld [vmem:[#allocation8 + $0x174] sm:$0xf]
    %v2258 = vld [vmem:[#allocation8 + $0x178] sm:$0xf]
    %v2259 = vld [vmem:[#allocation8 + $0x17c] sm:$0xf]
    %v2260 = vld [vmem:[#allocation8 + $0x180] sm:$0xf]
    %v2261 = vld [vmem:[#allocation8 + $0x184] sm:$0xf]
    %v2262 = vld [vmem:[#allocation8 + $0x188] sm:$0xf]
    %v2263 = vld [vmem:[#allocation8 + $0x18c] sm:$0xf]
    %v2264 = vld [vmem:[#allocation8 + $0x190] sm:$0xf]
    %v2265 = vld [vmem:[#allocation8 + $0x194] sm:$0xf]
    %v2266 = vld [vmem:[#allocation8 + $0x198] sm:$0xf]
    %v2267 = vld [vmem:[#allocation8 + $0x19c] sm:$0xf]
    %v2268 = vld [vmem:[#allocation8 + $0x1a0] sm:$0xf]
    %v2269 = vld [vmem:[#allocation8 + $0x1a4] sm:$0xf]
    %v2270 = vld [vmem:[#allocation8 + $0x1a8] sm:$0xf]
    %v2271 = vld [vmem:[#allocation8 + $0x1ac] sm:$0xf]
    %v2272 = vld [vmem:[#allocation8 + $0x1b0] sm:$0xf]
    %v2273 = vld [vmem:[#allocation8 + $0x1b4] sm:$0xf]
    %v2274 = vld [vmem:[#allocation8 + $0x1b8] sm:$0xf]
    %v2275 = vld [vmem:[#allocation8 + $0x1bc] sm:$0xf]
    %v2276 = vld [vmem:[#allocation8 + $0x1c0] sm:$0xf]
    %v2277 = vld [vmem:[#allocation8 + $0x1c4] sm:$0xf]
    %v2278 = vld [vmem:[#allocation8 + $0x1c8] sm:$0xf]
    %v2279 = vld [vmem:[#allocation8 + $0x1cc] sm:$0xf]
    %v2280 = vld [vmem:[#allocation8 + $0x1d0] sm:$0xf]
    %v2281 = vld [vmem:[#allocation8 + $0x1d4] sm:$0xf]
    %v2282 = vld [vmem:[#allocation8 + $0x1d8] sm:$0xf]
    %v2283 = vld [vmem:[#allocation8 + $0x1dc] sm:$0xf]
    %v2284 = vld [vmem:[#allocation8 + $0x1e0] sm:$0xf]
    %v2285 = vld [vmem:[#allocation8 + $0x1e4] sm:$0xf]
    %v2286 = vld [vmem:[#allocation8 + $0x1e8] sm:$0xf]
    %v2287 = vld [vmem:[#allocation8 + $0x1ec] sm:$0xf]
    %v2288 = vld [vmem:[#allocation8 + $0x1f0] sm:$0xf]
    %v2289 = vld [vmem:[#allocation8 + $0x1f4] sm:$0xf]
    %v2290 = vld [vmem:[#allocation8 + $0x1f8] sm:$0xf]
    %v2291 = vld [vmem:[#allocation8 + $0x1fc] sm:$0xf]
    %v2292 = vld [vmem:[#allocation8 + $0x200] sm:$0xf]
    %v2293 = vld [vmem:[#allocation8 + $0x204] sm:$0xf]
    %v2294 = vld [vmem:[#allocation8 + $0x208] sm:$0xf]
    %v2295 = vld [vmem:[#allocation8 + $0x20c] sm:$0xf]
    %v2296 = vld [vmem:[#allocation8 + $0x210] sm:$0xf]
    %v2297 = vld [vmem:[#allocation8 + $0x214] sm:$0xf]
    %v2298 = vld [vmem:[#allocation8 + $0x218] sm:$0xf]
    %v2299 = vld [vmem:[#allocation8 + $0x21c] sm:$0xf]
    %v2300 = vld [vmem:[#allocation8 + $0x220] sm:$0xf]
    %v2301 = vld [vmem:[#allocation8 + $0x224] sm:$0xf]
    %v2302 = vld [vmem:[#allocation8 + $0x228] sm:$0xf]
    %v2303 = vld [vmem:[#allocation8 + $0x22c] sm:$0xf]
    %v2304 = vld [vmem:[#allocation8 + $0x230] sm:$0xf]
    %v2305 = vld [vmem:[#allocation8 + $0x234] sm:$0xf]
    %v2306 = vld [vmem:[#allocation8 + $0x238] sm:$0xf]
    %v2307 = vld [vmem:[#allocation8 + $0x23c] sm:$0xf]
    %v2308 = vld [vmem:[#allocation8 + $0x240] sm:$0xf]
    %v2309 = vld [vmem:[#allocation8 + $0x244] sm:$0xf]
    %v2310 = vld [vmem:[#allocation8 + $0x248] sm:$0xf]
    %v2311 = vld [vmem:[#allocation8 + $0x24c] sm:$0xf]
    %v2312 = vld [vmem:[#allocation8 + $0x250] sm:$0xf]
    %v2313 = vld [vmem:[#allocation8 + $0x254] sm:$0xf]
    %v2314 = vld [vmem:[#allocation8 + $0x258] sm:$0xf]
    %v2315 = vld [vmem:[#allocation8 + $0x25c] sm:$0xf]
    %v2316 = vld [vmem:[#allocation8 + $0x260] sm:$0xf]
    %v2317 = vld [vmem:[#allocation8 + $0x264] sm:$0xf]
    %v2318 = vld [vmem:[#allocation8 + $0x268] sm:$0xf]
    %v2319 = vld [vmem:[#allocation8 + $0x26c] sm:$0xf]
    %v2320 = vld [vmem:[#allocation8 + $0x270] sm:$0xf]
    %v2321 = vld [vmem:[#allocation8 + $0x274] sm:$0xf]
    %v2322 = vld [vmem:[#allocation8 + $0x278] sm:$0xf]
    %v2323 = vld [vmem:[#allocation8 + $0x27c] sm:$0xf]
    %v2324 = vld [vmem:[#allocation8 + $0x280] sm:$0xf]
    %v2325 = vld [vmem:[#allocation8 + $0x284] sm:$0xf]
    %v2326 = vld [vmem:[#allocation8 + $0x288] sm:$0xf]
    %v2327 = vld [vmem:[#allocation8 + $0x28c] sm:$0xf]
    %v2328 = vld [vmem:[#allocation8 + $0x290] sm:$0xf]
    %v2329 = vld [vmem:[#allocation8 + $0x294] sm:$0xf]
    %v2330 = vld [vmem:[#allocation8 + $0x298] sm:$0xf]
    %v2331 = vld [vmem:[#allocation8 + $0x29c] sm:$0xf]
    %v2332 = vld [vmem:[#allocation8 + $0x2a0] sm:$0xf]
    %v2333 = vld [vmem:[#allocation8 + $0x2a4] sm:$0xf]
    %v2334 = vld [vmem:[#allocation8 + $0x2a8] sm:$0xf]
    %v2335 = vld [vmem:[#allocation8 + $0x2ac] sm:$0xf]
    %v2336 = vld [vmem:[#allocation8 + $0x2b0] sm:$0xf]
    %v2337 = vld [vmem:[#allocation8 + $0x2b4] sm:$0xf]
    %v2338 = vld [vmem:[#allocation8 + $0x2b8] sm:$0xf]
    %v2339 = vld [vmem:[#allocation8 + $0x2bc] sm:$0xf]
    %v2340 = vld [vmem:[#allocation8 + $0x2c0] sm:$0xf]
    %v2341 = vld [vmem:[#allocation8 + $0x2c4] sm:$0xf]
    %v2342 = vld [vmem:[#allocation8 + $0x2c8] sm:$0xf]
    %v2343 = vld [vmem:[#allocation8 + $0x2cc] sm:$0xf]
    %v2344 = vld [vmem:[#allocation8 + $0x2d0] sm:$0xf]
    %v2345 = vld [vmem:[#allocation8 + $0x2d4] sm:$0xf]
    %v2346 = vld [vmem:[#allocation8 + $0x2d8] sm:$0xf]
    %v2347 = vld [vmem:[#allocation8 + $0x2dc] sm:$0xf]
    %v2348 = vld [vmem:[#allocation8 + $0x2e0] sm:$0xf]
    %v2349 = vld [vmem:[#allocation8 + $0x2e4] sm:$0xf]
    %v2350 = vld [vmem:[#allocation8 + $0x2e8] sm:$0xf]
    %v2351 = vld [vmem:[#allocation8 + $0x2ec] sm:$0xf]
    %v2352 = vld [vmem:[#allocation8 + $0x2f0] sm:$0xf]
    %v2353 = vld [vmem:[#allocation8 + $0x2f4] sm:$0xf]
    %v2354 = vld [vmem:[#allocation8 + $0x2f8] sm:$0xf]
    %v2355 = vld [vmem:[#allocation8 + $0x2fc] sm:$0xf]
    %v2356 = vld [vmem:[#allocation8 + $0x300] sm:$0xf]
    %v2357 = vld [vmem:[#allocation8 + $0x304] sm:$0xf]
    %v2358 = vld [vmem:[#allocation8 + $0x308] sm:$0xf]
    %v2359 = vld [vmem:[#allocation8 + $0x30c] sm:$0xf]
    %v2360 = vld [vmem:[#allocation8 + $0x310] sm:$0xf]
    %v2361 = vld [vmem:[#allocation8 + $0x314] sm:$0xf]
    %v2362 = vld [vmem:[#allocation8 + $0x318] sm:$0xf]
    %v2363 = vld [vmem:[#allocation8 + $0x31c] sm:$0xf]
    %v2364 = vld [vmem:[#allocation8 + $0x320] sm:$0xf]
    %v2365 = vld [vmem:[#allocation8 + $0x324] sm:$0xf]
    %v2366 = vld [vmem:[#allocation8 + $0x328] sm:$0xf]
    %v2367 = vld [vmem:[#allocation8 + $0x32c] sm:$0xf]
    %v2368 = vld [vmem:[#allocation8 + $0x330] sm:$0xf]
    %v2369 = vld [vmem:[#allocation8 + $0x334] sm:$0xf]
    %v2370 = vld [vmem:[#allocation8 + $0x338] sm:$0xf]
    %v2371 = vld [vmem:[#allocation8 + $0x33c] sm:$0xf]
    %v2372 = vld [vmem:[#allocation8 + $0x340] sm:$0xf]
    %v2373 = vld [vmem:[#allocation8 + $0x344] sm:$0xf]
    %v2374 = vld [vmem:[#allocation8 + $0x348] sm:$0xf]
    %v2375 = vld [vmem:[#allocation8 + $0x34c] sm:$0xf]
    %v2376 = vld [vmem:[#allocation8 + $0x350] sm:$0xf]
    %v2377 = vld [vmem:[#allocation8 + $0x354] sm:$0xf]
    %v2378 = vld [vmem:[#allocation8 + $0x358] sm:$0xf]
    %v2379 = vld [vmem:[#allocation8 + $0x35c] sm:$0xf]
    %v2380 = vld [vmem:[#allocation8 + $0x360] sm:$0xf]
    %v2381 = vld [vmem:[#allocation8 + $0x364] sm:$0xf]
    %v2382 = vld [vmem:[#allocation8 + $0x368] sm:$0xf]
    %v2383 = vld [vmem:[#allocation8 + $0x36c] sm:$0xf]
    %v2384 = vld [vmem:[#allocation8 + $0x370] sm:$0xf]
    %v2385 = vld [vmem:[#allocation8 + $0x374] sm:$0xf]
    %v2386 = vld [vmem:[#allocation8 + $0x378] sm:$0xf]
    %v2387 = vld [vmem:[#allocation8 + $0x37c] sm:$0xf]
    %v2388 = vld [vmem:[#allocation8 + $0x380] sm:$0xf]
    %v2389 = vld [vmem:[#allocation8 + $0x384] sm:$0xf]
    %v2390 = vld [vmem:[#allocation8 + $0x388] sm:$0xf]
    %v2391 = vld [vmem:[#allocation8 + $0x38c] sm:$0xf]
    %v2392 = vld [vmem:[#allocation8 + $0x390] sm:$0xf]
    %v2393 = vld [vmem:[#allocation8 + $0x394] sm:$0xf]
    %v2394 = vld [vmem:[#allocation8 + $0x398] sm:$0xf]
    %v2395 = vld [vmem:[#allocation8 + $0x39c] sm:$0xf]
    %v2396 = vld [vmem:[#allocation8 + $0x3a0] sm:$0xf]
    %v2397 = vld [vmem:[#allocation8 + $0x3a4] sm:$0xf]
    %v2398 = vld [vmem:[#allocation8 + $0x3a8] sm:$0xf]
    %v2399 = vld [vmem:[#allocation8 + $0x3ac] sm:$0xf]
    %v2400 = vld [vmem:[#allocation8 + $0x3b0] sm:$0xf]
    %v2401 = vld [vmem:[#allocation8 + $0x3b4] sm:$0xf]
    %v2402 = vld [vmem:[#allocation8 + $0x3b8] sm:$0xf]
    %v2403 = vld [vmem:[#allocation8 + $0x3bc] sm:$0xf]
    %v2404 = vld [vmem:[#allocation8 + $0x3c0] sm:$0xf]
    %v2405 = vld [vmem:[#allocation8 + $0x3c4] sm:$0xf]
    %v2406 = vld [vmem:[#allocation8 + $0x3c8] sm:$0xf]
    %v2407 = vld [vmem:[#allocation8 + $0x3cc] sm:$0xf]
    %v2408 = vld [vmem:[#allocation8 + $0x3d0] sm:$0xf]
    %v2409 = vld [vmem:[#allocation8 + $0x3d4] sm:$0xf]
    %v2410 = vld [vmem:[#allocation8 + $0x3d8] sm:$0xf]
    %v2411 = vld [vmem:[#allocation8 + $0x3dc] sm:$0xf]
    %v2412 = vld [vmem:[#allocation8 + $0x3e0] sm:$0xf]
    %v2413 = vld [vmem:[#allocation8 + $0x3e4] sm:$0xf]
    %v2414 = vld [vmem:[#allocation8 + $0x3e8] sm:$0xf]
    %v2415 = vld [vmem:[#allocation8 + $0x3ec] sm:$0xf]
    %v2416 = vld [vmem:[#allocation8 + $0x3f0] sm:$0xf]
    %v2417 = vld [vmem:[#allocation8 + $0x3f4] sm:$0xf]
    %v2418 = vld [vmem:[#allocation8 + $0x3f8] sm:$0xf]
    %v2419 = vld [vmem:[#allocation8 + $0x3fc] sm:$0xf]
    %v2420 = vld [vmem:[#allocation8 + $0x400] sm:$0xf]
    %v2421 = vld [vmem:[#allocation8 + $0x404] sm:$0xf]
    %v2422 = vld [vmem:[#allocation8 + $0x408] sm:$0xf]
    %v2423 = vld [vmem:[#allocation8 + $0x40c] sm:$0xf]
    %v2424 = vld [vmem:[#allocation8 + $0x410] sm:$0xf]
    %v2425 = vld [vmem:[#allocation8 + $0x414] sm:$0xf]
    %v2426 = vld [vmem:[#allocation8 + $0x418] sm:$0xf]
    %v2427 = vld [vmem:[#allocation8 + $0x41c] sm:$0xf]
    %v2428 = vld [vmem:[#allocation8 + $0x420] sm:$0xf]
    %v2429 = vld [vmem:[#allocation8 + $0x424] sm:$0xf]
    %v2430 = vld [vmem:[#allocation8 + $0x428] sm:$0xf]
    %v2431 = vld [vmem:[#allocation8 + $0x42c] sm:$0xf]
    %v2432 = vld [vmem:[#allocation8 + $0x430] sm:$0xf]
    %v2433 = vld [vmem:[#allocation8 + $0x434] sm:$0xf]
    %v2434 = vld [vmem:[#allocation8 + $0x438] sm:$0xf]
    %v2435 = vld [vmem:[#allocation8 + $0x43c] sm:$0xf]
    %v2436 = vld [vmem:[#allocation8 + $0x440] sm:$0xf]
    %v2437 = vld [vmem:[#allocation8 + $0x444] sm:$0xf]
    %v2438 = vld [vmem:[#allocation8 + $0x448] sm:$0xf]
    %v2439 = vld [vmem:[#allocation8 + $0x44c] sm:$0xf]
    %v2440 = vld [vmem:[#allocation8 + $0x450] sm:$0xf]
    %v2441 = vld [vmem:[#allocation8 + $0x454] sm:$0xf]
    %v2442 = vld [vmem:[#allocation8 + $0x458] sm:$0xf]
    %v2443 = vld [vmem:[#allocation8 + $0x45c] sm:$0xf]
    %v2444 = vld [vmem:[#allocation8 + $0x460] sm:$0xf]
    %v2445 = vld [vmem:[#allocation8 + $0x464] sm:$0xf]
    %v2446 = vld [vmem:[#allocation8 + $0x468] sm:$0xf]
    %v2447 = vld [vmem:[#allocation8 + $0x46c] sm:$0xf]
    %v2448 = vld [vmem:[#allocation8 + $0x470] sm:$0xf]
    %v2449 = vld [vmem:[#allocation8 + $0x474] sm:$0xf]
    %v2450 = vld [vmem:[#allocation8 + $0x478] sm:$0xf]
    %v2451 = vld [vmem:[#allocation8 + $0x47c] sm:$0xf]
    %v2452 = vsub.f32 0.0, %v2162
    %v2453 = vsub.f32 0.0, %v2163
    %v2454 = vmul.f32 %v2452, 1.442695
    %v2455 = vpow.pop %v2454
    %v2456 = vmul.f32 %v2453, 1.442695
    %v2457 = vpow.pop %v2456
    %v2458 = vadd.f32 %v2455, 1.0
    %v2459 = vadd.f32 %v2457, 1.0
    %v2460 = vrcp.pop %v2458
    %v2461 = vmul.f32 1.0, %v2460
    %v2462 = vrcp.pop %v2459
    %v2463 = vmul.f32 1.0, %v2462
    %v2464 = vmul.f32 %v2162, %v2461
    %v2465 = vmul.f32 %v2163, %v2463
    %v2466 = vsub.f32 %v2162, -2.2
    %v2467 = vsub.f32 %v2163, -2.2
    %v2468 = vmul.f32 %v2466, 2.5
    %v2469 = vmul.f32 %v2467, 2.5
    %v2470 = vfloor.f32 %v2468
    %v2471 = vfloor.f32 %v2469
    %v2472 = vsub.f32 %v2468, %v2470
    %v2473 = vsub.f32 %v2469, %v2471
    %v2474 = vmul.f32 %v2472, %v2472
    %v2475 = vmul.f32 %v2473, %v2473
    %v2476 = vmul.f32 %v2474, %v2472
    %v2477 = vmul.f32 %v2475, %v2473
    %v2478 = vsub.f32 1.0, %v2472
    %v2479 = vsub.f32 1.0, %v2473
    %v2480 = vmul.f32 %v2478, %v2478
    %v2481 = vmul.f32 %v2479, %v2479
    %v2482 = vmul.f32 %v2480, %v2478
    %v2483 = vmul.f32 %v2481, %v2479
    %v2484 = vmul.f32 %v2482, 0.16666667
    %v2485 = vmul.f32 %v2483, 0.16666667
    %v2486 = vmul.f32 %v2476, 0.5
    %v2487 = vmul.f32 %v2477, 0.5
    %v2488 = vsub.f32 %v2486, %v2474
    %v2489 = vsub.f32 %v2487, %v2475
    %v2490 = vadd.f32 %v2488, 0.6666667
    %v2491 = vadd.f32 %v2489, 0.6666667
    %v2492 = vmul.f32 %v2476, -0.5
    %v2493 = vmul.f32 %v2477, -0.5
    %v2494 = vmul.f32 %v2474, 0.5
    %v2495 = vmul.f32 %v2475, 0.5
    %v2496 = vadd.f32 %v2492, %v2494
    %v2497 = vadd.f32 %v2493, %v2495
    %v2498 = vmul.f32 %v2472, 0.5
    %v2499 = vmul.f32 %v2473, 0.5
    %v2500 = vadd.f32 %v2496, %v2498
    %v2501 = vadd.f32 %v2497, %v2499
    %v2502 = vadd.f32 %v2500, 0.16666667
    %v2503 = vadd.f32 %v2501, 0.16666667
    %v2504 = vmul.f32 %v2476, 0.16666667
    %v2505 = vmul.f32 %v2477, 0.16666667
    %vm2506 = vcmp.eq.f32.partialorder %v2470, 0.0
    %vm2507 = vcmp.eq.f32.partialorder %v2471, 0.0
    %vm2508 = vcmp.eq.f32.partialorder %v2470, 1.0
    %vm2509 = vcmp.eq.f32.partialorder %v2471, 1.0
    %vm2510 = vcmp.eq.f32.partialorder %v2470, 2.0
    %vm2511 = vcmp.eq.f32.partialorder %v2471, 2.0
    %vm2512 = vcmp.eq.f32.partialorder %v2470, 3.0
    %vm2513 = vcmp.eq.f32.partialorder %v2471, 3.0
    %v2514 = vsel %vm2512, %v2484, 0.0
    %v2515 = vsel %vm2513, %v2485, 0.0
    %v2516 = vsel %vm2510, %v2490, %v2514
    %v2517 = vsel %vm2511, %v2491, %v2515
    %v2518 = vsel %vm2508, %v2502, %v2516
    %v2519 = vsel %vm2509, %v2503, %v2517
    %v2520 = vsel %vm2506, %v2504, %v2518
    %v2521 = vsel %vm2507, %v2505, %v2519
    %vm2522 = vcmp.eq.f32.partialorder %v2470, 4.0
    %vm2523 = vcmp.eq.f32.partialorder %v2471, 4.0
    %v2524 = vsel %vm2522, %v2484, 0.0
    %v2525 = vsel %vm2523, %v2485, 0.0
    %v2526 = vsel %vm2512, %v2490, %v2524
    %v2527 = vsel %vm2513, %v2491, %v2525
    %v2528 = vsel %vm2510, %v2502, %v2526
    %v2529 = vsel %vm2511, %v2503, %v2527
    %v2530 = vsel %vm2508, %v2504, %v2528
    %v2531 = vsel %vm2509, %v2505, %v2529
    %vm2532 = vcmp.eq.f32.partialorder %v2470, 5.0
    %vm2533 = vcmp.eq.f32.partialorder %v2471, 5.0
    %v2534 = vsel %vm2532, %v2484, 0.0
    %v2535 = vsel %vm2533, %v2485, 0.0
    %v2536 = vsel %vm2522, %v2490, %v2534
    %v2537 = vsel %vm2523, %v2491, %v2535
    %v2538 = vsel %vm2512, %v2502, %v2536
    %v2539 = vsel %vm2513, %v2503, %v2537
    %v2540 = vsel %vm2510, %v2504, %v2538
    %v2541 = vsel %vm2511, %v2505, %v2539
    %vm2542 = vcmp.eq.f32.partialorder %v2470, 6.0
    %vm2543 = vcmp.eq.f32.partialorder %v2471, 6.0
    %v2544 = vsel %vm2542, %v2484, 0.0
    %v2545 = vsel %vm2543, %v2485, 0.0
    %v2546 = vsel %vm2532, %v2490, %v2544
    %v2547 = vsel %vm2533, %v2491, %v2545
    %v2548 = vsel %vm2522, %v2502, %v2546
    %v2549 = vsel %vm2523, %v2503, %v2547
    %v2550 = vsel %vm2512, %v2504, %v2548
    %v2551 = vsel %vm2513, %v2505, %v2549
    %vm2552 = vcmp.eq.f32.partialorder %v2470, 7.0
    %vm2553 = vcmp.eq.f32.partialorder %v2471, 7.0
    %v2554 = vsel %vm2552, %v2484, 0.0
    %v2555 = vsel %vm2553, %v2485, 0.0
    %v2556 = vsel %vm2542, %v2490, %v2554
    %v2557 = vsel %vm2543, %v2491, %v2555
    %v2558 = vsel %vm2532, %v2502, %v2556
    %v2559 = vsel %vm2533, %v2503, %v2557
    %v2560 = vsel %vm2522, %v2504, %v2558
    %v2561 = vsel %vm2523, %v2505, %v2559
    %vm2562 = vcmp.eq.f32.partialorder %v2470, 8.0
    %vm2563 = vcmp.eq.f32.partialorder %v2471, 8.0
    %v2564 = vsel %vm2562, %v2484, 0.0
    %v2565 = vsel %vm2563, %v2485, 0.0
    %v2566 = vsel %vm2552, %v2490, %v2564
    %v2567 = vsel %vm2553, %v2491, %v2565
    %v2568 = vsel %vm2542, %v2502, %v2566
    %v2569 = vsel %vm2543, %v2503, %v2567
    %v2570 = vsel %vm2532, %v2504, %v2568
    %v2571 = vsel %vm2533, %v2505, %v2569
    %vm2572 = vcmp.eq.f32.partialorder %v2470, 9.0
    %vm2573 = vcmp.eq.f32.partialorder %v2471, 9.0
    %v2574 = vsel %vm2572, %v2484, 0.0
    %v2575 = vsel %vm2573, %v2485, 0.0
    %v2576 = vsel %vm2562, %v2490, %v2574
    %v2577 = vsel %vm2563, %v2491, %v2575
    %v2578 = vsel %vm2552, %v2502, %v2576
    %v2579 = vsel %vm2553, %v2503, %v2577
    %v2580 = vsel %vm2542, %v2504, %v2578
    %v2581 = vsel %vm2543, %v2505, %v2579
    %vm2582 = vcmp.eq.f32.partialorder %v2470, 10.0
    %vm2583 = vcmp.eq.f32.partialorder %v2471, 10.0
    %v2584 = vsel %vm2582, %v2484, 0.0
    %v2585 = vsel %vm2583, %v2485, 0.0
    %v2586 = vsel %vm2572, %v2490, %v2584
    %v2587 = vsel %vm2573, %v2491, %v2585
    %v2588 = vsel %vm2562, %v2502, %v2586
    %v2589 = vsel %vm2563, %v2503, %v2587
    %v2590 = vsel %vm2552, %v2504, %v2588
    %v2591 = vsel %vm2553, %v2505, %v2589
    %v2592 = vpack.c.bf16 %v2464, %v2464
    %v2593 = vpack.c.bf16 %v2465, %v2465
    %v2594 = vpack.c.bf16 %v2520, %v2520
    %v2595 = vpack.c.bf16 %v2521, %v2521
    %v2596 = vpack.c.bf16 %v2530, %v2530
    %v2597 = vpack.c.bf16 %v2531, %v2531
    %v2598 = vpack.c.bf16 %v2540, %v2540
    %v2599 = vpack.c.bf16 %v2541, %v2541
    %v2600 = vpack.c.bf16 %v2550, %v2550
    %v2601 = vpack.c.bf16 %v2551, %v2551
    %v2602 = vpack.c.bf16 %v2560, %v2560
    %v2603 = vpack.c.bf16 %v2561, %v2561
    %v2604 = vpack.c.bf16 %v2570, %v2570
    %v2605 = vpack.c.bf16 %v2571, %v2571
    %v2606 = vpack.c.bf16 %v2580, %v2580
    %v2607 = vpack.c.bf16 %v2581, %v2581
    %v2608 = vpack.c.bf16 %v2590, %v2590
    %v2609 = vpack.c.bf16 %v2591, %v2591
    %v2898 = vunpack.c.l.b16 %v2164
    %v2899 = vunpack.c.l.b16 %v2165
    %v2900 = vunpack.c.l.b16 %v2166
    %v2901 = vunpack.c.l.b16 %v2167
    %v2902 = vunpack.c.l.b16 %v2168
    %v2903 = vunpack.c.l.b16 %v2169
    %v2904 = vunpack.c.l.b16 %v2170
    %v2905 = vunpack.c.l.b16 %v2171
    %v2906 = vunpack.c.l.b16 %v2172
    %v2907 = vunpack.c.l.b16 %v2173
    %v2908 = vunpack.c.l.b16 %v2174
    %v2909 = vunpack.c.l.b16 %v2175
    %v2910 = vunpack.c.l.b16 %v2176
    %v2911 = vunpack.c.l.b16 %v2177
    %v2912 = vunpack.c.l.b16 %v2178
    %v2913 = vunpack.c.l.b16 %v2179
    %v2914 = vunpack.c.l.b16 %v2180
    %v2915 = vunpack.c.l.b16 %v2181
    %v2916 = vunpack.c.l.b16 %v2182
    %v2917 = vunpack.c.l.b16 %v2183
    %v2918 = vunpack.c.l.b16 %v2184
    %v2919 = vunpack.c.l.b16 %v2185
    %v2920 = vunpack.c.l.b16 %v2186
    %v2921 = vunpack.c.l.b16 %v2187
    %v2922 = vunpack.c.l.b16 %v2188
    %v2923 = vunpack.c.l.b16 %v2189
    %v2924 = vunpack.c.l.b16 %v2190
    %v2925 = vunpack.c.l.b16 %v2191
    %v2926 = vunpack.c.l.b16 %v2192
    %v2927 = vunpack.c.l.b16 %v2193
    %v2928 = vunpack.c.l.b16 %v2194
    %v2929 = vunpack.c.l.b16 %v2195
    %v2930 = vunpack.c.l.b16 %v2196
    %v2931 = vunpack.c.l.b16 %v2197
    %v2932 = vunpack.c.l.b16 %v2198
    %v2933 = vunpack.c.l.b16 %v2199
    %v2934 = vunpack.c.l.b16 %v2200
    %v2935 = vunpack.c.l.b16 %v2201
    %v2936 = vunpack.c.l.b16 %v2202
    %v2937 = vunpack.c.l.b16 %v2203
    %v2938 = vunpack.c.l.b16 %v2204
    %v2939 = vunpack.c.l.b16 %v2205
    %v2940 = vunpack.c.l.b16 %v2206
    %v2941 = vunpack.c.l.b16 %v2207
    %v2942 = vunpack.c.l.b16 %v2208
    %v2943 = vunpack.c.l.b16 %v2209
    %v2944 = vunpack.c.l.b16 %v2210
    %v2945 = vunpack.c.l.b16 %v2211
    %v2946 = vunpack.c.l.b16 %v2212
    %v2947 = vunpack.c.l.b16 %v2213
    %v2948 = vunpack.c.l.b16 %v2214
    %v2949 = vunpack.c.l.b16 %v2215
    %v2950 = vunpack.c.l.b16 %v2216
    %v2951 = vunpack.c.l.b16 %v2217
    %v2952 = vunpack.c.l.b16 %v2218
    %v2953 = vunpack.c.l.b16 %v2219
    %v2954 = vunpack.c.l.b16 %v2220
    %v2955 = vunpack.c.l.b16 %v2221
    %v2956 = vunpack.c.l.b16 %v2222
    %v2957 = vunpack.c.l.b16 %v2223
    %v2958 = vunpack.c.l.b16 %v2224
    %v2959 = vunpack.c.l.b16 %v2225
    %v2960 = vunpack.c.l.b16 %v2226
    %v2961 = vunpack.c.l.b16 %v2227
    %v2962 = vunpack.c.l.b16 %v2228
    %v2963 = vunpack.c.l.b16 %v2229
    %v2964 = vunpack.c.l.b16 %v2230
    %v2965 = vunpack.c.l.b16 %v2231
    %v2966 = vunpack.c.l.b16 %v2232
    %v2967 = vunpack.c.l.b16 %v2233
    %v2968 = vunpack.c.l.b16 %v2234
    %v2969 = vunpack.c.l.b16 %v2235
    %v2970 = vunpack.c.l.b16 %v2236
    %v2971 = vunpack.c.l.b16 %v2237
    %v2972 = vunpack.c.l.b16 %v2238
    %v2973 = vunpack.c.l.b16 %v2239
    %v2974 = vunpack.c.l.b16 %v2240
    %v2975 = vunpack.c.l.b16 %v2241
    %v2976 = vunpack.c.l.b16 %v2242
    %v2977 = vunpack.c.l.b16 %v2243
    %v2978 = vunpack.c.l.b16 %v2244
    %v2979 = vunpack.c.l.b16 %v2245
    %v2980 = vunpack.c.l.b16 %v2246
    %v2981 = vunpack.c.l.b16 %v2247
    %v2982 = vunpack.c.l.b16 %v2248
    %v2983 = vunpack.c.l.b16 %v2249
    %v2984 = vunpack.c.l.b16 %v2250
    %v2985 = vunpack.c.l.b16 %v2251
    %v2986 = vunpack.c.l.b16 %v2252
    %v2987 = vunpack.c.l.b16 %v2253
    %v2988 = vunpack.c.l.b16 %v2254
    %v2989 = vunpack.c.l.b16 %v2255
    %v2990 = vunpack.c.l.b16 %v2256
    %v2991 = vunpack.c.l.b16 %v2257
    %v2992 = vunpack.c.l.b16 %v2258
    %v2993 = vunpack.c.l.b16 %v2259
    %v2994 = vunpack.c.l.b16 %v2260
    %v2995 = vunpack.c.l.b16 %v2261
    %v2996 = vunpack.c.l.b16 %v2262
    %v2997 = vunpack.c.l.b16 %v2263
    %v2998 = vunpack.c.l.b16 %v2264
    %v2999 = vunpack.c.l.b16 %v2265
    %v3000 = vunpack.c.l.b16 %v2266
    %v3001 = vunpack.c.l.b16 %v2267
    %v3002 = vunpack.c.l.b16 %v2268
    %v3003 = vunpack.c.l.b16 %v2269
    %v3004 = vunpack.c.l.b16 %v2270
    %v3005 = vunpack.c.l.b16 %v2271
    %v3006 = vunpack.c.l.b16 %v2272
    %v3007 = vunpack.c.l.b16 %v2273
    %v3008 = vunpack.c.l.b16 %v2274
    %v3009 = vunpack.c.l.b16 %v2275
    %v3010 = vunpack.c.l.b16 %v2276
    %v3011 = vunpack.c.l.b16 %v2277
    %v3012 = vunpack.c.l.b16 %v2278
    %v3013 = vunpack.c.l.b16 %v2279
    %v3014 = vunpack.c.l.b16 %v2280
    %v3015 = vunpack.c.l.b16 %v2281
    %v3016 = vunpack.c.l.b16 %v2282
    %v3017 = vunpack.c.l.b16 %v2283
    %v3018 = vunpack.c.l.b16 %v2284
    %v3019 = vunpack.c.l.b16 %v2285
    %v3020 = vunpack.c.l.b16 %v2286
    %v3021 = vunpack.c.l.b16 %v2287
    %v3022 = vunpack.c.l.b16 %v2288
    %v3023 = vunpack.c.l.b16 %v2289
    %v3024 = vunpack.c.l.b16 %v2290
    %v3025 = vunpack.c.l.b16 %v2291
    %v3026 = vunpack.c.l.b16 %v2292
    %v3027 = vunpack.c.l.b16 %v2293
    %v3028 = vunpack.c.l.b16 %v2294
    %v3029 = vunpack.c.l.b16 %v2295
    %v3030 = vunpack.c.l.b16 %v2296
    %v3031 = vunpack.c.l.b16 %v2297
    %v3032 = vunpack.c.l.b16 %v2298
    %v3033 = vunpack.c.l.b16 %v2299
    %v3034 = vunpack.c.l.b16 %v2300
    %v3035 = vunpack.c.l.b16 %v2301
    %v3036 = vunpack.c.l.b16 %v2302
    %v3037 = vunpack.c.l.b16 %v2303
    %v3038 = vunpack.c.l.b16 %v2304
    %v3039 = vunpack.c.l.b16 %v2305
    %v3040 = vunpack.c.l.b16 %v2306
    %v3041 = vunpack.c.l.b16 %v2307
    %v3042 = vunpack.c.l.b16 %v2308
    %v3043 = vunpack.c.l.b16 %v2309
    %v3044 = vunpack.c.l.b16 %v2310
    %v3045 = vunpack.c.l.b16 %v2311
    %v3046 = vunpack.c.l.b16 %v2312
    %v3047 = vunpack.c.l.b16 %v2313
    %v3048 = vunpack.c.l.b16 %v2314
    %v3049 = vunpack.c.l.b16 %v2315
    %v3050 = vunpack.c.l.b16 %v2316
    %v3051 = vunpack.c.l.b16 %v2317
    %v3052 = vunpack.c.l.b16 %v2318
    %v3053 = vunpack.c.l.b16 %v2319
    %v3054 = vunpack.c.l.b16 %v2320
    %v3055 = vunpack.c.l.b16 %v2321
    %v3056 = vunpack.c.l.b16 %v2322
    %v3057 = vunpack.c.l.b16 %v2323
    %v3058 = vunpack.c.l.b16 %v2324
    %v3059 = vunpack.c.l.b16 %v2325
    %v3060 = vunpack.c.l.b16 %v2326
    %v3061 = vunpack.c.l.b16 %v2327
    %v3062 = vunpack.c.l.b16 %v2328
    %v3063 = vunpack.c.l.b16 %v2329
    %v3064 = vunpack.c.l.b16 %v2330
    %v3065 = vunpack.c.l.b16 %v2331
    %v3066 = vunpack.c.l.b16 %v2332
    %v3067 = vunpack.c.l.b16 %v2333
    %v3068 = vunpack.c.l.b16 %v2334
    %v3069 = vunpack.c.l.b16 %v2335
    %v3070 = vunpack.c.l.b16 %v2336
    %v3071 = vunpack.c.l.b16 %v2337
    %v3072 = vunpack.c.l.b16 %v2338
    %v3073 = vunpack.c.l.b16 %v2339
    %v3074 = vunpack.c.l.b16 %v2340
    %v3075 = vunpack.c.l.b16 %v2341
    %v3076 = vunpack.c.l.b16 %v2342
    %v3077 = vunpack.c.l.b16 %v2343
    %v3078 = vunpack.c.l.b16 %v2344
    %v3079 = vunpack.c.l.b16 %v2345
    %v3080 = vunpack.c.l.b16 %v2346
    %v3081 = vunpack.c.l.b16 %v2347
    %v3082 = vunpack.c.l.b16 %v2348
    %v3083 = vunpack.c.l.b16 %v2349
    %v3084 = vunpack.c.l.b16 %v2350
    %v3085 = vunpack.c.l.b16 %v2351
    %v3086 = vunpack.c.l.b16 %v2352
    %v3087 = vunpack.c.l.b16 %v2353
    %v3088 = vunpack.c.l.b16 %v2354
    %v3089 = vunpack.c.l.b16 %v2355
    %v3090 = vunpack.c.l.b16 %v2356
    %v3091 = vunpack.c.l.b16 %v2357
    %v3092 = vunpack.c.l.b16 %v2358
    %v3093 = vunpack.c.l.b16 %v2359
    %v3094 = vunpack.c.l.b16 %v2360
    %v3095 = vunpack.c.l.b16 %v2361
    %v3096 = vunpack.c.l.b16 %v2362
    %v3097 = vunpack.c.l.b16 %v2363
    %v3098 = vunpack.c.l.b16 %v2364
    %v3099 = vunpack.c.l.b16 %v2365
    %v3100 = vunpack.c.l.b16 %v2366
    %v3101 = vunpack.c.l.b16 %v2367
    %v3102 = vunpack.c.l.b16 %v2368
    %v3103 = vunpack.c.l.b16 %v2369
    %v3104 = vunpack.c.l.b16 %v2370
    %v3105 = vunpack.c.l.b16 %v2371
    %v3106 = vunpack.c.l.b16 %v2372
    %v3107 = vunpack.c.l.b16 %v2373
    %v3108 = vunpack.c.l.b16 %v2374
    %v3109 = vunpack.c.l.b16 %v2375
    %v3110 = vunpack.c.l.b16 %v2376
    %v3111 = vunpack.c.l.b16 %v2377
    %v3112 = vunpack.c.l.b16 %v2378
    %v3113 = vunpack.c.l.b16 %v2379
    %v3114 = vunpack.c.l.b16 %v2380
    %v3115 = vunpack.c.l.b16 %v2381
    %v3116 = vunpack.c.l.b16 %v2382
    %v3117 = vunpack.c.l.b16 %v2383
    %v3118 = vunpack.c.l.b16 %v2384
    %v3119 = vunpack.c.l.b16 %v2385
    %v3120 = vunpack.c.l.b16 %v2386
    %v3121 = vunpack.c.l.b16 %v2387
    %v3122 = vunpack.c.l.b16 %v2388
    %v3123 = vunpack.c.l.b16 %v2389
    %v3124 = vunpack.c.l.b16 %v2390
    %v3125 = vunpack.c.l.b16 %v2391
    %v3126 = vunpack.c.l.b16 %v2392
    %v3127 = vunpack.c.l.b16 %v2393
    %v3128 = vunpack.c.l.b16 %v2394
    %v3129 = vunpack.c.l.b16 %v2395
    %v3130 = vunpack.c.l.b16 %v2396
    %v3131 = vunpack.c.l.b16 %v2397
    %v3132 = vunpack.c.l.b16 %v2398
    %v3133 = vunpack.c.l.b16 %v2399
    %v3134 = vunpack.c.l.b16 %v2400
    %v3135 = vunpack.c.l.b16 %v2401
    %v3136 = vunpack.c.l.b16 %v2402
    %v3137 = vunpack.c.l.b16 %v2403
    %v3138 = vunpack.c.l.b16 %v2404
    %v3139 = vunpack.c.l.b16 %v2405
    %v3140 = vunpack.c.l.b16 %v2406
    %v3141 = vunpack.c.l.b16 %v2407
    %v3142 = vunpack.c.l.b16 %v2408
    %v3143 = vunpack.c.l.b16 %v2409
    %v3144 = vunpack.c.l.b16 %v2410
    %v3145 = vunpack.c.l.b16 %v2411
    %v3146 = vunpack.c.l.b16 %v2412
    %v3147 = vunpack.c.l.b16 %v2413
    %v3148 = vunpack.c.l.b16 %v2414
    %v3149 = vunpack.c.l.b16 %v2415
    %v3150 = vunpack.c.l.b16 %v2416
    %v3151 = vunpack.c.l.b16 %v2417
    %v3152 = vunpack.c.l.b16 %v2418
    %v3153 = vunpack.c.l.b16 %v2419
    %v3154 = vunpack.c.l.b16 %v2420
    %v3155 = vunpack.c.l.b16 %v2421
    %v3156 = vunpack.c.l.b16 %v2422
    %v3157 = vunpack.c.l.b16 %v2423
    %v3158 = vunpack.c.l.b16 %v2424
    %v3159 = vunpack.c.l.b16 %v2425
    %v3160 = vunpack.c.l.b16 %v2426
    %v3161 = vunpack.c.l.b16 %v2427
    %v3162 = vunpack.c.l.b16 %v2428
    %v3163 = vunpack.c.l.b16 %v2429
    %v3164 = vunpack.c.l.b16 %v2430
    %v3165 = vunpack.c.l.b16 %v2431
    %v3166 = vunpack.c.l.b16 %v2432
    %v3167 = vunpack.c.l.b16 %v2433
    %v3168 = vunpack.c.l.b16 %v2434
    %v3169 = vunpack.c.l.b16 %v2435
    %v3170 = vunpack.c.l.b16 %v2436
    %v3171 = vunpack.c.l.b16 %v2437
    %v3172 = vunpack.c.l.b16 %v2438
    %v3173 = vunpack.c.l.b16 %v2439
    %v3174 = vunpack.c.l.b16 %v2440
    %v3175 = vunpack.c.l.b16 %v2441
    %v3176 = vunpack.c.l.b16 %v2442
    %v3177 = vunpack.c.l.b16 %v2443
    %v3178 = vunpack.c.l.b16 %v2444
    %v3179 = vunpack.c.l.b16 %v2445
    %v3180 = vunpack.c.l.b16 %v2446
    %v3181 = vunpack.c.l.b16 %v2447
    %v3182 = vunpack.c.l.b16 %v2448
    %v3183 = vunpack.c.l.b16 %v2449
    %v3184 = vunpack.c.l.b16 %v2450
    %v3185 = vunpack.c.l.b16 %v2451
    %v3186 = vpack.c.b16 %v2899, %v2898
    %v3187 = vpack.c.b16 %v2901, %v2900
    %v3188 = vpack.c.b16 %v2903, %v2902
    %v3189 = vpack.c.b16 %v2905, %v2904
    %v3190 = vpack.c.b16 %v2907, %v2906
    %v3191 = vpack.c.b16 %v2909, %v2908
    %v3192 = vpack.c.b16 %v2911, %v2910
    %v3193 = vpack.c.b16 %v2913, %v2912
    %v3194 = vpack.c.b16 %v2915, %v2914
    %v3195 = vpack.c.b16 %v2917, %v2916
    %v3196 = vpack.c.b16 %v2919, %v2918
    %v3197 = vpack.c.b16 %v2921, %v2920
    %v3198 = vpack.c.b16 %v2923, %v2922
    %v3199 = vpack.c.b16 %v2925, %v2924
    %v3200 = vpack.c.b16 %v2927, %v2926
    %v3201 = vpack.c.b16 %v2929, %v2928
    %v3202 = vpack.c.b16 %v2931, %v2930
    %v3203 = vpack.c.b16 %v2933, %v2932
    %v3204 = vpack.c.b16 %v2935, %v2934
    %v3205 = vpack.c.b16 %v2937, %v2936
    %v3206 = vpack.c.b16 %v2939, %v2938
    %v3207 = vpack.c.b16 %v2941, %v2940
    %v3208 = vpack.c.b16 %v2943, %v2942
    %v3209 = vpack.c.b16 %v2945, %v2944
    %v3210 = vpack.c.b16 %v2947, %v2946
    %v3211 = vpack.c.b16 %v2949, %v2948
    %v3212 = vpack.c.b16 %v2951, %v2950
    %v3213 = vpack.c.b16 %v2953, %v2952
    %v3214 = vpack.c.b16 %v2955, %v2954
    %v3215 = vpack.c.b16 %v2957, %v2956
    %v3216 = vpack.c.b16 %v2959, %v2958
    %v3217 = vpack.c.b16 %v2961, %v2960
    %v3218 = vpack.c.b16 %v2963, %v2962
    %v3219 = vpack.c.b16 %v2965, %v2964
    %v3220 = vpack.c.b16 %v2967, %v2966
    %v3221 = vpack.c.b16 %v2969, %v2968
    %v3222 = vpack.c.b16 %v2971, %v2970
    %v3223 = vpack.c.b16 %v2973, %v2972
    %v3224 = vpack.c.b16 %v2975, %v2974
    %v3225 = vpack.c.b16 %v2977, %v2976
    %v3226 = vpack.c.b16 %v2979, %v2978
    %v3227 = vpack.c.b16 %v2981, %v2980
    %v3228 = vpack.c.b16 %v2983, %v2982
    %v3229 = vpack.c.b16 %v2985, %v2984
    %v3230 = vpack.c.b16 %v2987, %v2986
    %v3231 = vpack.c.b16 %v2989, %v2988
    %v3232 = vpack.c.b16 %v2991, %v2990
    %v3233 = vpack.c.b16 %v2993, %v2992
    %v3234 = vpack.c.b16 %v2995, %v2994
    %v3235 = vpack.c.b16 %v2997, %v2996
    %v3236 = vpack.c.b16 %v2999, %v2998
    %v3237 = vpack.c.b16 %v3001, %v3000
    %v3238 = vpack.c.b16 %v3003, %v3002
    %v3239 = vpack.c.b16 %v3005, %v3004
    %v3240 = vpack.c.b16 %v3007, %v3006
    %v3241 = vpack.c.b16 %v3009, %v3008
    %v3242 = vpack.c.b16 %v3011, %v3010
    %v3243 = vpack.c.b16 %v3013, %v3012
    %v3244 = vpack.c.b16 %v3015, %v3014
    %v3245 = vpack.c.b16 %v3017, %v3016
    %v3246 = vpack.c.b16 %v3019, %v3018
    %v3247 = vpack.c.b16 %v3021, %v3020
    %v3248 = vpack.c.b16 %v3023, %v3022
    %v3249 = vpack.c.b16 %v3025, %v3024
    %v3250 = vpack.c.b16 %v3027, %v3026
    %v3251 = vpack.c.b16 %v3029, %v3028
    %v3252 = vpack.c.b16 %v3031, %v3030
    %v3253 = vpack.c.b16 %v3033, %v3032
    %v3254 = vpack.c.b16 %v3035, %v3034
    %v3255 = vpack.c.b16 %v3037, %v3036
    %v3256 = vpack.c.b16 %v3039, %v3038
    %v3257 = vpack.c.b16 %v3041, %v3040
    %v3258 = vpack.c.b16 %v3043, %v3042
    %v3259 = vpack.c.b16 %v3045, %v3044
    %v3260 = vpack.c.b16 %v3047, %v3046
    %v3261 = vpack.c.b16 %v3049, %v3048
    %v3262 = vpack.c.b16 %v3051, %v3050
    %v3263 = vpack.c.b16 %v3053, %v3052
    %v3264 = vpack.c.b16 %v3055, %v3054
    %v3265 = vpack.c.b16 %v3057, %v3056
    %v3266 = vpack.c.b16 %v3059, %v3058
    %v3267 = vpack.c.b16 %v3061, %v3060
    %v3268 = vpack.c.b16 %v3063, %v3062
    %v3269 = vpack.c.b16 %v3065, %v3064
    %v3270 = vpack.c.b16 %v3067, %v3066
    %v3271 = vpack.c.b16 %v3069, %v3068
    %v3272 = vpack.c.b16 %v3071, %v3070
    %v3273 = vpack.c.b16 %v3073, %v3072
    %v3274 = vpack.c.b16 %v3075, %v3074
    %v3275 = vpack.c.b16 %v3077, %v3076
    %v3276 = vpack.c.b16 %v3079, %v3078
    %v3277 = vpack.c.b16 %v3081, %v3080
    %v3278 = vpack.c.b16 %v3083, %v3082
    %v3279 = vpack.c.b16 %v3085, %v3084
    %v3280 = vpack.c.b16 %v3087, %v3086
    %v3281 = vpack.c.b16 %v3089, %v3088
    %v3282 = vpack.c.b16 %v3091, %v3090
    %v3283 = vpack.c.b16 %v3093, %v3092
    %v3284 = vpack.c.b16 %v3095, %v3094
    %v3285 = vpack.c.b16 %v3097, %v3096
    %v3286 = vpack.c.b16 %v3099, %v3098
    %v3287 = vpack.c.b16 %v3101, %v3100
    %v3288 = vpack.c.b16 %v3103, %v3102
    %v3289 = vpack.c.b16 %v3105, %v3104
    %v3290 = vpack.c.b16 %v3107, %v3106
    %v3291 = vpack.c.b16 %v3109, %v3108
    %v3292 = vpack.c.b16 %v3111, %v3110
    %v3293 = vpack.c.b16 %v3113, %v3112
    %v3294 = vpack.c.b16 %v3115, %v3114
    %v3295 = vpack.c.b16 %v3117, %v3116
    %v3296 = vpack.c.b16 %v3119, %v3118
    %v3297 = vpack.c.b16 %v3121, %v3120
    %v3298 = vpack.c.b16 %v3123, %v3122
    %v3299 = vpack.c.b16 %v3125, %v3124
    %v3300 = vpack.c.b16 %v3127, %v3126
    %v3301 = vpack.c.b16 %v3129, %v3128
    %v3302 = vpack.c.b16 %v3131, %v3130
    %v3303 = vpack.c.b16 %v3133, %v3132
    %v3304 = vpack.c.b16 %v3135, %v3134
    %v3305 = vpack.c.b16 %v3137, %v3136
    %v3306 = vpack.c.b16 %v3139, %v3138
    %v3307 = vpack.c.b16 %v3141, %v3140
    %v3308 = vpack.c.b16 %v3143, %v3142
    %v3309 = vpack.c.b16 %v3145, %v3144
    %v3310 = vpack.c.b16 %v3147, %v3146
    %v3311 = vpack.c.b16 %v3149, %v3148
    %v3312 = vpack.c.b16 %v3151, %v3150
    %v3313 = vpack.c.b16 %v3153, %v3152
    %v3314 = vpack.c.b16 %v3155, %v3154
    %v3315 = vpack.c.b16 %v3157, %v3156
    %v3316 = vpack.c.b16 %v3159, %v3158
    %v3317 = vpack.c.b16 %v3161, %v3160
    %v3318 = vpack.c.b16 %v3163, %v3162
    %v3319 = vpack.c.b16 %v3165, %v3164
    %v3320 = vpack.c.b16 %v3167, %v3166
    %v3321 = vpack.c.b16 %v3169, %v3168
    %v3322 = vpack.c.b16 %v3171, %v3170
    %v3323 = vpack.c.b16 %v3173, %v3172
    %v3324 = vpack.c.b16 %v3175, %v3174
    %v3325 = vpack.c.b16 %v3177, %v3176
    %v3326 = vpack.c.b16 %v3179, %v3178
    %v3327 = vpack.c.b16 %v3181, %v3180
    %v3328 = vpack.c.b16 %v3183, %v3182
    %v3329 = vpack.c.b16 %v3185, %v3184
    %3474 = vmatprep.subr.bf16.mxu0 0
    %3475 = vmatpush1.bf16.msra.mxu0 %v3186
    %3476 = vmatprep.subr.bf16.mxu0 0
    %3477 = vmatpush1.bf16.msra.mxu0 %v3187
    %3478 = vmatprep.subr.bf16.mxu0 0
    %3479 = vmatpush1.bf16.msra.mxu0 %v3188
    %3480 = vmatprep.subr.bf16.mxu0 0
    %3481 = vmatpush1.bf16.msra.mxu0 %v3189
    %3482 = vmatprep.subr.bf16.mxu0 0
    %3483 = vmatpush1.bf16.msra.mxu0 %v3190
    %3484 = vmatprep.subr.bf16.mxu0 0
    %3485 = vmatpush1.bf16.msra.mxu0 %v3191
    %3486 = vmatprep.subr.bf16.mxu0 0
    %3487 = vmatpush1.bf16.msra.mxu0 %v3192
    %3488 = vmatprep.subr.bf16.mxu0 0
    %3489 = vmatpush1.bf16.msra.mxu0 %v3193
    %3490 = vmatprep.subr.bf16.mxu0 0
    %3491 = vmatpush1.bf16.msra.mxu0 %v3194
    %3492 = vmatprep.subr.bf16.mxu0 0
    %3493 = vmatpush1.bf16.msra.mxu0 %v3195
    %3494 = vmatprep.subr.bf16.mxu0 0
    %3495 = vmatpush1.bf16.msra.mxu0 %v3196
    %3496 = vmatprep.subr.bf16.mxu0 0
    %3497 = vmatpush1.bf16.msra.mxu0 %v3197
    %3498 = vmatprep.subr.bf16.mxu0 0
    %3499 = vmatpush1.bf16.msra.mxu0 %v3198
    %3500 = vmatprep.subr.bf16.mxu0 0
    %3501 = vmatpush1.bf16.msra.mxu0 %v3199
    %3502 = vmatprep.subr.bf16.mxu0 0
    %3503 = vmatpush1.bf16.msra.mxu0 %v3200
    %3504 = vmatprep.subr.bf16.mxu0 0
    %3505 = vmatpush1.bf16.msra.mxu0 %v3201
    %3506 = vmatprep.mubr.bf16.mxu0 %v2593
    %3507 = vmatmul.mubr.bf16.gmra.mrb[0].mxu0 %v2592
    %v3508 = vpop.f32.mrb[0].mxu0
    %v3509 = vadd.f32 0.0, %v3508
    %v3510 = vpop.f32.mrb[0].mxu0
    %v3511 = vpop.f32.mrb[0].mxu0
    %v3512 = vpop.f32.mrb[0].mxu0
    %3513 = vdwg.mxu0
    %3514 = vmatprep.subr.bf16.mxu0 0
    %3515 = vmatpush1.bf16.msra.mxu0 %v3202
    %3516 = vmatprep.subr.bf16.mxu0 0
    %3517 = vmatpush1.bf16.msra.mxu0 %v3203
    %3518 = vmatprep.subr.bf16.mxu0 0
    %3519 = vmatpush1.bf16.msra.mxu0 %v3204
    %3520 = vmatprep.subr.bf16.mxu0 0
    %3521 = vmatpush1.bf16.msra.mxu0 %v3205
    %3522 = vmatprep.subr.bf16.mxu0 0
    %3523 = vmatpush1.bf16.msra.mxu0 %v3206
    %3524 = vmatprep.subr.bf16.mxu0 0
    %3525 = vmatpush1.bf16.msra.mxu0 %v3207
    %3526 = vmatprep.subr.bf16.mxu0 0
    %3527 = vmatpush1.bf16.msra.mxu0 %v3208
    %3528 = vmatprep.subr.bf16.mxu0 0
    %3529 = vmatpush1.bf16.msra.mxu0 %v3209
    %3530 = vmatprep.subr.bf16.mxu0 0
    %3531 = vmatpush1.bf16.msra.mxu0 %v3210
    %3532 = vmatprep.subr.bf16.mxu0 0
    %3533 = vmatpush1.bf16.msra.mxu0 %v3211
    %3534 = vmatprep.subr.bf16.mxu0 0
    %3535 = vmatpush1.bf16.msra.mxu0 %v3212
    %3536 = vmatprep.subr.bf16.mxu0 0
    %3537 = vmatpush1.bf16.msra.mxu0 %v3213
    %3538 = vmatprep.subr.bf16.mxu0 0
    %3539 = vmatpush1.bf16.msra.mxu0 %v3214
    %3540 = vmatprep.subr.bf16.mxu0 0
    %3541 = vmatpush1.bf16.msra.mxu0 %v3215
    %3542 = vmatprep.subr.bf16.mxu0 0
    %3543 = vmatpush1.bf16.msra.mxu0 %v3216
    %3544 = vmatprep.subr.bf16.mxu0 0
    %3545 = vmatpush1.bf16.msra.mxu0 %v3217
    %3546 = vmatprep.mubr.bf16.mxu0 %v2595
    %3547 = vmatmul.mubr.bf16.gmra.mrb[0].mxu0 %v2594
    %v3548 = vpop.f32.mrb[0].mxu0
    %v3549 = vadd.f32 %v3509, %v3548
    %v3550 = vpop.f32.mrb[0].mxu0
    %v3551 = vpop.f32.mrb[0].mxu0
    %v3552 = vpop.f32.mrb[0].mxu0
    %3553 = vdwg.mxu0
    %3554 = vmatprep.subr.bf16.mxu0 0
    %3555 = vmatpush1.bf16.msra.mxu0 %v3218
    %3556 = vmatprep.subr.bf16.mxu0 0
    %3557 = vmatpush1.bf16.msra.mxu0 %v3219
    %3558 = vmatprep.subr.bf16.mxu0 0
    %3559 = vmatpush1.bf16.msra.mxu0 %v3220
    %3560 = vmatprep.subr.bf16.mxu0 0
    %3561 = vmatpush1.bf16.msra.mxu0 %v3221
    %3562 = vmatprep.subr.bf16.mxu0 0
    %3563 = vmatpush1.bf16.msra.mxu0 %v3222
    %3564 = vmatprep.subr.bf16.mxu0 0
    %3565 = vmatpush1.bf16.msra.mxu0 %v3223
    %3566 = vmatprep.subr.bf16.mxu0 0
    %3567 = vmatpush1.bf16.msra.mxu0 %v3224
    %3568 = vmatprep.subr.bf16.mxu0 0
    %3569 = vmatpush1.bf16.msra.mxu0 %v3225
    %3570 = vmatprep.subr.bf16.mxu0 0
    %3571 = vmatpush1.bf16.msra.mxu0 %v3226
    %3572 = vmatprep.subr.bf16.mxu0 0
    %3573 = vmatpush1.bf16.msra.mxu0 %v3227
    %3574 = vmatprep.subr.bf16.mxu0 0
    %3575 = vmatpush1.bf16.msra.mxu0 %v3228
    %3576 = vmatprep.subr.bf16.mxu0 0
    %3577 = vmatpush1.bf16.msra.mxu0 %v3229
    %3578 = vmatprep.subr.bf16.mxu0 0
    %3579 = vmatpush1.bf16.msra.mxu0 %v3230
    %3580 = vmatprep.subr.bf16.mxu0 0
    %3581 = vmatpush1.bf16.msra.mxu0 %v3231
    %3582 = vmatprep.subr.bf16.mxu0 0
    %3583 = vmatpush1.bf16.msra.mxu0 %v3232
    %3584 = vmatprep.subr.bf16.mxu0 0
    %3585 = vmatpush1.bf16.msra.mxu0 %v3233
    %3586 = vmatprep.mubr.bf16.mxu0 %v2597
    %3587 = vmatmul.mubr.bf16.gmra.mrb[0].mxu0 %v2596
    %v3588 = vpop.f32.mrb[0].mxu0
    %v3589 = vadd.f32 %v3549, %v3588
    %v3590 = vpop.f32.mrb[0].mxu0
    %v3591 = vpop.f32.mrb[0].mxu0
    %v3592 = vpop.f32.mrb[0].mxu0
    %3593 = vdwg.mxu0
    %3594 = vmatprep.subr.bf16.mxu0 0
    %3595 = vmatpush1.bf16.msra.mxu0 %v3234
    %3596 = vmatprep.subr.bf16.mxu0 0
    %3597 = vmatpush1.bf16.msra.mxu0 %v3235
    %3598 = vmatprep.subr.bf16.mxu0 0
    %3599 = vmatpush1.bf16.msra.mxu0 %v3236
    %3600 = vmatprep.subr.bf16.mxu0 0
    %3601 = vmatpush1.bf16.msra.mxu0 %v3237
    %3602 = vmatprep.subr.bf16.mxu0 0
    %3603 = vmatpush1.bf16.msra.mxu0 %v3238
    %3604 = vmatprep.subr.bf16.mxu0 0
    %3605 = vmatpush1.bf16.msra.mxu0 %v3239
    %3606 = vmatprep.subr.bf16.mxu0 0
    %3607 = vmatpush1.bf16.msra.mxu0 %v3240
    %3608 = vmatprep.subr.bf16.mxu0 0
    %3609 = vmatpush1.bf16.msra.mxu0 %v3241
    %3610 = vmatprep.subr.bf16.mxu0 0
    %3611 = vmatpush1.bf16.msra.mxu0 %v3242
    %3612 = vmatprep.subr.bf16.mxu0 0
    %3613 = vmatpush1.bf16.msra.mxu0 %v3243
    %3614 = vmatprep.subr.bf16.mxu0 0
    %3615 = vmatpush1.bf16.msra.mxu0 %v3244
    %3616 = vmatprep.subr.bf16.mxu0 0
    %3617 = vmatpush1.bf16.msra.mxu0 %v3245
    %3618 = vmatprep.subr.bf16.mxu0 0
    %3619 = vmatpush1.bf16.msra.mxu0 %v3246
    %3620 = vmatprep.subr.bf16.mxu0 0
    %3621 = vmatpush1.bf16.msra.mxu0 %v3247
    %3622 = vmatprep.subr.bf16.mxu0 0
    %3623 = vmatpush1.bf16.msra.mxu0 %v3248
    %3624 = vmatprep.subr.bf16.mxu0 0
    %3625 = vmatpush1.bf16.msra.mxu0 %v3249
    %3626 = vmatprep.mubr.bf16.mxu0 %v2599
    %3627 = vmatmul.mubr.bf16.gmra.mrb[0].mxu0 %v2598
    %v3628 = vpop.f32.mrb[0].mxu0
    %v3629 = vadd.f32 %v3589, %v3628
    %v3630 = vpop.f32.mrb[0].mxu0
    %v3631 = vpop.f32.mrb[0].mxu0
    %v3632 = vpop.f32.mrb[0].mxu0
    %3633 = vdwg.mxu0
    %3634 = vmatprep.subr.bf16.mxu0 0
    %3635 = vmatpush1.bf16.msra.mxu0 %v3250
    %3636 = vmatprep.subr.bf16.mxu0 0
    %3637 = vmatpush1.bf16.msra.mxu0 %v3251
    %3638 = vmatprep.subr.bf16.mxu0 0
    %3639 = vmatpush1.bf16.msra.mxu0 %v3252
    %3640 = vmatprep.subr.bf16.mxu0 0
    %3641 = vmatpush1.bf16.msra.mxu0 %v3253
    %3642 = vmatprep.subr.bf16.mxu0 0
    %3643 = vmatpush1.bf16.msra.mxu0 %v3254
    %3644 = vmatprep.subr.bf16.mxu0 0
    %3645 = vmatpush1.bf16.msra.mxu0 %v3255
    %3646 = vmatprep.subr.bf16.mxu0 0
    %3647 = vmatpush1.bf16.msra.mxu0 %v3256
    %3648 = vmatprep.subr.bf16.mxu0 0
    %3649 = vmatpush1.bf16.msra.mxu0 %v3257
    %3650 = vmatprep.subr.bf16.mxu0 0
    %3651 = vmatpush1.bf16.msra.mxu0 %v3258
    %3652 = vmatprep.subr.bf16.mxu0 0
    %3653 = vmatpush1.bf16.msra.mxu0 %v3259
    %3654 = vmatprep.subr.bf16.mxu0 0
    %3655 = vmatpush1.bf16.msra.mxu0 %v3260
    %3656 = vmatprep.subr.bf16.mxu0 0
    %3657 = vmatpush1.bf16.msra.mxu0 %v3261
    %3658 = vmatprep.subr.bf16.mxu0 0
    %3659 = vmatpush1.bf16.msra.mxu0 %v3262
    %3660 = vmatprep.subr.bf16.mxu0 0
    %3661 = vmatpush1.bf16.msra.mxu0 %v3263
    %3662 = vmatprep.subr.bf16.mxu0 0
    %3663 = vmatpush1.bf16.msra.mxu0 %v3264
    %3664 = vmatprep.subr.bf16.mxu0 0
    %3665 = vmatpush1.bf16.msra.mxu0 %v3265
    %3666 = vmatprep.mubr.bf16.mxu0 %v2601
    %3667 = vmatmul.mubr.bf16.gmra.mrb[0].mxu0 %v2600
    %v3668 = vpop.f32.mrb[0].mxu0
    %v3669 = vadd.f32 %v3629, %v3668
    %v3670 = vpop.f32.mrb[0].mxu0
    %v3671 = vpop.f32.mrb[0].mxu0
    %v3672 = vpop.f32.mrb[0].mxu0
    %3673 = vdwg.mxu0
    %3674 = vmatprep.subr.bf16.mxu0 0
    %3675 = vmatpush1.bf16.msra.mxu0 %v3266
    %3676 = vmatprep.subr.bf16.mxu0 0
    %3677 = vmatpush1.bf16.msra.mxu0 %v3267
    %3678 = vmatprep.subr.bf16.mxu0 0
    %3679 = vmatpush1.bf16.msra.mxu0 %v3268
    %3680 = vmatprep.subr.bf16.mxu0 0
    %3681 = vmatpush1.bf16.msra.mxu0 %v3269
    %3682 = vmatprep.subr.bf16.mxu0 0
    %3683 = vmatpush1.bf16.msra.mxu0 %v3270
    %3684 = vmatprep.subr.bf16.mxu0 0
    %3685 = vmatpush1.bf16.msra.mxu0 %v3271
    %3686 = vmatprep.subr.bf16.mxu0 0
    %3687 = vmatpush1.bf16.msra.mxu0 %v3272
    %3688 = vmatprep.subr.bf16.mxu0 0
    %3689 = vmatpush1.bf16.msra.mxu0 %v3273
    %3690 = vmatprep.subr.bf16.mxu0 0
    %3691 = vmatpush1.bf16.msra.mxu0 %v3274
    %3692 = vmatprep.subr.bf16.mxu0 0
    %3693 = vmatpush1.bf16.msra.mxu0 %v3275
    %3694 = vmatprep.subr.bf16.mxu0 0
    %3695 = vmatpush1.bf16.msra.mxu0 %v3276
    %3696 = vmatprep.subr.bf16.mxu0 0
    %3697 = vmatpush1.bf16.msra.mxu0 %v3277
    %3698 = vmatprep.subr.bf16.mxu0 0
    %3699 = vmatpush1.bf16.msra.mxu0 %v3278
    %3700 = vmatprep.subr.bf16.mxu0 0
    %3701 = vmatpush1.bf16.msra.mxu0 %v3279
    %3702 = vmatprep.subr.bf16.mxu0 0
    %3703 = vmatpush1.bf16.msra.mxu0 %v3280
    %3704 = vmatprep.subr.bf16.mxu0 0
    %3705 = vmatpush1.bf16.msra.mxu0 %v3281
    %3706 = vmatprep.mubr.bf16.mxu0 %v2603
    %3707 = vmatmul.mubr.bf16.gmra.mrb[0].mxu0 %v2602
    %v3708 = vpop.f32.mrb[0].mxu0
    %v3709 = vadd.f32 %v3669, %v3708
    %v3710 = vpop.f32.mrb[0].mxu0
    %v3711 = vpop.f32.mrb[0].mxu0
    %v3712 = vpop.f32.mrb[0].mxu0
    %3713 = vdwg.mxu0
    %3714 = vmatprep.subr.bf16.mxu0 0
    %3715 = vmatpush1.bf16.msra.mxu0 %v3282
    %3716 = vmatprep.subr.bf16.mxu0 0
    %3717 = vmatpush1.bf16.msra.mxu0 %v3283
    %3718 = vmatprep.subr.bf16.mxu0 0
    %3719 = vmatpush1.bf16.msra.mxu0 %v3284
    %3720 = vmatprep.subr.bf16.mxu0 0
    %3721 = vmatpush1.bf16.msra.mxu0 %v3285
    %3722 = vmatprep.subr.bf16.mxu0 0
    %3723 = vmatpush1.bf16.msra.mxu0 %v3286
    %3724 = vmatprep.subr.bf16.mxu0 0
    %3725 = vmatpush1.bf16.msra.mxu0 %v3287
    %3726 = vmatprep.subr.bf16.mxu0 0
    %3727 = vmatpush1.bf16.msra.mxu0 %v3288
    %3728 = vmatprep.subr.bf16.mxu0 0
    %3729 = vmatpush1.bf16.msra.mxu0 %v3289
    %3730 = vmatprep.subr.bf16.mxu0 0
    %3731 = vmatpush1.bf16.msra.mxu0 %v3290
    %3732 = vmatprep.subr.bf16.mxu0 0
    %3733 = vmatpush1.bf16.msra.mxu0 %v3291
    %3734 = vmatprep.subr.bf16.mxu0 0
    %3735 = vmatpush1.bf16.msra.mxu0 %v3292
    %3736 = vmatprep.subr.bf16.mxu0 0
    %3737 = vmatpush1.bf16.msra.mxu0 %v3293
    %3738 = vmatprep.subr.bf16.mxu0 0
    %3739 = vmatpush1.bf16.msra.mxu0 %v3294
    %3740 = vmatprep.subr.bf16.mxu0 0
    %3741 = vmatpush1.bf16.msra.mxu0 %v3295
    %3742 = vmatprep.subr.bf16.mxu0 0
    %3743 = vmatpush1.bf16.msra.mxu0 %v3296
    %3744 = vmatprep.subr.bf16.mxu0 0
    %3745 = vmatpush1.bf16.msra.mxu0 %v3297
    %3746 = vmatprep.mubr.bf16.mxu0 %v2605
    %3747 = vmatmul.mubr.bf16.gmra.mrb[0].mxu0 %v2604
    %v3748 = vpop.f32.mrb[0].mxu0
    %v3749 = vadd.f32 %v3709, %v3748
    %v3750 = vpop.f32.mrb[0].mxu0
    %v3751 = vpop.f32.mrb[0].mxu0
    %v3752 = vpop.f32.mrb[0].mxu0
    %3753 = vdwg.mxu0
    %3754 = vmatprep.subr.bf16.mxu0 0
    %3755 = vmatpush1.bf16.msra.mxu0 %v3298
    %3756 = vmatprep.subr.bf16.mxu0 0
    %3757 = vmatpush1.bf16.msra.mxu0 %v3299
    %3758 = vmatprep.subr.bf16.mxu0 0
    %3759 = vmatpush1.bf16.msra.mxu0 %v3300
    %3760 = vmatprep.subr.bf16.mxu0 0
    %3761 = vmatpush1.bf16.msra.mxu0 %v3301
    %3762 = vmatprep.subr.bf16.mxu0 0
    %3763 = vmatpush1.bf16.msra.mxu0 %v3302
    %3764 = vmatprep.subr.bf16.mxu0 0
    %3765 = vmatpush1.bf16.msra.mxu0 %v3303
    %3766 = vmatprep.subr.bf16.mxu0 0
    %3767 = vmatpush1.bf16.msra.mxu0 %v3304
    %3768 = vmatprep.subr.bf16.mxu0 0
    %3769 = vmatpush1.bf16.msra.mxu0 %v3305
    %3770 = vmatprep.subr.bf16.mxu0 0
    %3771 = vmatpush1.bf16.msra.mxu0 %v3306
    %3772 = vmatprep.subr.bf16.mxu0 0
    %3773 = vmatpush1.bf16.msra.mxu0 %v3307
    %3774 = vmatprep.subr.bf16.mxu0 0
    %3775 = vmatpush1.bf16.msra.mxu0 %v3308
    %3776 = vmatprep.subr.bf16.mxu0 0
    %3777 = vmatpush1.bf16.msra.mxu0 %v3309
    %3778 = vmatprep.subr.bf16.mxu0 0
    %3779 = vmatpush1.bf16.msra.mxu0 %v3310
    %3780 = vmatprep.subr.bf16.mxu0 0
    %3781 = vmatpush1.bf16.msra.mxu0 %v3311
    %3782 = vmatprep.subr.bf16.mxu0 0
    %3783 = vmatpush1.bf16.msra.mxu0 %v3312
    %3784 = vmatprep.subr.bf16.mxu0 0
    %3785 = vmatpush1.bf16.msra.mxu0 %v3313
    %3786 = vmatprep.mubr.bf16.mxu0 %v2607
    %3787 = vmatmul.mubr.bf16.gmra.mrb[0].mxu0 %v2606
    %v3788 = vpop.f32.mrb[0].mxu0
    %v3789 = vadd.f32 %v3749, %v3788
    %v3790 = vpop.f32.mrb[0].mxu0
    %v3791 = vpop.f32.mrb[0].mxu0
    %v3792 = vpop.f32.mrb[0].mxu0
    %3793 = vdwg.mxu0
    %3794 = vmatprep.subr.bf16.mxu0 0
    %3795 = vmatpush1.bf16.msra.mxu0 %v3314
    %3796 = vmatprep.subr.bf16.mxu0 0
    %3797 = vmatpush1.bf16.msra.mxu0 %v3315
    %3798 = vmatprep.subr.bf16.mxu0 0
    %3799 = vmatpush1.bf16.msra.mxu0 %v3316
    %3800 = vmatprep.subr.bf16.mxu0 0
    %3801 = vmatpush1.bf16.msra.mxu0 %v3317
    %3802 = vmatprep.subr.bf16.mxu0 0
    %3803 = vmatpush1.bf16.msra.mxu0 %v3318
    %3804 = vmatprep.subr.bf16.mxu0 0
    %3805 = vmatpush1.bf16.msra.mxu0 %v3319
    %3806 = vmatprep.subr.bf16.mxu0 0
    %3807 = vmatpush1.bf16.msra.mxu0 %v3320
    %3808 = vmatprep.subr.bf16.mxu0 0
    %3809 = vmatpush1.bf16.msra.mxu0 %v3321
    %3810 = vmatprep.subr.bf16.mxu0 0
    %3811 = vmatpush1.bf16.msra.mxu0 %v3322
    %3812 = vmatprep.subr.bf16.mxu0 0
    %3813 = vmatpush1.bf16.msra.mxu0 %v3323
    %3814 = vmatprep.subr.bf16.mxu0 0
    %3815 = vmatpush1.bf16.msra.mxu0 %v3324
    %3816 = vmatprep.subr.bf16.mxu0 0
    %3817 = vmatpush1.bf16.msra.mxu0 %v3325
    %3818 = vmatprep.subr.bf16.mxu0 0
    %3819 = vmatpush1.bf16.msra.mxu0 %v3326
    %3820 = vmatprep.subr.bf16.mxu0 0
    %3821 = vmatpush1.bf16.msra.mxu0 %v3327
    %3822 = vmatprep.subr.bf16.mxu0 0
    %3823 = vmatpush1.bf16.msra.mxu0 %v3328
    %3824 = vmatprep.subr.bf16.mxu0 0
    %3825 = vmatpush1.bf16.msra.mxu0 %v3329
    %3826 = vmatprep.mubr.bf16.mxu0 %v2609
    %3827 = vmatmul.mubr.bf16.gmra.mrb[0].mxu0 %v2608
    %v3828 = vpop.f32.mrb[0].mxu0
    %v3829 = vadd.f32 %v3789, %v3828
    %v3830 = vpop.f32.mrb[0].mxu0
    %v3831 = vpop.f32.mrb[0].mxu0
    %v3832 = vpop.f32.mrb[0].mxu0
    %3833 = vdwg.mxu0
    %v3834 = vsub.f32 0.0, %v3829
    %v3835 = vmul.f32 %v3834, 1.442695
    %v3836 = vpow.pop %v3835
    %v3837 = vadd.f32 %v3836, 1.0
    %v3838 = vrcp.pop %v3837
    %v3839 = vmul.f32 1.0, %v3838
    %v3840 = vmul.f32 %v3829, %v3839
    %v3841 = vsub.f32 %v3829, -2.2
    %v3842 = vmul.f32 %v3841, 2.5
    %v3843 = vfloor.f32 %v3842
    %v3844 = vsub.f32 %v3842, %v3843
    %v3845 = vmul.f32 %v3844, %v3844
    %v3846 = vmul.f32 %v3845, %v3844
    %v3847 = vsub.f32 1.0, %v3844
    %v3848 = vmul.f32 %v3847, %v3847
    %v3849 = vmul.f32 %v3848, %v3847
    %v3850 = vmul.f32 %v3849, 0.16666667
    %v3851 = vmul.f32 %v3846, 0.5
    %v3852 = vsub.f32 %v3851, %v3845
    %v3853 = vadd.f32 %v3852, 0.6666667
    %v3854 = vmul.f32 %v3846, -0.5
    %v3855 = vmul.f32 %v3845, 0.5
    %v3856 = vadd.f32 %v3854, %v3855
    %v3857 = vmul.f32 %v3844, 0.5
    %v3858 = vadd.f32 %v3856, %v3857
    %v3859 = vadd.f32 %v3858, 0.16666667
    %v3860 = vmul.f32 %v3846, 0.16666667
    %vm3861 = vcmp.eq.f32.partialorder %v3843, 0.0
    %vm3862 = vcmp.eq.f32.partialorder %v3843, 1.0
    %vm3863 = vcmp.eq.f32.partialorder %v3843, 2.0
    %vm3864 = vcmp.eq.f32.partialorder %v3843, 3.0
    %v3865 = vsel %vm3864, %v3850, 0.0
    %v3866 = vsel %vm3863, %v3853, %v3865
    %v3867 = vsel %vm3862, %v3859, %v3866
    %v3868 = vsel %vm3861, %v3860, %v3867
    %vm3869 = vcmp.eq.f32.partialorder %v3843, 4.0
    %v3870 = vsel %vm3869, %v3850, 0.0
    %v3871 = vsel %vm3864, %v3853, %v3870
    %v3872 = vsel %vm3863, %v3859, %v3871
    %v3873 = vsel %vm3862, %v3860, %v3872
    %vm3874 = vcmp.eq.f32.partialorder %v3843, 5.0
    %v3875 = vsel %vm3874, %v3850, 0.0
    %v3876 = vsel %vm3869, %v3853, %v3875
    %v3877 = vsel %vm3864, %v3859, %v3876
    %v3878 = vsel %vm3863, %v3860, %v3877
    %vm3879 = vcmp.eq.f32.partialorder %v3843, 6.0
    %v3880 = vsel %vm3879, %v3850, 0.0
    %v3881 = vsel %vm3874, %v3853, %v3880
    %v3882 = vsel %vm3869, %v3859, %v3881
    %v3883 = vsel %vm3864, %v3860, %v3882
    %vm3884 = vcmp.eq.f32.partialorder %v3843, 7.0
    %v3885 = vsel %vm3884, %v3850, 0.0
    %v3886 = vsel %vm3879, %v3853, %v3885
    %v3887 = vsel %vm3874, %v3859, %v3886
    %v3888 = vsel %vm3869, %v3860, %v3887
    %vm3889 = vcmp.eq.f32.partialorder %v3843, 8.0
    %v3890 = vsel %vm3889, %v3850, 0.0
    %v3891 = vsel %vm3884, %v3853, %v3890
    %v3892 = vsel %vm3879, %v3859, %v3891
    %v3893 = vsel %vm3874, %v3860, %v3892
    %vm3894 = vcmp.eq.f32.partialorder %v3843, 9.0
    %v3895 = vsel %vm3894, %v3850, 0.0
    %v3896 = vsel %vm3889, %v3853, %v3895
    %v3897 = vsel %vm3884, %v3859, %v3896
    %v3898 = vsel %vm3879, %v3860, %v3897
    %vm3899 = vcmp.eq.f32.partialorder %v3843, 10.0
    %v3900 = vsel %vm3899, %v3850, 0.0
    %v3901 = vsel %vm3894, %v3853, %v3900
    %v3902 = vsel %vm3889, %v3859, %v3901
    %v3903 = vsel %vm3884, %v3860, %v3902
    %v3904 = vld [vmem:[#allocation10] sm:$0xff]
    %v3905 = vld [vmem:[#allocation10 + $0x8] sm:$0x1]
    %v3908 = vlaneseq
    %v3909 = vshrl.u32 %v3908, 7
    %v3910 = vsub.s32 0, %v3909
    %v3911 = vrot.slane %v3904, %v3910
    %v3912 = vlaneseq
    %v3913 = vshrl.u32 %v3912, 7
    %v3914 = vsub.s32 1, %v3913
    %v3915 = vrot.slane %v3904, %v3914
    %v3916 = vlaneseq
    %v3917 = vshrl.u32 %v3916, 7
    %v3918 = vsub.s32 2, %v3917
    %v3919 = vrot.slane %v3904, %v3918
    %v3920 = vlaneseq
    %v3921 = vshrl.u32 %v3920, 7
    %v3922 = vsub.s32 3, %v3921
    %v3923 = vrot.slane %v3904, %v3922
    %v3924 = vlaneseq
    %v3925 = vshrl.u32 %v3924, 7
    %v3926 = vsub.s32 4, %v3925
    %v3927 = vrot.slane %v3904, %v3926
    %v3928 = vlaneseq
    %v3929 = vshrl.u32 %v3928, 7
    %v3930 = vsub.s32 5, %v3929
    %v3931 = vrot.slane %v3904, %v3930
    %v3932 = vlaneseq
    %v3933 = vshrl.u32 %v3932, 7
    %v3934 = vsub.s32 6, %v3933
    %v3935 = vrot.slane %v3904, %v3934
    %v3936 = vlaneseq
    %v3937 = vshrl.u32 %v3936, 7
    %v3938 = vsub.s32 7, %v3937
    %v3939 = vrot.slane %v3904, %v3938
    %v3940 = vlaneseq
    %v3941 = vshrl.u32 %v3940, 7
    %v3942 = vsub.s32 0, %v3941
    %v3943 = vrot.slane %v3905, %v3942
    %v3953 = vmul.f32 %v3840, %v3911
    %v3954 = vmul.f32 %v3868, %v3915
    %v3955 = vmul.f32 %v3873, %v3919
    %v3956 = vmul.f32 %v3878, %v3923
    %v3957 = vmul.f32 %v3883, %v3927
    %v3958 = vmul.f32 %v3888, %v3931
    %v3959 = vmul.f32 %v3893, %v3935
    %v3960 = vmul.f32 %v3898, %v3939
    %v3961 = vmul.f32 %v3903, %v3943
    %v3962 = vadd.f32 %v3953, %v3954
    %v3963 = vadd.f32 %v3962, %v3955
    %v3964 = vadd.f32 %v3963, %v3956
    %v3965 = vadd.f32 %v3964, %v3957
    %v3966 = vadd.f32 %v3965, %v3958
    %v3967 = vadd.f32 %v3966, %v3959
    %v3968 = vadd.f32 %v3967, %v3960
    %v3969 = vadd.f32 %v3968, %v3961
    %3970 = vadd.xlane.f32.xlu0 %v3969
    %v3971 = vpop.xlane.xlu0 %3970
    %3972 = vst [vmem:[#allocation14] sm:$0xff] %v3971
    // Predicated region
    $region58: #{tpu_custom_call.1} parent=1 // pred_check
      _
    $region59: #{tpu_custom_call.1} parent=1 // pred_check_branch
      %3974 = sbr.rel (0) target = $region61
    $region60: #{tpu_custom_call.1} parent=1 // pred_region
      %s3976 = ssub.s32 128, 128
      %3977 = vsyncadd [#allocation4], %s3976
      %s3979 = sshll.u32 [#allocation14], 4
      %s3980 = int_to_ptr.vmem [resolvable:$true] %s3979
      %3982 = dma.vmem_to_hbm [thread:$0]  %s3980, 128, %s7, [#allocation4]
    $region61: #{tpu_custom_call.1} parent=1 // pred_fallthru
      _
    // Predicated region
    $region62: #{tpu_custom_call.1} parent=1 // pred_check
      _
    $region63: #{tpu_custom_call.1} parent=1 // pred_check_branch
      %3984 = sbr.rel (0) target = $region65
    $region64: #{tpu_custom_call.1} parent=1 // pred_region
      %3985 = dma.done [#allocation4], 128
    $region65: #{tpu_custom_call.1} parent=1 // pred_fallthru
      _
    %3986 = vsyncpa [#allocation3], 1
    %3987 = vsyncpa [#allocation6], 1
    %3988 = vsyncpa [#allocation9], 1
    %3989 = vsyncpa [#allocation12], 1
    %3990 = vsyncpa [#allocation4], 1

</llo_original>
